<compile_context>
chip_gen: v5e
topology: v5e:2x2
jax: 0.10.0
libtpu: 0.0.40
codegen_flags: <defaults>
</compile_context>

<pallas_src>
import functools
import math

import jax
import jax.numpy as jnp
from jax.experimental import pallas as pl
from jax.experimental.pallas import tpu as pltpu

LN_EPS = 1e-5  # torch nn.LayerNorm default


def _layer_norm(x, g, b):
    mu = jnp.mean(x, axis=-1, keepdims=True)
    var = jnp.mean((x - mu) ** 2, axis=-1, keepdims=True)
    return (x - mu) * jax.lax.rsqrt(var + LN_EPS) * g + b


# --------------------------------------------------------------------------
# fully fused forward kernel, one batch element per grid step
# --------------------------------------------------------------------------
def fused_transformer_kernel(x_ref, pw_ref, pb_ref, cls_ref,
                             alng_ref, alnb_ref, wqkv_ref, wo_ref, bo_ref,
                             flng_ref, flnb_ref, w1_ref, b1_ref, w2_ref, b2_ref,
                             ng_ref, nb_ref, o_ref,
                             *, depth, heads, dim_head):
    inner = heads * dim_head
    scale = dim_head ** -0.5

    x = x_ref[0]                                              # (N, input_dim)

    # projection: Linear(input_dim, heads*dim_head) + ReLU
    h = jnp.dot(x, pw_ref[...], preferred_element_type=jnp.float32) + pb_ref[...]
    h = jnp.maximum(h, 0.0)                                   # (N, dim)

    # pos_enc=None, emb_dropout p=0 -> identity.  pool='cls': prepend cls token.
    h = jnp.concatenate([cls_ref[...], h], axis=0)            # (S, dim), S = N+1
    S = h.shape[0]
    dim = h.shape[1]

    for d in range(depth):                                    # static unroll
        # ---------------- PreNorm + Attention + residual ----------------
        xn = _layer_norm(h, alng_ref[d], alnb_ref[d])         # (S, dim)
        qkv = jnp.dot(xn, wqkv_ref[d],
                      preferred_element_type=jnp.float32)     # (S, 3*inner)
        wo_d = wo_ref[d]                                      # (inner, dim)

        y = jnp.zeros((S, dim), jnp.float32)
        for hd in range(heads):
            lo = hd * dim_head
            hi = lo + dim_head
            q = qkv[:, lo:hi]                                 # (S, dh)
            k = qkv[:, inner + lo:inner + hi]                 # (S, dh)
            v = qkv[:, 2 * inner + lo:2 * inner + hi]         # (S, dh)

            # scores: contract feature axes directly (no k.T materialized)
            dots = jax.lax.dot_general(
                q, k, (((1,), (1,)), ((), ())),
                preferred_element_type=jnp.float32) * scale   # (S, S)
            dots = dots - jnp.max(dots, axis=-1, keepdims=True)
            e = jnp.exp(dots)
            attn = e * pl.reciprocal(jnp.sum(e, axis=-1, keepdims=True),
                                     approx=True)             # softmax(dim=-1)

            # fold the per-head concat into the output projection:
            #   y += attn_h @ (v_h @ wo[h*dh:(h+1)*dh, :])    (lane dim = dim)
            vw = jnp.dot(v, wo_d[lo:hi, :],
                         preferred_element_type=jnp.float32)  # (S, dim)
            y = y + jnp.dot(attn, vw, preferred_element_type=jnp.float32)

        h = y + bo_ref[d] + h                                 # residual

        # ---------------- PreNorm + FeedForward + residual ----------------
        xn = _layer_norm(h, flng_ref[d], flnb_ref[d])
        t = jnp.dot(xn, w1_ref[d], preferred_element_type=jnp.float32) + b1_ref[d]
        # exact (erf) GELU, matching torch nn.GELU default
        t = 0.5 * t * (1.0 + jax.lax.erf(t * (1.0 / math.sqrt(2.0))))
        h = jnp.dot(t, w2_ref[d], preferred_element_type=jnp.float32) + b2_ref[d] + h

    # pool == 'cls' -> x[:, 0]; final LayerNorm
    pooled = h[0:1, :]                                        # (1, dim)
    o_ref[0] = _layer_norm(pooled, ng_ref[...], nb_ref[...])


# --------------------------------------------------------------------------
# wrapper
# --------------------------------------------------------------------------
def transformer_forward(x, params, *, depth, heads, dim_head):
    B, N, input_dim = x.shape
    dim = params["proj_w"].shape[1]

    def full(arr):
        nd = arr.ndim
        return pl.BlockSpec(arr.shape, lambda b, _nd=nd: (0,) * _nd)

    kern = functools.partial(fused_transformer_kernel,
                             depth=depth, heads=heads, dim_head=dim_head)

    out = pl.pallas_call(
        kern,
        out_shape=jax.ShapeDtypeStruct((B, 1, dim), jnp.float32),
        grid=(B,),
        in_specs=[
            pl.BlockSpec((1, N, input_dim), lambda b: (b, 0, 0)),
            full(params["proj_w"]), full(params["proj_b"]), full(params["cls"]),
            full(params["attn_ln_g"]), full(params["attn_ln_b"]),
            full(params["wqkv"]), full(params["wo"]), full(params["bo"]),
            full(params["ff_ln_g"]), full(params["ff_ln_b"]),
            full(params["w1"]), full(params["b1"]),
            full(params["w2"]), full(params["b2"]),
            full(params["norm_g"]), full(params["norm_b"]),
        ],
        out_specs=pl.BlockSpec((1, 1, dim), lambda b: (b, 0, 0)),
        compiler_params=pltpu.CompilerParams(
            dimension_semantics=("parallel",)),
    )(x, params["proj_w"], params["proj_b"], params["cls"],
      params["attn_ln_g"], params["attn_ln_b"],
      params["wqkv"], params["wo"], params["bo"],
      params["ff_ln_g"], params["ff_ln_b"],
      params["w1"], params["b1"], params["w2"], params["b2"],
      params["norm_g"], params["norm_b"])
    return out[:, 0, :]                                       # (B, dim)


# --------------------------------------------------------------------------
# parameters (deterministic, synthetic) -- exactly 10 keys drawn
# --------------------------------------------------------------------------
def init_params(key, *, input_dim, dim, depth, heads, dim_head, mlp_dim):
    inner = heads * dim_head
    assert inner == dim, "consistent config: heads*dim_head == dim"
    k = jax.random.split(key, 10)

    def w(kk, shape, scale=0.02):
        return (scale * jax.random.normal(kk, shape)).astype(jnp.float32)

    return {
        "proj_w": w(k[0], (input_dim, dim)),
        "proj_b": w(k[1], (1, dim)),
        "cls": jax.random.normal(k[2], (1, dim)).astype(jnp.float32),
        "attn_ln_g": jnp.ones((depth, 1, dim), jnp.float32),
        "attn_ln_b": jnp.zeros((depth, 1, dim), jnp.float32),
        "wqkv": w(k[3], (depth, dim, 3 * inner)),             # to_qkv (no bias)
        "wo": w(k[4], (depth, inner, dim)),                   # to_out Linear
        "bo": w(k[5], (depth, 1, dim)),
        "ff_ln_g": jnp.ones((depth, 1, dim), jnp.float32),
        "ff_ln_b": jnp.zeros((depth, 1, dim), jnp.float32),
        "w1": w(k[6], (depth, dim, mlp_dim)),
        "b1": w(k[7], (depth, 1, mlp_dim)),
        "w2": w(k[8], (depth, mlp_dim, dim)),
        "b2": w(k[9], (depth, 1, dim)),
        "norm_g": jnp.ones((1, dim), jnp.float32),
        "norm_b": jnp.zeros((1, dim), jnp.float32),
    }


if __name__ == "__main__":
    # small, consistent, lane-dense config: dim = heads * dim_head = 128
    B, N = 2, 8
    INPUT_DIM, DIM, DEPTH, HEADS, DIM_HEAD, MLP_DIM = 128, 128, 2, 4, 32, 128

    key = jax.random.PRNGKey(0)
    kx, kp = jax.random.split(key)
    x = jax.random.normal(kx, (B, N, INPUT_DIM), dtype=jnp.float32)
    params = init_params(kp, input_dim=INPUT_DIM, dim=DIM, depth=DEPTH,
                         heads=HEADS, dim_head=DIM_HEAD, mlp_dim=MLP_DIM)

    out = transformer_forward(x, params, depth=DEPTH, heads=HEADS,
                              dim_head=DIM_HEAD)
    out = jax.block_until_ready(out)
    assert out.shape == (B, DIM) and out.dtype == jnp.float32
    print("KERNEL_OK")
</pallas_src>

<mosaic_0001>
module attributes {stable_mosaic.version = 11 : i64} {
  func.func @fused_transformer_kernel(%arg0: i32, %arg1: memref<1x8x128xf32, #tpu.memory_space<vmem>>, %arg2: memref<128x128xf32, #tpu.memory_space<vmem>>, %arg3: memref<1x128xf32, #tpu.memory_space<vmem>>, %arg4: memref<1x128xf32, #tpu.memory_space<vmem>>, %arg5: memref<2x1x128xf32, #tpu.memory_space<vmem>>, %arg6: memref<2x1x128xf32, #tpu.memory_space<vmem>>, %arg7: memref<2x128x384xf32, #tpu.memory_space<vmem>>, %arg8: memref<2x128x128xf32, #tpu.memory_space<vmem>>, %arg9: memref<2x1x128xf32, #tpu.memory_space<vmem>>, %arg10: memref<2x1x128xf32, #tpu.memory_space<vmem>>, %arg11: memref<2x1x128xf32, #tpu.memory_space<vmem>>, %arg12: memref<2x128x128xf32, #tpu.memory_space<vmem>>, %arg13: memref<2x1x128xf32, #tpu.memory_space<vmem>>, %arg14: memref<2x128x128xf32, #tpu.memory_space<vmem>>, %arg15: memref<2x1x128xf32, #tpu.memory_space<vmem>>, %arg16: memref<1x128xf32, #tpu.memory_space<vmem>>, %arg17: memref<1x128xf32, #tpu.memory_space<vmem>>, %arg18: memref<1x1x128xf32, #tpu.memory_space<vmem>>) attributes {dimension_semantics = [#tpu.dimension_semantics<parallel>], iteration_bounds = array<i64: 2>, scalar_prefetch = 0 : i64, scratch_operands = 0 : i64, tpu.core_type = #tpu.core_type<tc>, window_params = [{transform_indices = @transform_0, window_bounds = array<i64: 1, 8, 128>}, {pipeline_mode = #tpu.pipeline_mode<synchronous>, transform_indices = @transform_1, window_bounds = array<i64: 128, 128>}, {pipeline_mode = #tpu.pipeline_mode<synchronous>, transform_indices = @transform_2, window_bounds = array<i64: 1, 128>}, {pipeline_mode = #tpu.pipeline_mode<synchronous>, transform_indices = @transform_3, window_bounds = array<i64: 1, 128>}, {pipeline_mode = #tpu.pipeline_mode<synchronous>, transform_indices = @transform_4, window_bounds = array<i64: 2, 1, 128>}, {pipeline_mode = #tpu.pipeline_mode<synchronous>, transform_indices = @transform_5, window_bounds = array<i64: 2, 1, 128>}, {pipeline_mode = #tpu.pipeline_mode<synchronous>, transform_indices = @transform_6, window_bounds = array<i64: 2, 128, 384>}, {pipeline_mode = #tpu.pipeline_mode<synchronous>, transform_indices = @transform_7, window_bounds = array<i64: 2, 128, 128>}, {pipeline_mode = #tpu.pipeline_mode<synchronous>, transform_indices = @transform_8, window_bounds = array<i64: 2, 1, 128>}, {pipeline_mode = #tpu.pipeline_mode<synchronous>, transform_indices = @transform_9, window_bounds = array<i64: 2, 1, 128>}, {pipeline_mode = #tpu.pipeline_mode<synchronous>, transform_indices = @transform_10, window_bounds = array<i64: 2, 1, 128>}, {pipeline_mode = #tpu.pipeline_mode<synchronous>, transform_indices = @transform_11, window_bounds = array<i64: 2, 128, 128>}, {pipeline_mode = #tpu.pipeline_mode<synchronous>, transform_indices = @transform_12, window_bounds = array<i64: 2, 1, 128>}, {pipeline_mode = #tpu.pipeline_mode<synchronous>, transform_indices = @transform_13, window_bounds = array<i64: 2, 128, 128>}, {pipeline_mode = #tpu.pipeline_mode<synchronous>, transform_indices = @transform_14, window_bounds = array<i64: 2, 1, 128>}, {pipeline_mode = #tpu.pipeline_mode<synchronous>, transform_indices = @transform_15, window_bounds = array<i64: 1, 128>}, {pipeline_mode = #tpu.pipeline_mode<synchronous>, transform_indices = @transform_16, window_bounds = array<i64: 1, 128>}, {transform_indices = @transform_17, window_bounds = array<i64: 1, 1, 128>}]} {
    %c0 = arith.constant 0 : index
    %c0_0 = arith.constant 0 : index
    %c0_1 = arith.constant 0 : index
    %0 = vector.load %arg1[%c0, %c0_0, %c0_1] : memref<1x8x128xf32, #tpu.memory_space<vmem>>, vector<1x8x128xf32>
    %1 = vector.shape_cast %0 : vector<1x8x128xf32> to vector<8x128xf32>
    %c0_2 = arith.constant 0 : index
    %c0_3 = arith.constant 0 : index
    %2 = vector.load %arg2[%c0_2, %c0_3] : memref<128x128xf32, #tpu.memory_space<vmem>>, vector<128x128xf32>
    %cst = arith.constant dense<0.000000e+00> : vector<8x128xf32>
    %3 = tpu.matmul %1, %2, %cst {dimension_numbers = #tpu.dot_dimension_numbers<[1], [0], [0], [1], [0, 0, 1, 1], [], []>} : vector<8x128xf32>, vector<128x128xf32>, vector<8x128xf32> -> vector<8x128xf32>
    %c0_4 = arith.constant 0 : index
    %c0_5 = arith.constant 0 : index
    %4 = vector.load %arg3[%c0_4, %c0_5] : memref<1x128xf32, #tpu.memory_space<vmem>>, vector<1x128xf32>
    %5 = vector.broadcast %4 : vector<1x128xf32> to vector<8x128xf32>
    %6 = arith.addf %3, %5 : vector<8x128xf32>
    %cst_6 = arith.constant 0.000000e+00 : f32
    %7 = vector.broadcast %cst_6 : f32 to vector<8x128xf32>
    %8 = arith.maximumf %6, %7 : vector<8x128xf32>
    %c0_7 = arith.constant 0 : index
    %c0_8 = arith.constant 0 : index
    %9 = vector.load %arg4[%c0_7, %c0_8] : memref<1x128xf32, #tpu.memory_space<vmem>>, vector<1x128xf32>
    %10 = tpu.concatenate %9, %8 in 0 : vector<1x128xf32>, vector<8x128xf32> -> vector<9x128xf32>
    %c0_9 = arith.constant 0 : index
    %c0_10 = arith.constant 0 : index
    %c0_11 = arith.constant 0 : index
    %11 = vector.load %arg5[%c0_9, %c0_10, %c0_11] : memref<2x1x128xf32, #tpu.memory_space<vmem>>, vector<1x1x128xf32>
    %12 = vector.shape_cast %11 : vector<1x1x128xf32> to vector<1x128xf32>
    %c0_12 = arith.constant 0 : index
    %c0_13 = arith.constant 0 : index
    %c0_14 = arith.constant 0 : index
    %13 = vector.load %arg6[%c0_12, %c0_13, %c0_14] : memref<2x1x128xf32, #tpu.memory_space<vmem>>, vector<1x1x128xf32>
    %14 = vector.shape_cast %13 : vector<1x1x128xf32> to vector<1x128xf32>
    %cst_15 = arith.constant dense<0.000000e+00> : vector<9xf32>
    %15 = vector.multi_reduction <add>, %10, %cst_15 [1] : vector<9x128xf32> to vector<9xf32>
    %16 = vector.shape_cast %15 : vector<9xf32> to vector<9x1xf32>
    %cst_16 = arith.constant 1.280000e+02 : f32
    %17 = vector.broadcast %cst_16 : f32 to vector<9x1xf32>
    %18 = arith.divf %16, %17 : vector<9x1xf32>
    %19 = vector.broadcast %18 : vector<9x1xf32> to vector<9x128xf32>
    %20 = arith.subf %10, %19 : vector<9x128xf32>
    %21 = arith.mulf %20, %20 : vector<9x128xf32>
    %cst_17 = arith.constant dense<0.000000e+00> : vector<9xf32>
    %22 = vector.multi_reduction <add>, %21, %cst_17 [1] : vector<9x128xf32> to vector<9xf32>
    %23 = vector.shape_cast %22 : vector<9xf32> to vector<9x1xf32>
    %cst_18 = arith.constant 1.280000e+02 : f32
    %24 = vector.broadcast %cst_18 : f32 to vector<9x1xf32>
    %25 = arith.divf %23, %24 : vector<9x1xf32>
    %26 = vector.broadcast %18 : vector<9x1xf32> to vector<9x128xf32>
    %27 = arith.subf %10, %26 : vector<9x128xf32>
    %cst_19 = arith.constant 9.99999974E-6 : f32
    %28 = vector.broadcast %cst_19 : f32 to vector<9x1xf32>
    %29 = arith.addf %25, %28 : vector<9x1xf32>
    %30 = math.rsqrt %29 : vector<9x1xf32>
    %31 = vector.broadcast %30 : vector<9x1xf32> to vector<9x128xf32>
    %32 = arith.mulf %27, %31 : vector<9x128xf32>
    %33 = vector.broadcast %12 : vector<1x128xf32> to vector<9x128xf32>
    %34 = arith.mulf %32, %33 : vector<9x128xf32>
    %35 = vector.broadcast %14 : vector<1x128xf32> to vector<9x128xf32>
    %36 = arith.addf %34, %35 : vector<9x128xf32>
    %c0_20 = arith.constant 0 : index
    %c0_21 = arith.constant 0 : index
    %c0_22 = arith.constant 0 : index
    %37 = vector.load %arg7[%c0_20, %c0_21, %c0_22] : memref<2x128x384xf32, #tpu.memory_space<vmem>>, vector<1x128x384xf32>
    %38 = vector.shape_cast %37 : vector<1x128x384xf32> to vector<128x384xf32>
    %cst_23 = arith.constant dense<0.000000e+00> : vector<9x384xf32>
    %39 = tpu.matmul %36, %38, %cst_23 {dimension_numbers = #tpu.dot_dimension_numbers<[1], [0], [0], [1], [0, 0, 1, 1], [], []>} : vector<9x128xf32>, vector<128x384xf32>, vector<9x384xf32> -> vector<9x384xf32>
    %c0_24 = arith.constant 0 : index
    %c0_25 = arith.constant 0 : index
    %c0_26 = arith.constant 0 : index
    %40 = vector.load %arg8[%c0_24, %c0_25, %c0_26] : memref<2x128x128xf32, #tpu.memory_space<vmem>>, vector<1x128x128xf32>
    %41 = vector.shape_cast %40 : vector<1x128x128xf32> to vector<128x128xf32>
    %cst_27 = arith.constant 0.000000e+00 : f32
    %42 = vector.broadcast %cst_27 : f32 to vector<9x128xf32>
    %43 = vector.extract_strided_slice %39 {offsets = [0, 0], sizes = [9, 32], strides = [1, 1]} : vector<9x384xf32> to vector<9x32xf32>
    %44 = vector.extract_strided_slice %39 {offsets = [0, 128], sizes = [9, 32], strides = [1, 1]} : vector<9x384xf32> to vector<9x32xf32>
    %45 = vector.extract_strided_slice %39 {offsets = [0, 256], sizes = [9, 32], strides = [1, 1]} : vector<9x384xf32> to vector<9x32xf32>
    %cst_28 = arith.constant dense<0.000000e+00> : vector<9x9xf32>
    %46 = tpu.matmul %43, %44, %cst_28 {dimension_numbers = #tpu.dot_dimension_numbers<[1], [1], [0], [0], [0, 0, 1, 0], [], []>} : vector<9x32xf32>, vector<9x32xf32>, vector<9x9xf32> -> vector<9x9xf32>
    %cst_29 = arith.constant 0.176776692 : f32
    %47 = vector.broadcast %cst_29 : f32 to vector<9x9xf32>
    %48 = arith.mulf %46, %47 : vector<9x9xf32>
    %cst_30 = arith.constant dense<0xFF800000> : vector<9xf32>
    %49 = vector.multi_reduction <maximumf>, %48, %cst_30 [1] : vector<9x9xf32> to vector<9xf32>
    %50 = vector.shape_cast %49 : vector<9xf32> to vector<9x1xf32>
    %51 = vector.broadcast %50 : vector<9x1xf32> to vector<9x9xf32>
    %52 = arith.subf %48, %51 : vector<9x9xf32>
    %53 = math.exp %52 : vector<9x9xf32>
    %cst_31 = arith.constant dense<0.000000e+00> : vector<9xf32>
    %54 = vector.multi_reduction <add>, %53, %cst_31 [1] : vector<9x9xf32> to vector<9xf32>
    %55 = vector.shape_cast %54 : vector<9xf32> to vector<9x1xf32>
    %56 = tpu.reciprocal %55 {approx = true} : vector<9x1xf32> -> vector<9x1xf32>
    %57 = vector.broadcast %56 : vector<9x1xf32> to vector<9x9xf32>
    %58 = arith.mulf %53, %57 : vector<9x9xf32>
    %59 = vector.extract_strided_slice %41 {offsets = [0, 0], sizes = [32, 128], strides = [1, 1]} : vector<128x128xf32> to vector<32x128xf32>
    %cst_32 = arith.constant dense<0.000000e+00> : vector<9x128xf32>
    %60 = tpu.matmul %45, %59, %cst_32 {dimension_numbers = #tpu.dot_dimension_numbers<[1], [0], [0], [1], [0, 0, 1, 1], [], []>} : vector<9x32xf32>, vector<32x128xf32>, vector<9x128xf32> -> vector<9x128xf32>
    %cst_33 = arith.constant dense<0.000000e+00> : vector<9x128xf32>
    %61 = tpu.matmul %58, %60, %cst_33 {dimension_numbers = #tpu.dot_dimension_numbers<[1], [0], [0], [1], [0, 0, 1, 1], [], []>} : vector<9x9xf32>, vector<9x128xf32>, vector<9x128xf32> -> vector<9x128xf32>
    %62 = arith.addf %42, %61 : vector<9x128xf32>
    %63 = vector.extract_strided_slice %39 {offsets = [0, 32], sizes = [9, 32], strides = [1, 1]} : vector<9x384xf32> to vector<9x32xf32>
    %64 = vector.extract_strided_slice %39 {offsets = [0, 160], sizes = [9, 32], strides = [1, 1]} : vector<9x384xf32> to vector<9x32xf32>
    %65 = vector.extract_strided_slice %39 {offsets = [0, 288], sizes = [9, 32], strides = [1, 1]} : vector<9x384xf32> to vector<9x32xf32>
    %cst_34 = arith.constant dense<0.000000e+00> : vector<9x9xf32>
    %66 = tpu.matmul %63, %64, %cst_34 {dimension_numbers = #tpu.dot_dimension_numbers<[1], [1], [0], [0], [0, 0, 1, 0], [], []>} : vector<9x32xf32>, vector<9x32xf32>, vector<9x9xf32> -> vector<9x9xf32>
    %cst_35 = arith.constant 0.176776692 : f32
    %67 = vector.broadcast %cst_35 : f32 to vector<9x9xf32>
    %68 = arith.mulf %66, %67 : vector<9x9xf32>
    %cst_36 = arith.constant dense<0xFF800000> : vector<9xf32>
    %69 = vector.multi_reduction <maximumf>, %68, %cst_36 [1] : vector<9x9xf32> to vector<9xf32>
    %70 = vector.shape_cast %69 : vector<9xf32> to vector<9x1xf32>
    %71 = vector.broadcast %70 : vector<9x1xf32> to vector<9x9xf32>
    %72 = arith.subf %68, %71 : vector<9x9xf32>
    %73 = math.exp %72 : vector<9x9xf32>
    %cst_37 = arith.constant dense<0.000000e+00> : vector<9xf32>
    %74 = vector.multi_reduction <add>, %73, %cst_37 [1] : vector<9x9xf32> to vector<9xf32>
    %75 = vector.shape_cast %74 : vector<9xf32> to vector<9x1xf32>
    %76 = tpu.reciprocal %75 {approx = true} : vector<9x1xf32> -> vector<9x1xf32>
    %77 = vector.broadcast %76 : vector<9x1xf32> to vector<9x9xf32>
    %78 = arith.mulf %73, %77 : vector<9x9xf32>
    %79 = vector.extract_strided_slice %41 {offsets = [32, 0], sizes = [32, 128], strides = [1, 1]} : vector<128x128xf32> to vector<32x128xf32>
    %cst_38 = arith.constant dense<0.000000e+00> : vector<9x128xf32>
    %80 = tpu.matmul %65, %79, %cst_38 {dimension_numbers = #tpu.dot_dimension_numbers<[1], [0], [0], [1], [0, 0, 1, 1], [], []>} : vector<9x32xf32>, vector<32x128xf32>, vector<9x128xf32> -> vector<9x128xf32>
    %cst_39 = arith.constant dense<0.000000e+00> : vector<9x128xf32>
    %81 = tpu.matmul %78, %80, %cst_39 {dimension_numbers = #tpu.dot_dimension_numbers<[1], [0], [0], [1], [0, 0, 1, 1], [], []>} : vector<9x9xf32>, vector<9x128xf32>, vector<9x128xf32> -> vector<9x128xf32>
    %82 = arith.addf %62, %81 : vector<9x128xf32>
    %83 = vector.extract_strided_slice %39 {offsets = [0, 64], sizes = [9, 32], strides = [1, 1]} : vector<9x384xf32> to vector<9x32xf32>
    %84 = vector.extract_strided_slice %39 {offsets = [0, 192], sizes = [9, 32], strides = [1, 1]} : vector<9x384xf32> to vector<9x32xf32>
    %85 = vector.extract_strided_slice %39 {offsets = [0, 320], sizes = [9, 32], strides = [1, 1]} : vector<9x384xf32> to vector<9x32xf32>
    %cst_40 = arith.constant dense<0.000000e+00> : vector<9x9xf32>
    %86 = tpu.matmul %83, %84, %cst_40 {dimension_numbers = #tpu.dot_dimension_numbers<[1], [1], [0], [0], [0, 0, 1, 0], [], []>} : vector<9x32xf32>, vector<9x32xf32>, vector<9x9xf32> -> vector<9x9xf32>
    %cst_41 = arith.constant 0.176776692 : f32
    %87 = vector.broadcast %cst_41 : f32 to vector<9x9xf32>
    %88 = arith.mulf %86, %87 : vector<9x9xf32>
    %cst_42 = arith.constant dense<0xFF800000> : vector<9xf32>
    %89 = vector.multi_reduction <maximumf>, %88, %cst_42 [1] : vector<9x9xf32> to vector<9xf32>
    %90 = vector.shape_cast %89 : vector<9xf32> to vector<9x1xf32>
    %91 = vector.broadcast %90 : vector<9x1xf32> to vector<9x9xf32>
    %92 = arith.subf %88, %91 : vector<9x9xf32>
    %93 = math.exp %92 : vector<9x9xf32>
    %cst_43 = arith.constant dense<0.000000e+00> : vector<9xf32>
    %94 = vector.multi_reduction <add>, %93, %cst_43 [1] : vector<9x9xf32> to vector<9xf32>
    %95 = vector.shape_cast %94 : vector<9xf32> to vector<9x1xf32>
    %96 = tpu.reciprocal %95 {approx = true} : vector<9x1xf32> -> vector<9x1xf32>
    %97 = vector.broadcast %96 : vector<9x1xf32> to vector<9x9xf32>
    %98 = arith.mulf %93, %97 : vector<9x9xf32>
    %99 = vector.extract_strided_slice %41 {offsets = [64, 0], sizes = [32, 128], strides = [1, 1]} : vector<128x128xf32> to vector<32x128xf32>
    %cst_44 = arith.constant dense<0.000000e+00> : vector<9x128xf32>
    %100 = tpu.matmul %85, %99, %cst_44 {dimension_numbers = #tpu.dot_dimension_numbers<[1], [0], [0], [1], [0, 0, 1, 1], [], []>} : vector<9x32xf32>, vector<32x128xf32>, vector<9x128xf32> -> vector<9x128xf32>
    %cst_45 = arith.constant dense<0.000000e+00> : vector<9x128xf32>
    %101 = tpu.matmul %98, %100, %cst_45 {dimension_numbers = #tpu.dot_dimension_numbers<[1], [0], [0], [1], [0, 0, 1, 1], [], []>} : vector<9x9xf32>, vector<9x128xf32>, vector<9x128xf32> -> vector<9x128xf32>
    %102 = arith.addf %82, %101 : vector<9x128xf32>
    %103 = vector.extract_strided_slice %39 {offsets = [0, 96], sizes = [9, 32], strides = [1, 1]} : vector<9x384xf32> to vector<9x32xf32>
    %104 = vector.extract_strided_slice %39 {offsets = [0, 224], sizes = [9, 32], strides = [1, 1]} : vector<9x384xf32> to vector<9x32xf32>
    %105 = vector.extract_strided_slice %39 {offsets = [0, 352], sizes = [9, 32], strides = [1, 1]} : vector<9x384xf32> to vector<9x32xf32>
    %cst_46 = arith.constant dense<0.000000e+00> : vector<9x9xf32>
    %106 = tpu.matmul %103, %104, %cst_46 {dimension_numbers = #tpu.dot_dimension_numbers<[1], [1], [0], [0], [0, 0, 1, 0], [], []>} : vector<9x32xf32>, vector<9x32xf32>, vector<9x9xf32> -> vector<9x9xf32>
    %cst_47 = arith.constant 0.176776692 : f32
    %107 = vector.broadcast %cst_47 : f32 to vector<9x9xf32>
    %108 = arith.mulf %106, %107 : vector<9x9xf32>
    %cst_48 = arith.constant dense<0xFF800000> : vector<9xf32>
    %109 = vector.multi_reduction <maximumf>, %108, %cst_48 [1] : vector<9x9xf32> to vector<9xf32>
    %110 = vector.shape_cast %109 : vector<9xf32> to vector<9x1xf32>
    %111 = vector.broadcast %110 : vector<9x1xf32> to vector<9x9xf32>
    %112 = arith.subf %108, %111 : vector<9x9xf32>
    %113 = math.exp %112 : vector<9x9xf32>
    %cst_49 = arith.constant dense<0.000000e+00> : vector<9xf32>
    %114 = vector.multi_reduction <add>, %113, %cst_49 [1] : vector<9x9xf32> to vector<9xf32>
    %115 = vector.shape_cast %114 : vector<9xf32> to vector<9x1xf32>
    %116 = tpu.reciprocal %115 {approx = true} : vector<9x1xf32> -> vector<9x1xf32>
    %117 = vector.broadcast %116 : vector<9x1xf32> to vector<9x9xf32>
    %118 = arith.mulf %113, %117 : vector<9x9xf32>
    %119 = vector.extract_strided_slice %41 {offsets = [96, 0], sizes = [32, 128], strides = [1, 1]} : vector<128x128xf32> to vector<32x128xf32>
    %cst_50 = arith.constant dense<0.000000e+00> : vector<9x128xf32>
    %120 = tpu.matmul %105, %119, %cst_50 {dimension_numbers = #tpu.dot_dimension_numbers<[1], [0], [0], [1], [0, 0, 1, 1], [], []>} : vector<9x32xf32>, vector<32x128xf32>, vector<9x128xf32> -> vector<9x128xf32>
    %cst_51 = arith.constant dense<0.000000e+00> : vector<9x128xf32>
    %121 = tpu.matmul %118, %120, %cst_51 {dimension_numbers = #tpu.dot_dimension_numbers<[1], [0], [0], [1], [0, 0, 1, 1], [], []>} : vector<9x9xf32>, vector<9x128xf32>, vector<9x128xf32> -> vector<9x128xf32>
    %122 = arith.addf %102, %121 : vector<9x128xf32>
    %c0_52 = arith.constant 0 : index
    %c0_53 = arith.constant 0 : index
    %c0_54 = arith.constant 0 : index
    %123 = vector.load %arg9[%c0_52, %c0_53, %c0_54] : memref<2x1x128xf32, #tpu.memory_space<vmem>>, vector<1x1x128xf32>
    %124 = vector.shape_cast %123 : vector<1x1x128xf32> to vector<1x128xf32>
    %125 = vector.broadcast %124 : vector<1x128xf32> to vector<9x128xf32>
    %126 = arith.addf %122, %125 : vector<9x128xf32>
    %127 = arith.addf %126, %10 : vector<9x128xf32>
    %c0_55 = arith.constant 0 : index
    %c0_56 = arith.constant 0 : index
    %c0_57 = arith.constant 0 : index
    %128 = vector.load %arg10[%c0_55, %c0_56, %c0_57] : memref<2x1x128xf32, #tpu.memory_space<vmem>>, vector<1x1x128xf32>
    %129 = vector.shape_cast %128 : vector<1x1x128xf32> to vector<1x128xf32>
    %c0_58 = arith.constant 0 : index
    %c0_59 = arith.constant 0 : index
    %c0_60 = arith.constant 0 : index
    %130 = vector.load %arg11[%c0_58, %c0_59, %c0_60] : memref<2x1x128xf32, #tpu.memory_space<vmem>>, vector<1x1x128xf32>
    %131 = vector.shape_cast %130 : vector<1x1x128xf32> to vector<1x128xf32>
    %cst_61 = arith.constant dense<0.000000e+00> : vector<9xf32>
    %132 = vector.multi_reduction <add>, %127, %cst_61 [1] : vector<9x128xf32> to vector<9xf32>
    %133 = vector.shape_cast %132 : vector<9xf32> to vector<9x1xf32>
    %cst_62 = arith.constant 1.280000e+02 : f32
    %134 = vector.broadcast %cst_62 : f32 to vector<9x1xf32>
    %135 = arith.divf %133, %134 : vector<9x1xf32>
    %136 = vector.broadcast %135 : vector<9x1xf32> to vector<9x128xf32>
    %137 = arith.subf %127, %136 : vector<9x128xf32>
    %138 = arith.mulf %137, %137 : vector<9x128xf32>
    %cst_63 = arith.constant dense<0.000000e+00> : vector<9xf32>
    %139 = vector.multi_reduction <add>, %138, %cst_63 [1] : vector<9x128xf32> to vector<9xf32>
    %140 = vector.shape_cast %139 : vector<9xf32> to vector<9x1xf32>
    %cst_64 = arith.constant 1.280000e+02 : f32
    %141 = vector.broadcast %cst_64 : f32 to vector<9x1xf32>
    %142 = arith.divf %140, %141 : vector<9x1xf32>
    %143 = vector.broadcast %135 : vector<9x1xf32> to vector<9x128xf32>
    %144 = arith.subf %127, %143 : vector<9x128xf32>
    %cst_65 = arith.constant 9.99999974E-6 : f32
    %145 = vector.broadcast %cst_65 : f32 to vector<9x1xf32>
    %146 = arith.addf %142, %145 : vector<9x1xf32>
    %147 = math.rsqrt %146 : vector<9x1xf32>
    %148 = vector.broadcast %147 : vector<9x1xf32> to vector<9x128xf32>
    %149 = arith.mulf %144, %148 : vector<9x128xf32>
    %150 = vector.broadcast %129 : vector<1x128xf32> to vector<9x128xf32>
    %151 = arith.mulf %149, %150 : vector<9x128xf32>
    %152 = vector.broadcast %131 : vector<1x128xf32> to vector<9x128xf32>
    %153 = arith.addf %151, %152 : vector<9x128xf32>
    %c0_66 = arith.constant 0 : index
    %c0_67 = arith.constant 0 : index
    %c0_68 = arith.constant 0 : index
    %154 = vector.load %arg12[%c0_66, %c0_67, %c0_68] : memref<2x128x128xf32, #tpu.memory_space<vmem>>, vector<1x128x128xf32>
    %155 = vector.shape_cast %154 : vector<1x128x128xf32> to vector<128x128xf32>
    %cst_69 = arith.constant dense<0.000000e+00> : vector<9x128xf32>
    %156 = tpu.matmul %153, %155, %cst_69 {dimension_numbers = #tpu.dot_dimension_numbers<[1], [0], [0], [1], [0, 0, 1, 1], [], []>} : vector<9x128xf32>, vector<128x128xf32>, vector<9x128xf32> -> vector<9x128xf32>
    %c0_70 = arith.constant 0 : index
    %c0_71 = arith.constant 0 : index
    %c0_72 = arith.constant 0 : index
    %157 = vector.load %arg13[%c0_70, %c0_71, %c0_72] : memref<2x1x128xf32, #tpu.memory_space<vmem>>, vector<1x1x128xf32>
    %158 = vector.shape_cast %157 : vector<1x1x128xf32> to vector<1x128xf32>
    %159 = vector.broadcast %158 : vector<1x128xf32> to vector<9x128xf32>
    %160 = arith.addf %156, %159 : vector<9x128xf32>
    %cst_73 = arith.constant 5.000000e-01 : f32
    %161 = vector.broadcast %cst_73 : f32 to vector<9x128xf32>
    %162 = arith.mulf %161, %160 : vector<9x128xf32>
    %cst_74 = arith.constant 0.707106769 : f32
    %163 = vector.broadcast %cst_74 : f32 to vector<9x128xf32>
    %164 = arith.mulf %160, %163 : vector<9x128xf32>
    %165 = math.erf %164 : vector<9x128xf32>
    %cst_75 = arith.constant 1.000000e+00 : f32
    %166 = vector.broadcast %cst_75 : f32 to vector<9x128xf32>
    %167 = arith.addf %166, %165 : vector<9x128xf32>
    %168 = arith.mulf %162, %167 : vector<9x128xf32>
    %c0_76 = arith.constant 0 : index
    %c0_77 = arith.constant 0 : index
    %c0_78 = arith.constant 0 : index
    %169 = vector.load %arg14[%c0_76, %c0_77, %c0_78] : memref<2x128x128xf32, #tpu.memory_space<vmem>>, vector<1x128x128xf32>
    %170 = vector.shape_cast %169 : vector<1x128x128xf32> to vector<128x128xf32>
    %cst_79 = arith.constant dense<0.000000e+00> : vector<9x128xf32>
    %171 = tpu.matmul %168, %170, %cst_79 {dimension_numbers = #tpu.dot_dimension_numbers<[1], [0], [0], [1], [0, 0, 1, 1], [], []>} : vector<9x128xf32>, vector<128x128xf32>, vector<9x128xf32> -> vector<9x128xf32>
    %c0_80 = arith.constant 0 : index
    %c0_81 = arith.constant 0 : index
    %c0_82 = arith.constant 0 : index
    %172 = vector.load %arg15[%c0_80, %c0_81, %c0_82] : memref<2x1x128xf32, #tpu.memory_space<vmem>>, vector<1x1x128xf32>
    %173 = vector.shape_cast %172 : vector<1x1x128xf32> to vector<1x128xf32>
    %174 = vector.broadcast %173 : vector<1x128xf32> to vector<9x128xf32>
    %175 = arith.addf %171, %174 : vector<9x128xf32>
    %176 = arith.addf %175, %127 : vector<9x128xf32>
    %c1 = arith.constant 1 : index
    %c0_83 = arith.constant 0 : index
    %c0_84 = arith.constant 0 : index
    %177 = vector.load %arg5[%c1, %c0_83, %c0_84] : memref<2x1x128xf32, #tpu.memory_space<vmem>>, vector<1x1x128xf32>
    %178 = vector.shape_cast %177 : vector<1x1x128xf32> to vector<1x128xf32>
    %c1_85 = arith.constant 1 : index
    %c0_86 = arith.constant 0 : index
    %c0_87 = arith.constant 0 : index
    %179 = vector.load %arg6[%c1_85, %c0_86, %c0_87] : memref<2x1x128xf32, #tpu.memory_space<vmem>>, vector<1x1x128xf32>
    %180 = vector.shape_cast %179 : vector<1x1x128xf32> to vector<1x128xf32>
    %cst_88 = arith.constant dense<0.000000e+00> : vector<9xf32>
    %181 = vector.multi_reduction <add>, %176, %cst_88 [1] : vector<9x128xf32> to vector<9xf32>
    %182 = vector.shape_cast %181 : vector<9xf32> to vector<9x1xf32>
    %cst_89 = arith.constant 1.280000e+02 : f32
    %183 = vector.broadcast %cst_89 : f32 to vector<9x1xf32>
    %184 = arith.divf %182, %183 : vector<9x1xf32>
    %185 = vector.broadcast %184 : vector<9x1xf32> to vector<9x128xf32>
    %186 = arith.subf %176, %185 : vector<9x128xf32>
    %187 = arith.mulf %186, %186 : vector<9x128xf32>
    %cst_90 = arith.constant dense<0.000000e+00> : vector<9xf32>
    %188 = vector.multi_reduction <add>, %187, %cst_90 [1] : vector<9x128xf32> to vector<9xf32>
    %189 = vector.shape_cast %188 : vector<9xf32> to vector<9x1xf32>
    %cst_91 = arith.constant 1.280000e+02 : f32
    %190 = vector.broadcast %cst_91 : f32 to vector<9x1xf32>
    %191 = arith.divf %189, %190 : vector<9x1xf32>
    %192 = vector.broadcast %184 : vector<9x1xf32> to vector<9x128xf32>
    %193 = arith.subf %176, %192 : vector<9x128xf32>
    %cst_92 = arith.constant 9.99999974E-6 : f32
    %194 = vector.broadcast %cst_92 : f32 to vector<9x1xf32>
    %195 = arith.addf %191, %194 : vector<9x1xf32>
    %196 = math.rsqrt %195 : vector<9x1xf32>
    %197 = vector.broadcast %196 : vector<9x1xf32> to vector<9x128xf32>
    %198 = arith.mulf %193, %197 : vector<9x128xf32>
    %199 = vector.broadcast %178 : vector<1x128xf32> to vector<9x128xf32>
    %200 = arith.mulf %198, %199 : vector<9x128xf32>
    %201 = vector.broadcast %180 : vector<1x128xf32> to vector<9x128xf32>
    %202 = arith.addf %200, %201 : vector<9x128xf32>
    %c1_93 = arith.constant 1 : index
    %c0_94 = arith.constant 0 : index
    %c0_95 = arith.constant 0 : index
    %203 = vector.load %arg7[%c1_93, %c0_94, %c0_95] : memref<2x128x384xf32, #tpu.memory_space<vmem>>, vector<1x128x384xf32>
    %204 = vector.shape_cast %203 : vector<1x128x384xf32> to vector<128x384xf32>
    %cst_96 = arith.constant dense<0.000000e+00> : vector<9x384xf32>
    %205 = tpu.matmul %202, %204, %cst_96 {dimension_numbers = #tpu.dot_dimension_numbers<[1], [0], [0], [1], [0, 0, 1, 1], [], []>} : vector<9x128xf32>, vector<128x384xf32>, vector<9x384xf32> -> vector<9x384xf32>
    %c1_97 = arith.constant 1 : index
    %c0_98 = arith.constant 0 : index
    %c0_99 = arith.constant 0 : index
    %206 = vector.load %arg8[%c1_97, %c0_98, %c0_99] : memref<2x128x128xf32, #tpu.memory_space<vmem>>, vector<1x128x128xf32>
    %207 = vector.shape_cast %206 : vector<1x128x128xf32> to vector<128x128xf32>
    %cst_100 = arith.constant 0.000000e+00 : f32
    %208 = vector.broadcast %cst_100 : f32 to vector<9x128xf32>
    %209 = vector.extract_strided_slice %205 {offsets = [0, 0], sizes = [9, 32], strides = [1, 1]} : vector<9x384xf32> to vector<9x32xf32>
    %210 = vector.extract_strided_slice %205 {offsets = [0, 128], sizes = [9, 32], strides = [1, 1]} : vector<9x384xf32> to vector<9x32xf32>
    %211 = vector.extract_strided_slice %205 {offsets = [0, 256], sizes = [9, 32], strides = [1, 1]} : vector<9x384xf32> to vector<9x32xf32>
    %cst_101 = arith.constant dense<0.000000e+00> : vector<9x9xf32>
    %212 = tpu.matmul %209, %210, %cst_101 {dimension_numbers = #tpu.dot_dimension_numbers<[1], [1], [0], [0], [0, 0, 1, 0], [], []>} : vector<9x32xf32>, vector<9x32xf32>, vector<9x9xf32> -> vector<9x9xf32>
    %cst_102 = arith.constant 0.176776692 : f32
    %213 = vector.broadcast %cst_102 : f32 to vector<9x9xf32>
    %214 = arith.mulf %212, %213 : vector<9x9xf32>
    %cst_103 = arith.constant dense<0xFF800000> : vector<9xf32>
    %215 = vector.multi_reduction <maximumf>, %214, %cst_103 [1] : vector<9x9xf32> to vector<9xf32>
    %216 = vector.shape_cast %215 : vector<9xf32> to vector<9x1xf32>
    %217 = vector.broadcast %216 : vector<9x1xf32> to vector<9x9xf32>
    %218 = arith.subf %214, %217 : vector<9x9xf32>
    %219 = math.exp %218 : vector<9x9xf32>
    %cst_104 = arith.constant dense<0.000000e+00> : vector<9xf32>
    %220 = vector.multi_reduction <add>, %219, %cst_104 [1] : vector<9x9xf32> to vector<9xf32>
    %221 = vector.shape_cast %220 : vector<9xf32> to vector<9x1xf32>
    %222 = tpu.reciprocal %221 {approx = true} : vector<9x1xf32> -> vector<9x1xf32>
    %223 = vector.broadcast %222 : vector<9x1xf32> to vector<9x9xf32>
    %224 = arith.mulf %219, %223 : vector<9x9xf32>
    %225 = vector.extract_strided_slice %207 {offsets = [0, 0], sizes = [32, 128], strides = [1, 1]} : vector<128x128xf32> to vector<32x128xf32>
    %cst_105 = arith.constant dense<0.000000e+00> : vector<9x128xf32>
    %226 = tpu.matmul %211, %225, %cst_105 {dimension_numbers = #tpu.dot_dimension_numbers<[1], [0], [0], [1], [0, 0, 1, 1], [], []>} : vector<9x32xf32>, vector<32x128xf32>, vector<9x128xf32> -> vector<9x128xf32>
    %cst_106 = arith.constant dense<0.000000e+00> : vector<9x128xf32>
    %227 = tpu.matmul %224, %226, %cst_106 {dimension_numbers = #tpu.dot_dimension_numbers<[1], [0], [0], [1], [0, 0, 1, 1], [], []>} : vector<9x9xf32>, vector<9x128xf32>, vector<9x128xf32> -> vector<9x128xf32>
    %228 = arith.addf %208, %227 : vector<9x128xf32>
    %229 = vector.extract_strided_slice %205 {offsets = [0, 32], sizes = [9, 32], strides = [1, 1]} : vector<9x384xf32> to vector<9x32xf32>
    %230 = vector.extract_strided_slice %205 {offsets = [0, 160], sizes = [9, 32], strides = [1, 1]} : vector<9x384xf32> to vector<9x32xf32>
    %231 = vector.extract_strided_slice %205 {offsets = [0, 288], sizes = [9, 32], strides = [1, 1]} : vector<9x384xf32> to vector<9x32xf32>
    %cst_107 = arith.constant dense<0.000000e+00> : vector<9x9xf32>
    %232 = tpu.matmul %229, %230, %cst_107 {dimension_numbers = #tpu.dot_dimension_numbers<[1], [1], [0], [0], [0, 0, 1, 0], [], []>} : vector<9x32xf32>, vector<9x32xf32>, vector<9x9xf32> -> vector<9x9xf32>
    %cst_108 = arith.constant 0.176776692 : f32
    %233 = vector.broadcast %cst_108 : f32 to vector<9x9xf32>
    %234 = arith.mulf %232, %233 : vector<9x9xf32>
    %cst_109 = arith.constant dense<0xFF800000> : vector<9xf32>
    %235 = vector.multi_reduction <maximumf>, %234, %cst_109 [1] : vector<9x9xf32> to vector<9xf32>
    %236 = vector.shape_cast %235 : vector<9xf32> to vector<9x1xf32>
    %237 = vector.broadcast %236 : vector<9x1xf32> to vector<9x9xf32>
    %238 = arith.subf %234, %237 : vector<9x9xf32>
    %239 = math.exp %238 : vector<9x9xf32>
    %cst_110 = arith.constant dense<0.000000e+00> : vector<9xf32>
    %240 = vector.multi_reduction <add>, %239, %cst_110 [1] : vector<9x9xf32> to vector<9xf32>
    %241 = vector.shape_cast %240 : vector<9xf32> to vector<9x1xf32>
    %242 = tpu.reciprocal %241 {approx = true} : vector<9x1xf32> -> vector<9x1xf32>
    %243 = vector.broadcast %242 : vector<9x1xf32> to vector<9x9xf32>
    %244 = arith.mulf %239, %243 : vector<9x9xf32>
    %245 = vector.extract_strided_slice %207 {offsets = [32, 0], sizes = [32, 128], strides = [1, 1]} : vector<128x128xf32> to vector<32x128xf32>
    %cst_111 = arith.constant dense<0.000000e+00> : vector<9x128xf32>
    %246 = tpu.matmul %231, %245, %cst_111 {dimension_numbers = #tpu.dot_dimension_numbers<[1], [0], [0], [1], [0, 0, 1, 1], [], []>} : vector<9x32xf32>, vector<32x128xf32>, vector<9x128xf32> -> vector<9x128xf32>
    %cst_112 = arith.constant dense<0.000000e+00> : vector<9x128xf32>
    %247 = tpu.matmul %244, %246, %cst_112 {dimension_numbers = #tpu.dot_dimension_numbers<[1], [0], [0], [1], [0, 0, 1, 1], [], []>} : vector<9x9xf32>, vector<9x128xf32>, vector<9x128xf32> -> vector<9x128xf32>
    %248 = arith.addf %228, %247 : vector<9x128xf32>
    %249 = vector.extract_strided_slice %205 {offsets = [0, 64], sizes = [9, 32], strides = [1, 1]} : vector<9x384xf32> to vector<9x32xf32>
    %250 = vector.extract_strided_slice %205 {offsets = [0, 192], sizes = [9, 32], strides = [1, 1]} : vector<9x384xf32> to vector<9x32xf32>
    %251 = vector.extract_strided_slice %205 {offsets = [0, 320], sizes = [9, 32], strides = [1, 1]} : vector<9x384xf32> to vector<9x32xf32>
    %cst_113 = arith.constant dense<0.000000e+00> : vector<9x9xf32>
    %252 = tpu.matmul %249, %250, %cst_113 {dimension_numbers = #tpu.dot_dimension_numbers<[1], [1], [0], [0], [0, 0, 1, 0], [], []>} : vector<9x32xf32>, vector<9x32xf32>, vector<9x9xf32> -> vector<9x9xf32>
    %cst_114 = arith.constant 0.176776692 : f32
    %253 = vector.broadcast %cst_114 : f32 to vector<9x9xf32>
    %254 = arith.mulf %252, %253 : vector<9x9xf32>
    %cst_115 = arith.constant dense<0xFF800000> : vector<9xf32>
    %255 = vector.multi_reduction <maximumf>, %254, %cst_115 [1] : vector<9x9xf32> to vector<9xf32>
    %256 = vector.shape_cast %255 : vector<9xf32> to vector<9x1xf32>
    %257 = vector.broadcast %256 : vector<9x1xf32> to vector<9x9xf32>
    %258 = arith.subf %254, %257 : vector<9x9xf32>
    %259 = math.exp %258 : vector<9x9xf32>
    %cst_116 = arith.constant dense<0.000000e+00> : vector<9xf32>
    %260 = vector.multi_reduction <add>, %259, %cst_116 [1] : vector<9x9xf32> to vector<9xf32>
    %261 = vector.shape_cast %260 : vector<9xf32> to vector<9x1xf32>
    %262 = tpu.reciprocal %261 {approx = true} : vector<9x1xf32> -> vector<9x1xf32>
    %263 = vector.broadcast %262 : vector<9x1xf32> to vector<9x9xf32>
    %264 = arith.mulf %259, %263 : vector<9x9xf32>
    %265 = vector.extract_strided_slice %207 {offsets = [64, 0], sizes = [32, 128], strides = [1, 1]} : vector<128x128xf32> to vector<32x128xf32>
    %cst_117 = arith.constant dense<0.000000e+00> : vector<9x128xf32>
    %266 = tpu.matmul %251, %265, %cst_117 {dimension_numbers = #tpu.dot_dimension_numbers<[1], [0], [0], [1], [0, 0, 1, 1], [], []>} : vector<9x32xf32>, vector<32x128xf32>, vector<9x128xf32> -> vector<9x128xf32>
    %cst_118 = arith.constant dense<0.000000e+00> : vector<9x128xf32>
    %267 = tpu.matmul %264, %266, %cst_118 {dimension_numbers = #tpu.dot_dimension_numbers<[1], [0], [0], [1], [0, 0, 1, 1], [], []>} : vector<9x9xf32>, vector<9x128xf32>, vector<9x128xf32> -> vector<9x128xf32>
    %268 = arith.addf %248, %267 : vector<9x128xf32>
    %269 = vector.extract_strided_slice %205 {offsets = [0, 96], sizes = [9, 32], strides = [1, 1]} : vector<9x384xf32> to vector<9x32xf32>
    %270 = vector.extract_strided_slice %205 {offsets = [0, 224], sizes = [9, 32], strides = [1, 1]} : vector<9x384xf32> to vector<9x32xf32>
    %271 = vector.extract_strided_slice %205 {offsets = [0, 352], sizes = [9, 32], strides = [1, 1]} : vector<9x384xf32> to vector<9x32xf32>
    %cst_119 = arith.constant dense<0.000000e+00> : vector<9x9xf32>
    %272 = tpu.matmul %269, %270, %cst_119 {dimension_numbers = #tpu.dot_dimension_numbers<[1], [1], [0], [0], [0, 0, 1, 0], [], []>} : vector<9x32xf32>, vector<9x32xf32>, vector<9x9xf32> -> vector<9x9xf32>
    %cst_120 = arith.constant 0.176776692 : f32
    %273 = vector.broadcast %cst_120 : f32 to vector<9x9xf32>
    %274 = arith.mulf %272, %273 : vector<9x9xf32>
    %cst_121 = arith.constant dense<0xFF800000> : vector<9xf32>
    %275 = vector.multi_reduction <maximumf>, %274, %cst_121 [1] : vector<9x9xf32> to vector<9xf32>
    %276 = vector.shape_cast %275 : vector<9xf32> to vector<9x1xf32>
    %277 = vector.broadcast %276 : vector<9x1xf32> to vector<9x9xf32>
    %278 = arith.subf %274, %277 : vector<9x9xf32>
    %279 = math.exp %278 : vector<9x9xf32>
    %cst_122 = arith.constant dense<0.000000e+00> : vector<9xf32>
    %280 = vector.multi_reduction <add>, %279, %cst_122 [1] : vector<9x9xf32> to vector<9xf32>
    %281 = vector.shape_cast %280 : vector<9xf32> to vector<9x1xf32>
    %282 = tpu.reciprocal %281 {approx = true} : vector<9x1xf32> -> vector<9x1xf32>
    %283 = vector.broadcast %282 : vector<9x1xf32> to vector<9x9xf32>
    %284 = arith.mulf %279, %283 : vector<9x9xf32>
    %285 = vector.extract_strided_slice %207 {offsets = [96, 0], sizes = [32, 128], strides = [1, 1]} : vector<128x128xf32> to vector<32x128xf32>
    %cst_123 = arith.constant dense<0.000000e+00> : vector<9x128xf32>
    %286 = tpu.matmul %271, %285, %cst_123 {dimension_numbers = #tpu.dot_dimension_numbers<[1], [0], [0], [1], [0, 0, 1, 1], [], []>} : vector<9x32xf32>, vector<32x128xf32>, vector<9x128xf32> -> vector<9x128xf32>
    %cst_124 = arith.constant dense<0.000000e+00> : vector<9x128xf32>
    %287 = tpu.matmul %284, %286, %cst_124 {dimension_numbers = #tpu.dot_dimension_numbers<[1], [0], [0], [1], [0, 0, 1, 1], [], []>} : vector<9x9xf32>, vector<9x128xf32>, vector<9x128xf32> -> vector<9x128xf32>
    %288 = arith.addf %268, %287 : vector<9x128xf32>
    %c1_125 = arith.constant 1 : index
    %c0_126 = arith.constant 0 : index
    %c0_127 = arith.constant 0 : index
    %289 = vector.load %arg9[%c1_125, %c0_126, %c0_127] : memref<2x1x128xf32, #tpu.memory_space<vmem>>, vector<1x1x128xf32>
    %290 = vector.shape_cast %289 : vector<1x1x128xf32> to vector<1x128xf32>
    %291 = vector.broadcast %290 : vector<1x128xf32> to vector<9x128xf32>
    %292 = arith.addf %288, %291 : vector<9x128xf32>
    %293 = arith.addf %292, %176 : vector<9x128xf32>
    %c1_128 = arith.constant 1 : index
    %c0_129 = arith.constant 0 : index
    %c0_130 = arith.constant 0 : index
    %294 = vector.load %arg10[%c1_128, %c0_129, %c0_130] : memref<2x1x128xf32, #tpu.memory_space<vmem>>, vector<1x1x128xf32>
    %295 = vector.shape_cast %294 : vector<1x1x128xf32> to vector<1x128xf32>
    %c1_131 = arith.constant 1 : index
    %c0_132 = arith.constant 0 : index
    %c0_133 = arith.constant 0 : index
    %296 = vector.load %arg11[%c1_131, %c0_132, %c0_133] : memref<2x1x128xf32, #tpu.memory_space<vmem>>, vector<1x1x128xf32>
    %297 = vector.shape_cast %296 : vector<1x1x128xf32> to vector<1x128xf32>
    %cst_134 = arith.constant dense<0.000000e+00> : vector<9xf32>
    %298 = vector.multi_reduction <add>, %293, %cst_134 [1] : vector<9x128xf32> to vector<9xf32>
    %299 = vector.shape_cast %298 : vector<9xf32> to vector<9x1xf32>
    %cst_135 = arith.constant 1.280000e+02 : f32
    %300 = vector.broadcast %cst_135 : f32 to vector<9x1xf32>
    %301 = arith.divf %299, %300 : vector<9x1xf32>
    %302 = vector.broadcast %301 : vector<9x1xf32> to vector<9x128xf32>
    %303 = arith.subf %293, %302 : vector<9x128xf32>
    %304 = arith.mulf %303, %303 : vector<9x128xf32>
    %cst_136 = arith.constant dense<0.000000e+00> : vector<9xf32>
    %305 = vector.multi_reduction <add>, %304, %cst_136 [1] : vector<9x128xf32> to vector<9xf32>
    %306 = vector.shape_cast %305 : vector<9xf32> to vector<9x1xf32>
    %cst_137 = arith.constant 1.280000e+02 : f32
    %307 = vector.broadcast %cst_137 : f32 to vector<9x1xf32>
    %308 = arith.divf %306, %307 : vector<9x1xf32>
    %309 = vector.broadcast %301 : vector<9x1xf32> to vector<9x128xf32>
    %310 = arith.subf %293, %309 : vector<9x128xf32>
    %cst_138 = arith.constant 9.99999974E-6 : f32
    %311 = vector.broadcast %cst_138 : f32 to vector<9x1xf32>
    %312 = arith.addf %308, %311 : vector<9x1xf32>
    %313 = math.rsqrt %312 : vector<9x1xf32>
    %314 = vector.broadcast %313 : vector<9x1xf32> to vector<9x128xf32>
    %315 = arith.mulf %310, %314 : vector<9x128xf32>
    %316 = vector.broadcast %295 : vector<1x128xf32> to vector<9x128xf32>
    %317 = arith.mulf %315, %316 : vector<9x128xf32>
    %318 = vector.broadcast %297 : vector<1x128xf32> to vector<9x128xf32>
    %319 = arith.addf %317, %318 : vector<9x128xf32>
    %c1_139 = arith.constant 1 : index
    %c0_140 = arith.constant 0 : index
    %c0_141 = arith.constant 0 : index
    %320 = vector.load %arg12[%c1_139, %c0_140, %c0_141] : memref<2x128x128xf32, #tpu.memory_space<vmem>>, vector<1x128x128xf32>
    %321 = vector.shape_cast %320 : vector<1x128x128xf32> to vector<128x128xf32>
    %cst_142 = arith.constant dense<0.000000e+00> : vector<9x128xf32>
    %322 = tpu.matmul %319, %321, %cst_142 {dimension_numbers = #tpu.dot_dimension_numbers<[1], [0], [0], [1], [0, 0, 1, 1], [], []>} : vector<9x128xf32>, vector<128x128xf32>, vector<9x128xf32> -> vector<9x128xf32>
    %c1_143 = arith.constant 1 : index
    %c0_144 = arith.constant 0 : index
    %c0_145 = arith.constant 0 : index
    %323 = vector.load %arg13[%c1_143, %c0_144, %c0_145] : memref<2x1x128xf32, #tpu.memory_space<vmem>>, vector<1x1x128xf32>
    %324 = vector.shape_cast %323 : vector<1x1x128xf32> to vector<1x128xf32>
    %325 = vector.broadcast %324 : vector<1x128xf32> to vector<9x128xf32>
    %326 = arith.addf %322, %325 : vector<9x128xf32>
    %cst_146 = arith.constant 5.000000e-01 : f32
    %327 = vector.broadcast %cst_146 : f32 to vector<9x128xf32>
    %328 = arith.mulf %327, %326 : vector<9x128xf32>
    %cst_147 = arith.constant 0.707106769 : f32
    %329 = vector.broadcast %cst_147 : f32 to vector<9x128xf32>
    %330 = arith.mulf %326, %329 : vector<9x128xf32>
    %331 = math.erf %330 : vector<9x128xf32>
    %cst_148 = arith.constant 1.000000e+00 : f32
    %332 = vector.broadcast %cst_148 : f32 to vector<9x128xf32>
    %333 = arith.addf %332, %331 : vector<9x128xf32>
    %334 = arith.mulf %328, %333 : vector<9x128xf32>
    %c1_149 = arith.constant 1 : index
    %c0_150 = arith.constant 0 : index
    %c0_151 = arith.constant 0 : index
    %335 = vector.load %arg14[%c1_149, %c0_150, %c0_151] : memref<2x128x128xf32, #tpu.memory_space<vmem>>, vector<1x128x128xf32>
    %336 = vector.shape_cast %335 : vector<1x128x128xf32> to vector<128x128xf32>
    %cst_152 = arith.constant dense<0.000000e+00> : vector<9x128xf32>
    %337 = tpu.matmul %334, %336, %cst_152 {dimension_numbers = #tpu.dot_dimension_numbers<[1], [0], [0], [1], [0, 0, 1, 1], [], []>} : vector<9x128xf32>, vector<128x128xf32>, vector<9x128xf32> -> vector<9x128xf32>
    %c1_153 = arith.constant 1 : index
    %c0_154 = arith.constant 0 : index
    %c0_155 = arith.constant 0 : index
    %338 = vector.load %arg15[%c1_153, %c0_154, %c0_155] : memref<2x1x128xf32, #tpu.memory_space<vmem>>, vector<1x1x128xf32>
    %339 = vector.shape_cast %338 : vector<1x1x128xf32> to vector<1x128xf32>
    %340 = vector.broadcast %339 : vector<1x128xf32> to vector<9x128xf32>
    %341 = arith.addf %337, %340 : vector<9x128xf32>
    %342 = arith.addf %341, %293 : vector<9x128xf32>
    %343 = vector.extract_strided_slice %342 {offsets = [0, 0], sizes = [1, 128], strides = [1, 1]} : vector<9x128xf32> to vector<1x128xf32>
    %c0_156 = arith.constant 0 : index
    %c0_157 = arith.constant 0 : index
    %344 = vector.load %arg16[%c0_156, %c0_157] : memref<1x128xf32, #tpu.memory_space<vmem>>, vector<1x128xf32>
    %c0_158 = arith.constant 0 : index
    %c0_159 = arith.constant 0 : index
    %345 = vector.load %arg17[%c0_158, %c0_159] : memref<1x128xf32, #tpu.memory_space<vmem>>, vector<1x128xf32>
    %cst_160 = arith.constant dense<0.000000e+00> : vector<1xf32>
    %346 = vector.multi_reduction <add>, %343, %cst_160 [1] : vector<1x128xf32> to vector<1xf32>
    %347 = vector.shape_cast %346 : vector<1xf32> to vector<1x1xf32>
    %cst_161 = arith.constant 1.280000e+02 : f32
    %348 = vector.broadcast %cst_161 : f32 to vector<1x1xf32>
    %349 = arith.divf %347, %348 : vector<1x1xf32>
    %350 = vector.broadcast %349 : vector<1x1xf32> to vector<1x128xf32>
    %351 = arith.subf %343, %350 : vector<1x128xf32>
    %352 = arith.mulf %351, %351 : vector<1x128xf32>
    %cst_162 = arith.constant dense<0.000000e+00> : vector<1xf32>
    %353 = vector.multi_reduction <add>, %352, %cst_162 [1] : vector<1x128xf32> to vector<1xf32>
    %354 = vector.shape_cast %353 : vector<1xf32> to vector<1x1xf32>
    %cst_163 = arith.constant 1.280000e+02 : f32
    %355 = vector.broadcast %cst_163 : f32 to vector<1x1xf32>
    %356 = arith.divf %354, %355 : vector<1x1xf32>
    %357 = vector.broadcast %349 : vector<1x1xf32> to vector<1x128xf32>
    %358 = arith.subf %343, %357 : vector<1x128xf32>
    %cst_164 = arith.constant 9.99999974E-6 : f32
    %359 = vector.broadcast %cst_164 : f32 to vector<1x1xf32>
    %360 = arith.addf %356, %359 : vector<1x1xf32>
    %361 = math.rsqrt %360 : vector<1x1xf32>
    %362 = vector.broadcast %361 : vector<1x1xf32> to vector<1x128xf32>
    %363 = arith.mulf %358, %362 : vector<1x128xf32>
    %364 = arith.mulf %363, %344 : vector<1x128xf32>
    %365 = arith.addf %364, %345 : vector<1x128xf32>
    %c0_165 = arith.constant 0 : index
    %c0_166 = arith.constant 0 : index
    %c0_167 = arith.constant 0 : index
    %366 = vector.load %arg18[%c0_165, %c0_166, %c0_167] : memref<1x1x128xf32, #tpu.memory_space<vmem>>, vector<1x1x128xf32>
    %367 = vector.shape_cast %366 : vector<1x1x128xf32> to vector<1x128xf32>
    %368 = vector.shape_cast %365 : vector<1x128xf32> to vector<1x1x128xf32>
    tpu.vector_store %arg18[%c0_165, %c0_166, %c0_167], %368 {strides = array<i32>} : memref<1x1x128xf32, #tpu.memory_space<vmem>>, vector<1x1x128xf32>,
    return
  }
  func.func @transform_0(%arg0: i32) -> (i32, i32, i32) {
    %c0_i32 = arith.constant 0 : i32
    %c0_i32_0 = arith.constant 0 : i32
    %c0_i32_1 = arith.constant 0 : i32
    return %arg0, %c0_i32, %c0_i32_0 : i32, i32, i32
  }
  func.func @transform_1(%arg0: i32) -> (i32, i32) {
    %c0_i32 = arith.constant 0 : i32
    %c0_i32_0 = arith.constant 0 : i32
    %c0_i32_1 = arith.constant 0 : i32
    return %c0_i32, %c0_i32_0 : i32, i32
  }
  func.func @transform_2(%arg0: i32) -> (i32, i32) {
    %c0_i32 = arith.constant 0 : i32
    %c0_i32_0 = arith.constant 0 : i32
    %c0_i32_1 = arith.constant 0 : i32
    return %c0_i32, %c0_i32_0 : i32, i32
  }
  func.func @transform_3(%arg0: i32) -> (i32, i32) {
    %c0_i32 = arith.constant 0 : i32
    %c0_i32_0 = arith.constant 0 : i32
    %c0_i32_1 = arith.constant 0 : i32
    return %c0_i32, %c0_i32_0 : i32, i32
  }
  func.func @transform_4(%arg0: i32) -> (i32, i32, i32) {
    %c0_i32 = arith.constant 0 : i32
    %c0_i32_0 = arith.constant 0 : i32
    %c0_i32_1 = arith.constant 0 : i32
    %c0_i32_2 = arith.constant 0 : i32
    return %c0_i32, %c0_i32_0, %c0_i32_1 : i32, i32, i32
  }
  func.func @transform_5(%arg0: i32) -> (i32, i32, i32) {
    %c0_i32 = arith.constant 0 : i32
    %c0_i32_0 = arith.constant 0 : i32
    %c0_i32_1 = arith.constant 0 : i32
    %c0_i32_2 = arith.constant 0 : i32
    return %c0_i32, %c0_i32_0, %c0_i32_1 : i32, i32, i32
  }
  func.func @transform_6(%arg0: i32) -> (i32, i32, i32) {
    %c0_i32 = arith.constant 0 : i32
    %c0_i32_0 = arith.constant 0 : i32
    %c0_i32_1 = arith.constant 0 : i32
    %c0_i32_2 = arith.constant 0 : i32
    return %c0_i32, %c0_i32_0, %c0_i32_1 : i32, i32, i32
  }
  func.func @transform_7(%arg0: i32) -> (i32, i32, i32) {
    %c0_i32 = arith.constant 0 : i32
    %c0_i32_0 = arith.constant 0 : i32
    %c0_i32_1 = arith.constant 0 : i32
    %c0_i32_2 = arith.constant 0 : i32
    return %c0_i32, %c0_i32_0, %c0_i32_1 : i32, i32, i32
  }
  func.func @transform_8(%arg0: i32) -> (i32, i32, i32) {
    %c0_i32 = arith.constant 0 : i32
    %c0_i32_0 = arith.constant 0 : i32
    %c0_i32_1 = arith.constant 0 : i32
    %c0_i32_2 = arith.constant 0 : i32
    return %c0_i32, %c0_i32_0, %c0_i32_1 : i32, i32, i32
  }
  func.func @transform_9(%arg0: i32) -> (i32, i32, i32) {
    %c0_i32 = arith.constant 0 : i32
    %c0_i32_0 = arith.constant 0 : i32
    %c0_i32_1 = arith.constant 0 : i32
    %c0_i32_2 = arith.constant 0 : i32
    return %c0_i32, %c0_i32_0, %c0_i32_1 : i32, i32, i32
  }
  func.func @transform_10(%arg0: i32) -> (i32, i32, i32) {
    %c0_i32 = arith.constant 0 : i32
    %c0_i32_0 = arith.constant 0 : i32
    %c0_i32_1 = arith.constant 0 : i32
    %c0_i32_2 = arith.constant 0 : i32
    return %c0_i32, %c0_i32_0, %c0_i32_1 : i32, i32, i32
  }
  func.func @transform_11(%arg0: i32) -> (i32, i32, i32) {
    %c0_i32 = arith.constant 0 : i32
    %c0_i32_0 = arith.constant 0 : i32
    %c0_i32_1 = arith.constant 0 : i32
    %c0_i32_2 = arith.constant 0 : i32
    return %c0_i32, %c0_i32_0, %c0_i32_1 : i32, i32, i32
  }
  func.func @transform_12(%arg0: i32) -> (i32, i32, i32) {
    %c0_i32 = arith.constant 0 : i32
    %c0_i32_0 = arith.constant 0 : i32
    %c0_i32_1 = arith.constant 0 : i32
    %c0_i32_2 = arith.constant 0 : i32
    return %c0_i32, %c0_i32_0, %c0_i32_1 : i32, i32, i32
  }
  func.func @transform_13(%arg0: i32) -> (i32, i32, i32) {
    %c0_i32 = arith.constant 0 : i32
    %c0_i32_0 = arith.constant 0 : i32
    %c0_i32_1 = arith.constant 0 : i32
    %c0_i32_2 = arith.constant 0 : i32
    return %c0_i32, %c0_i32_0, %c0_i32_1 : i32, i32, i32
  }
  func.func @transform_14(%arg0: i32) -> (i32, i32, i32) {
    %c0_i32 = arith.constant 0 : i32
    %c0_i32_0 = arith.constant 0 : i32
    %c0_i32_1 = arith.constant 0 : i32
    %c0_i32_2 = arith.constant 0 : i32
    return %c0_i32, %c0_i32_0, %c0_i32_1 : i32, i32, i32
  }
  func.func @transform_15(%arg0: i32) -> (i32, i32) {
    %c0_i32 = arith.constant 0 : i32
    %c0_i32_0 = arith.constant 0 : i32
    %c0_i32_1 = arith.constant 0 : i32
    return %c0_i32, %c0_i32_0 : i32, i32
  }
  func.func @transform_16(%arg0: i32) -> (i32, i32) {
    %c0_i32 = arith.constant 0 : i32
    %c0_i32_0 = arith.constant 0 : i32
    %c0_i32_1 = arith.constant 0 : i32
    return %c0_i32, %c0_i32_0 : i32, i32
  }
  func.func @transform_17(%arg0: i32) -> (i32, i32, i32) {
    %c0_i32 = arith.constant 0 : i32
    %c0_i32_0 = arith.constant 0 : i32
    %c0_i32_1 = arith.constant 0 : i32
    return %arg0, %c0_i32, %c0_i32_0 : i32, i32, i32
  }
}

</mosaic_0001>

<llo_original>
// kernel: tpu_custom_call.1
$region0: #{tpu_custom_call.1}
  #allocation0 [shape = 'u32[]', space=smem, size = 0x4, offset = 0x4, fixed_abs, tag = 'smem constant byte address 0x4 - core index']
  #allocation1 [shape = 'u32[72,128]{1,0:T(1,128)}', space=vmem, size = 0x9000, scoped, tag = 'internal scratch']
  %s0 = inlined_call_operand.hbm [shape: f32[2,8,128], index: 0, kind: input, shape index: {}]
  %s1 = inlined_call_operand.hbm [shape: f32[128,128], index: 1, kind: input, shape index: {}]
  %s2 = inlined_call_operand.hbm [shape: f32[1,128], index: 2, kind: input, shape index: {}]
  %s3 = inlined_call_operand.hbm [shape: f32[1,128], index: 3, kind: input, shape index: {}]
  %s4 = inlined_call_operand.vmem [shape: f32[2,1,128], index: 4, kind: input, shape index: {}]
  %s5 = inlined_call_operand.vmem [shape: f32[2,1,128], index: 5, kind: input, shape index: {}]
  %s6 = inlined_call_operand.hbm [shape: f32[2,128,384], index: 6, kind: input, shape index: {}]
  %s7 = inlined_call_operand.hbm [shape: f32[2,128,128], index: 7, kind: input, shape index: {}]
  %s8 = inlined_call_operand.vmem [shape: f32[2,1,128], index: 8, kind: input, shape index: {}]
  %s9 = inlined_call_operand.vmem [shape: f32[2,1,128], index: 9, kind: input, shape index: {}]
  %s10 = inlined_call_operand.hbm [shape: f32[2,1,128], index: 10, kind: input, shape index: {}]
  %s11 = inlined_call_operand.hbm [shape: f32[2,128,128], index: 11, kind: input, shape index: {}]
  %s12 = inlined_call_operand.vmem [shape: f32[2,1,128], index: 12, kind: input, shape index: {}]
  %s13 = inlined_call_operand.hbm [shape: f32[2,128,128], index: 13, kind: input, shape index: {}]
  %s14 = inlined_call_operand.vmem [shape: f32[2,1,128], index: 14, kind: input, shape index: {}]
  %s15 = inlined_call_operand.vmem [shape: f32[1,128], index: 15, kind: input, shape index: {}]
  %s16 = inlined_call_operand.vmem [shape: f32[1,128], index: 16, kind: input, shape index: {}]
  %s17 = inlined_call_operand.hbm [shape: f32[2,1,128], index: 17, kind: output, shape index: {}]
  %s18 = sld [smem:[#allocation0]]
  $region137: #{tpu_custom_call.1} parent=0
    _
  %s20 = ssub.s32 1, %s18
  %s21 = scalar_select 0, %s20, %s18
  $region1: #{tpu_custom_call.1} parent=0
    #allocation2 [shape = 'u8[8192]{0}', space=vmem, size = 0x2000, scoped, tag = 'input window, operand 0']
    #allocation3 [shape = 's32[2]{0}', space=sflag, size = 0x8, scoped, tag = 'scoped memory for tpu_custom_call.1']
    #allocation4 [shape = 's32[2]{0}', space=sflag, size = 0x8, scoped, tag = 'scoped memory for tpu_custom_call.1']
    #allocation5 [shape = 'u8[65536]{0}', space=vmem, size = 0x10000, scoped, tag = 'input window, operand 1, single buffered']
    #allocation6 [shape = 's32[1]{0}', space=sflag, size = 0x4, scoped, tag = 'scoped memory for tpu_custom_call.1']
    #allocation7 [shape = 'u8[512]{0}', space=vmem, size = 0x400, scoped, tag = 'input window, operand 2, single buffered']
    #allocation8 [shape = 'u8[512]{0}', space=vmem, size = 0x400, scoped, tag = 'input window, operand 3, single buffered']
    #allocation9 [shape = 's32[1]{0}', space=sflag, size = 0x4, scoped, tag = 'scoped memory for tpu_custom_call.1']
    #allocation10 [shape = 'u8[393216]{0}', space=vmem, size = 0x60000, scoped, tag = 'input window, operand 6, single buffered']
    #allocation11 [shape = 'u8[131072]{0}', space=vmem, size = 0x20000, scoped, tag = 'input window, operand 7, single buffered']
    #allocation12 [shape = 's32[1]{0}', space=sflag, size = 0x4, scoped, tag = 'scoped memory for tpu_custom_call.1']
    #allocation13 [shape = 'u8[1024]{0}', space=vmem, size = 0x400, scoped, tag = 'input window, operand 10, single buffered']
    #allocation14 [shape = 'u8[131072]{0}', space=vmem, size = 0x20000, scoped, tag = 'input window, operand 11, single buffered']
    #allocation15 [shape = 's32[1]{0}', space=sflag, size = 0x4, scoped, tag = 'scoped memory for tpu_custom_call.1']
    #allocation16 [shape = 'u8[131072]{0}', space=vmem, size = 0x20000, scoped, tag = 'input window, operand 13, single buffered']
    #allocation17 [shape = 'u8[1024]{0}', space=vmem, size = 0x400, scoped, tag = 'output window, operand 0']
    %22 = vsyncpa [#allocation3], 0
    %s23 = scalar_lea.sflag [#allocation3], 1
    %24 = vsyncpa %s23, 0
    %25 = vsyncpa [#allocation6], 0
    %26 = vsyncpa [#allocation9], 0
    %27 = vsyncpa [#allocation12], 0
    %28 = vsyncpa [#allocation15], 0
    %29 = vsyncpa [#allocation4], 0
    %s30 = scalar_lea.sflag [#allocation4], 1
    %31 = vsyncpa %s30, 0
    loop: start=0, step=1, limit=4
    $region2: #{tpu_custom_call.1} parent=1 // loop_pre_header
      _
    $region3: #{tpu_custom_call.1} parent=1 // loop_header
      %s33 = sphi 0, %s37
      %p34 = scmp.ge.s32.totalorder %s33, 4
      %s43 = sphi 0, %s45
      %s46 = sphi 0, %s43
      %s47 = sphi 0, %s46
      %s63 = sphi 0, %s47
      %s67 = sphi 0, %s67
      %s69 = sphi 0, %s67
      %s70 = sphi 0, %s69
      %s84 = sphi 0, %s70
      %s88 = sphi 0, %s88
      %s90 = sphi 0, %s88
      %s91 = sphi 0, %s90
      %s105 = sphi 0, %s91
      %s109 = sphi 0, %s109
      %s111 = sphi 0, %s109
      %s112 = sphi 0, %s111
      %s126 = sphi 0, %s112
      %s130 = sphi 0, %s130
      %s132 = sphi 0, %s130
      %s133 = sphi 0, %s132
      %s147 = sphi 0, %s133
      %s151 = sphi 0, %s151
      %s153 = sphi 0, %s151
      %s154 = sphi 0, %s153
      %s168 = sphi 0, %s154
      %s172 = sphi 0, %s172
      %s174 = sphi 0, %s172
      %s175 = sphi 0, %s174
      %s189 = sphi 0, %s175
      %s193 = sphi 0, %s193
      %s195 = sphi 0, %s193
      %s196 = sphi 0, %s195
      %s210 = sphi 0, %s196
      %s214 = sphi 0, %s214
      %s216 = sphi 0, %s214
      %s217 = sphi 0, %s216
      %s231 = sphi 0, %s217
      %s235 = sphi 0, %s235
      %s237 = sphi 0, %s235
      %s238 = sphi 0, %s237
      %s252 = sphi 0, %s238
      %s256 = sphi 0, %s256
      %s258 = sphi 0, %s256
      %s259 = sphi 0, %s258
      %s273 = sphi 0, %s259
      %s277 = sphi 0, %s277
      %s279 = sphi 0, %s277
      %s280 = sphi 0, %s279
      %s294 = sphi 0, %s280
      %s298 = sphi 0, %s298
      %s300 = sphi 0, %s298
      %s301 = sphi 0, %s300
      %s315 = sphi 0, %s301
      %s319 = sphi 0, %s319
      %s321 = sphi 0, %s319
      %s322 = sphi 0, %s321
      %s336 = sphi 0, %s322
      %s340 = sphi 0, %s340
      %s342 = sphi 0, %s340
      %s343 = sphi 0, %s342
      %s357 = sphi 0, %s343
      %s361 = sphi 0, %s361
      %s363 = sphi 0, %s361
      %s364 = sphi 0, %s363
      %s378 = sphi 0, %s364
      %s382 = sphi 0, %s382
      %s384 = sphi 0, %s382
      %s385 = sphi 0, %s384
      %s399 = sphi 0, %s385
      %s405 = sphi 0, %s407
      %s408 = sphi 0, %s405
      %s409 = sphi 0, %s408
      %s425 = sphi 0, %s409
    $region4: #{tpu_custom_call.1} parent=1 // loop_header_branch
      %36 = sbr.rel (%p34) target = $region8
    $region5: #{tpu_custom_call.1} parent=1 // loop_body
      %s38 = ssub.s32 %s33, 1
      %s39 = ssub.s32 %s33, 2
      %s40 = sadd.s32 %s33, 1
      %s41 = ssub.s32 %s33, %s40
      %p42 = scmp.eq.s32.totalorder %s41, 0
      %s44 = sadd.s32 %s43, 1
      %s45 = scalar_select %p42, %s43, %s44
      %p48 = pneg %p42
      %p49 = scmp.eq.s32.totalorder %s33, 1
      %p50 = por %p48, %p49
      %p51 = scmp.ne.s32.totalorder %s43, %s46
      %p52 = scmp.eq.s32.totalorder %s33, 0
      %p53 = por %p51, %p52
      %p54 = scmp.ne.s32.totalorder %s43, %s46
      %p55 = scmp.eq.s32.totalorder %s38, 1
      %p56 = por %p54, %p55
      %p57 = scmp.ne.s32.totalorder %s46, %s47
      %p58 = scmp.eq.s32.totalorder %s38, 0
      %p59 = por %p57, %p58
      %p60 = scmp.ne.s32.totalorder %s46, %s47
      %p61 = scmp.eq.s32.totalorder %s39, 1
      %p62 = por %p60, %p61
      %p64 = scmp.ne.s32.totalorder %s47, %s63
      %p65 = scmp.eq.s32.totalorder %s39, 0
      %p66 = por %p64, %p65
      %s68 = sadd.s32 %s67, 1
      %p71 = scmp.eq.s32.totalorder %s33, 1
      %p72 = scmp.ne.s32.totalorder %s67, %s69
      %p73 = scmp.eq.s32.totalorder %s33, 0
      %p74 = por %p72, %p73
      %p75 = scmp.ne.s32.totalorder %s67, %s69
      %p76 = scmp.eq.s32.totalorder %s38, 1
      %p77 = por %p75, %p76
      %p78 = scmp.ne.s32.totalorder %s69, %s70
      %p79 = scmp.eq.s32.totalorder %s38, 0
      %p80 = por %p78, %p79
      %p81 = scmp.ne.s32.totalorder %s69, %s70
      %p82 = scmp.eq.s32.totalorder %s39, 1
      %p83 = por %p81, %p82
      %p85 = scmp.ne.s32.totalorder %s70, %s84
      %p86 = scmp.eq.s32.totalorder %s39, 0
      %p87 = por %p85, %p86
      %s89 = sadd.s32 %s88, 1
      %p92 = scmp.eq.s32.totalorder %s33, 1
      %p93 = scmp.ne.s32.totalorder %s88, %s90
      %p94 = scmp.eq.s32.totalorder %s33, 0
      %p95 = por %p93, %p94
      %p96 = scmp.ne.s32.totalorder %s88, %s90
      %p97 = scmp.eq.s32.totalorder %s38, 1
      %p98 = por %p96, %p97
      %p99 = scmp.ne.s32.totalorder %s90, %s91
      %p100 = scmp.eq.s32.totalorder %s38, 0
      %p101 = por %p99, %p100
      %p102 = scmp.ne.s32.totalorder %s90, %s91
      %p103 = scmp.eq.s32.totalorder %s39, 1
      %p104 = por %p102, %p103
      %p106 = scmp.ne.s32.totalorder %s91, %s105
      %p107 = scmp.eq.s32.totalorder %s39, 0
      %p108 = por %p106, %p107
      %s110 = sadd.s32 %s109, 1
      %p113 = scmp.eq.s32.totalorder %s33, 1
      %p114 = scmp.ne.s32.totalorder %s109, %s111
      %p115 = scmp.eq.s32.totalorder %s33, 0
      %p116 = por %p114, %p115
      %p117 = scmp.ne.s32.totalorder %s109, %s111
      %p118 = scmp.eq.s32.totalorder %s38, 1
      %p119 = por %p117, %p118
      %p120 = scmp.ne.s32.totalorder %s111, %s112
      %p121 = scmp.eq.s32.totalorder %s38, 0
      %p122 = por %p120, %p121
      %p123 = scmp.ne.s32.totalorder %s111, %s112
      %p124 = scmp.eq.s32.totalorder %s39, 1
      %p125 = por %p123, %p124
      %p127 = scmp.ne.s32.totalorder %s112, %s126
      %p128 = scmp.eq.s32.totalorder %s39, 0
      %p129 = por %p127, %p128
      %s131 = sadd.s32 %s130, 1
      %p134 = scmp.eq.s32.totalorder %s33, 1
      %p135 = scmp.ne.s32.totalorder %s130, %s132
      %p136 = scmp.eq.s32.totalorder %s33, 0
      %p137 = por %p135, %p136
      %p138 = scmp.ne.s32.totalorder %s130, %s132
      %p139 = scmp.eq.s32.totalorder %s38, 1
      %p140 = por %p138, %p139
      %p141 = scmp.ne.s32.totalorder %s132, %s133
      %p142 = scmp.eq.s32.totalorder %s38, 0
      %p143 = por %p141, %p142
      %p144 = scmp.ne.s32.totalorder %s132, %s133
      %p145 = scmp.eq.s32.totalorder %s39, 1
      %p146 = por %p144, %p145
      %p148 = scmp.ne.s32.totalorder %s133, %s147
      %p149 = scmp.eq.s32.totalorder %s39, 0
      %p150 = por %p148, %p149
      %s152 = sadd.s32 %s151, 1
      %p155 = scmp.eq.s32.totalorder %s33, 1
      %p156 = scmp.ne.s32.totalorder %s151, %s153
      %p157 = scmp.eq.s32.totalorder %s33, 0
      %p158 = por %p156, %p157
      %p159 = scmp.ne.s32.totalorder %s151, %s153
      %p160 = scmp.eq.s32.totalorder %s38, 1
      %p161 = por %p159, %p160
      %p162 = scmp.ne.s32.totalorder %s153, %s154
      %p163 = scmp.eq.s32.totalorder %s38, 0
      %p164 = por %p162, %p163
      %p165 = scmp.ne.s32.totalorder %s153, %s154
      %p166 = scmp.eq.s32.totalorder %s39, 1
      %p167 = por %p165, %p166
      %p169 = scmp.ne.s32.totalorder %s154, %s168
      %p170 = scmp.eq.s32.totalorder %s39, 0
      %p171 = por %p169, %p170
      %s173 = sadd.s32 %s172, 1
      %p176 = scmp.eq.s32.totalorder %s33, 1
      %p177 = scmp.ne.s32.totalorder %s172, %s174
      %p178 = scmp.eq.s32.totalorder %s33, 0
      %p179 = por %p177, %p178
      %p180 = scmp.ne.s32.totalorder %s172, %s174
      %p181 = scmp.eq.s32.totalorder %s38, 1
      %p182 = por %p180, %p181
      %p183 = scmp.ne.s32.totalorder %s174, %s175
      %p184 = scmp.eq.s32.totalorder %s38, 0
      %p185 = por %p183, %p184
      %p186 = scmp.ne.s32.totalorder %s174, %s175
      %p187 = scmp.eq.s32.totalorder %s39, 1
      %p188 = por %p186, %p187
      %p190 = scmp.ne.s32.totalorder %s175, %s189
      %p191 = scmp.eq.s32.totalorder %s39, 0
      %p192 = por %p190, %p191
      %s194 = sadd.s32 %s193, 1
      %p197 = scmp.eq.s32.totalorder %s33, 1
      %p198 = scmp.ne.s32.totalorder %s193, %s195
      %p199 = scmp.eq.s32.totalorder %s33, 0
      %p200 = por %p198, %p199
      %p201 = scmp.ne.s32.totalorder %s193, %s195
      %p202 = scmp.eq.s32.totalorder %s38, 1
      %p203 = por %p201, %p202
      %p204 = scmp.ne.s32.totalorder %s195, %s196
      %p205 = scmp.eq.s32.totalorder %s38, 0
      %p206 = por %p204, %p205
      %p207 = scmp.ne.s32.totalorder %s195, %s196
      %p208 = scmp.eq.s32.totalorder %s39, 1
      %p209 = por %p207, %p208
      %p211 = scmp.ne.s32.totalorder %s196, %s210
      %p212 = scmp.eq.s32.totalorder %s39, 0
      %p213 = por %p211, %p212
      %s215 = sadd.s32 %s214, 1
      %p218 = scmp.eq.s32.totalorder %s33, 1
      %p219 = scmp.ne.s32.totalorder %s214, %s216
      %p220 = scmp.eq.s32.totalorder %s33, 0
      %p221 = por %p219, %p220
      %p222 = scmp.ne.s32.totalorder %s214, %s216
      %p223 = scmp.eq.s32.totalorder %s38, 1
      %p224 = por %p222, %p223
      %p225 = scmp.ne.s32.totalorder %s216, %s217
      %p226 = scmp.eq.s32.totalorder %s38, 0
      %p227 = por %p225, %p226
      %p228 = scmp.ne.s32.totalorder %s216, %s217
      %p229 = scmp.eq.s32.totalorder %s39, 1
      %p230 = por %p228, %p229
      %p232 = scmp.ne.s32.totalorder %s217, %s231
      %p233 = scmp.eq.s32.totalorder %s39, 0
      %p234 = por %p232, %p233
      %s236 = sadd.s32 %s235, 1
      %p239 = scmp.eq.s32.totalorder %s33, 1
      %p240 = scmp.ne.s32.totalorder %s235, %s237
      %p241 = scmp.eq.s32.totalorder %s33, 0
      %p242 = por %p240, %p241
      %p243 = scmp.ne.s32.totalorder %s235, %s237
      %p244 = scmp.eq.s32.totalorder %s38, 1
      %p245 = por %p243, %p244
      %p246 = scmp.ne.s32.totalorder %s237, %s238
      %p247 = scmp.eq.s32.totalorder %s38, 0
      %p248 = por %p246, %p247
      %p249 = scmp.ne.s32.totalorder %s237, %s238
      %p250 = scmp.eq.s32.totalorder %s39, 1
      %p251 = por %p249, %p250
      %p253 = scmp.ne.s32.totalorder %s238, %s252
      %p254 = scmp.eq.s32.totalorder %s39, 0
      %p255 = por %p253, %p254
      %s257 = sadd.s32 %s256, 1
      %p260 = scmp.eq.s32.totalorder %s33, 1
      %p261 = scmp.ne.s32.totalorder %s256, %s258
      %p262 = scmp.eq.s32.totalorder %s33, 0
      %p263 = por %p261, %p262
      %p264 = scmp.ne.s32.totalorder %s256, %s258
      %p265 = scmp.eq.s32.totalorder %s38, 1
      %p266 = por %p264, %p265
      %p267 = scmp.ne.s32.totalorder %s258, %s259
      %p268 = scmp.eq.s32.totalorder %s38, 0
      %p269 = por %p267, %p268
      %p270 = scmp.ne.s32.totalorder %s258, %s259
      %p271 = scmp.eq.s32.totalorder %s39, 1
      %p272 = por %p270, %p271
      %p274 = scmp.ne.s32.totalorder %s259, %s273
      %p275 = scmp.eq.s32.totalorder %s39, 0
      %p276 = por %p274, %p275
      %s278 = sadd.s32 %s277, 1
      %p281 = scmp.eq.s32.totalorder %s33, 1
      %p282 = scmp.ne.s32.totalorder %s277, %s279
      %p283 = scmp.eq.s32.totalorder %s33, 0
      %p284 = por %p282, %p283
      %p285 = scmp.ne.s32.totalorder %s277, %s279
      %p286 = scmp.eq.s32.totalorder %s38, 1
      %p287 = por %p285, %p286
      %p288 = scmp.ne.s32.totalorder %s279, %s280
      %p289 = scmp.eq.s32.totalorder %s38, 0
      %p290 = por %p288, %p289
      %p291 = scmp.ne.s32.totalorder %s279, %s280
      %p292 = scmp.eq.s32.totalorder %s39, 1
      %p293 = por %p291, %p292
      %p295 = scmp.ne.s32.totalorder %s280, %s294
      %p296 = scmp.eq.s32.totalorder %s39, 0
      %p297 = por %p295, %p296
      %s299 = sadd.s32 %s298, 1
      %p302 = scmp.eq.s32.totalorder %s33, 1
      %p303 = scmp.ne.s32.totalorder %s298, %s300
      %p304 = scmp.eq.s32.totalorder %s33, 0
      %p305 = por %p303, %p304
      %p306 = scmp.ne.s32.totalorder %s298, %s300
      %p307 = scmp.eq.s32.totalorder %s38, 1
      %p308 = por %p306, %p307
      %p309 = scmp.ne.s32.totalorder %s300, %s301
      %p310 = scmp.eq.s32.totalorder %s38, 0
      %p311 = por %p309, %p310
      %p312 = scmp.ne.s32.totalorder %s300, %s301
      %p313 = scmp.eq.s32.totalorder %s39, 1
      %p314 = por %p312, %p313
      %p316 = scmp.ne.s32.totalorder %s301, %s315
      %p317 = scmp.eq.s32.totalorder %s39, 0
      %p318 = por %p316, %p317
      %s320 = sadd.s32 %s319, 1
      %p323 = scmp.eq.s32.totalorder %s33, 1
      %p324 = scmp.ne.s32.totalorder %s319, %s321
      %p325 = scmp.eq.s32.totalorder %s33, 0
      %p326 = por %p324, %p325
      %p327 = scmp.ne.s32.totalorder %s319, %s321
      %p328 = scmp.eq.s32.totalorder %s38, 1
      %p329 = por %p327, %p328
      %p330 = scmp.ne.s32.totalorder %s321, %s322
      %p331 = scmp.eq.s32.totalorder %s38, 0
      %p332 = por %p330, %p331
      %p333 = scmp.ne.s32.totalorder %s321, %s322
      %p334 = scmp.eq.s32.totalorder %s39, 1
      %p335 = por %p333, %p334
      %p337 = scmp.ne.s32.totalorder %s322, %s336
      %p338 = scmp.eq.s32.totalorder %s39, 0
      %p339 = por %p337, %p338
      %s341 = sadd.s32 %s340, 1
      %p344 = scmp.eq.s32.totalorder %s33, 1
      %p345 = scmp.ne.s32.totalorder %s340, %s342
      %p346 = scmp.eq.s32.totalorder %s33, 0
      %p347 = por %p345, %p346
      %p348 = scmp.ne.s32.totalorder %s340, %s342
      %p349 = scmp.eq.s32.totalorder %s38, 1
      %p350 = por %p348, %p349
      %p351 = scmp.ne.s32.totalorder %s342, %s343
      %p352 = scmp.eq.s32.totalorder %s38, 0
      %p353 = por %p351, %p352
      %p354 = scmp.ne.s32.totalorder %s342, %s343
      %p355 = scmp.eq.s32.totalorder %s39, 1
      %p356 = por %p354, %p355
      %p358 = scmp.ne.s32.totalorder %s343, %s357
      %p359 = scmp.eq.s32.totalorder %s39, 0
      %p360 = por %p358, %p359
      %s362 = sadd.s32 %s361, 1
      %p365 = scmp.eq.s32.totalorder %s33, 1
      %p366 = scmp.ne.s32.totalorder %s361, %s363
      %p367 = scmp.eq.s32.totalorder %s33, 0
      %p368 = por %p366, %p367
      %p369 = scmp.ne.s32.totalorder %s361, %s363
      %p370 = scmp.eq.s32.totalorder %s38, 1
      %p371 = por %p369, %p370
      %p372 = scmp.ne.s32.totalorder %s363, %s364
      %p373 = scmp.eq.s32.totalorder %s38, 0
      %p374 = por %p372, %p373
      %p375 = scmp.ne.s32.totalorder %s363, %s364
      %p376 = scmp.eq.s32.totalorder %s39, 1
      %p377 = por %p375, %p376
      %p379 = scmp.ne.s32.totalorder %s364, %s378
      %p380 = scmp.eq.s32.totalorder %s39, 0
      %p381 = por %p379, %p380
      %s383 = sadd.s32 %s382, 1
      %p386 = scmp.eq.s32.totalorder %s33, 1
      %p387 = scmp.ne.s32.totalorder %s382, %s384
      %p388 = scmp.eq.s32.totalorder %s33, 0
      %p389 = por %p387, %p388
      %p390 = scmp.ne.s32.totalorder %s382, %s384
      %p391 = scmp.eq.s32.totalorder %s38, 1
      %p392 = por %p390, %p391
      %p393 = scmp.ne.s32.totalorder %s384, %s385
      %p394 = scmp.eq.s32.totalorder %s38, 0
      %p395 = por %p393, %p394
      %p396 = scmp.ne.s32.totalorder %s384, %s385
      %p397 = scmp.eq.s32.totalorder %s39, 1
      %p398 = por %p396, %p397
      %p400 = scmp.ne.s32.totalorder %s385, %s399
      %p401 = scmp.eq.s32.totalorder %s39, 0
      %p402 = por %p400, %p401
      %s403 = ssub.s32 %s33, %s40
      %p404 = scmp.eq.s32.totalorder %s403, 0
      %s406 = sadd.s32 %s405, 1
      %s407 = scalar_select %p404, %s405, %s406
      %p410 = pneg %p404
      %p411 = scmp.eq.s32.totalorder %s33, 1
      %p412 = por %p410, %p411
      %p413 = scmp.ne.s32.totalorder %s405, %s408
      %p414 = scmp.eq.s32.totalorder %s33, 0
      %p415 = por %p413, %p414
      %p416 = scmp.ne.s32.totalorder %s405, %s408
      %p417 = scmp.eq.s32.totalorder %s38, 1
      %p418 = por %p416, %p417
      %p419 = scmp.ne.s32.totalorder %s408, %s409
      %p420 = scmp.eq.s32.totalorder %s38, 0
      %p421 = por %p419, %p420
      %p422 = scmp.ne.s32.totalorder %s408, %s409
      %p423 = scmp.eq.s32.totalorder %s39, 1
      %p424 = por %p422, %p423
      %p426 = scmp.ne.s32.totalorder %s409, %s425
      %p427 = scmp.eq.s32.totalorder %s39, 0
      %p428 = por %p426, %p427
      %p429 = scmp.le.s32.totalorder 1, %s33
      %p430 = scmp.lt.s32.totalorder %s33, 3
      %p431 = pnand %p429, %p430
      %p432 = pneg %p431
      // Predicated region
      $region9: #{tpu_custom_call.1} parent=5 // pred_check
        _
      $region10: #{tpu_custom_call.1} parent=5 // pred_check_branch
        %434 = sbr.rel (%p431) target = $region12
      $region11: #{tpu_custom_call.1} parent=5 // pred_region
        %s435 = ssub.s32 %s33, 1
        // Predicated region
        $region13: #{tpu_custom_call.1} parent=11 // pred_check
          %p436 = pneg %p80
        $region14: #{tpu_custom_call.1} parent=11 // pred_check_branch
          %438 = sbr.rel (%p436) target = $region16
        $region15: #{tpu_custom_call.1} parent=11 // pred_region
          %440 = vsyncadd [#allocation6], 0
          %s441 = sshll.u32 %s1, 4
          %s442 = int_to_ptr.hbm [resolvable:$true] %s441
          %s443 = sshll.u32 [#allocation5], 4
          %s444 = int_to_ptr.vmem [resolvable:$true] %s443
          %449 = dma.hbm_to_vmem [thread:$0]  %s442, 2048, %s444, [#allocation6], 128, 128, 8
        $region16: #{tpu_custom_call.1} parent=11 // pred_fallthru
          _
        // Predicated region
        $region17: #{tpu_custom_call.1} parent=11 // pred_check
          %p450 = pneg %p101
        $region18: #{tpu_custom_call.1} parent=11 // pred_check_branch
          %452 = sbr.rel (%p450) target = $region20
        $region19: #{tpu_custom_call.1} parent=11 // pred_region
          %454 = vsyncadd [#allocation6], 0
          %s456 = sshll.u32 %s2, 4
          %s457 = int_to_ptr.hbm [resolvable:$true] %s456
          %s458 = sshll.u32 [#allocation7], 4
          %s459 = int_to_ptr.vmem [resolvable:$true] %s458
          %461 = dma.hbm_to_vmem [thread:$0]  %s457, 16, %s459, [#allocation6]
        $region20: #{tpu_custom_call.1} parent=11 // pred_fallthru
          _
        // Predicated region
        $region21: #{tpu_custom_call.1} parent=11 // pred_check
          %p462 = pneg %p122
        $region22: #{tpu_custom_call.1} parent=11 // pred_check_branch
          %464 = sbr.rel (%p462) target = $region24
        $region23: #{tpu_custom_call.1} parent=11 // pred_region
          %466 = vsyncadd [#allocation9], 0
          %s468 = sshll.u32 %s3, 4
          %s469 = int_to_ptr.hbm [resolvable:$true] %s468
          %s470 = sshll.u32 [#allocation8], 4
          %s471 = int_to_ptr.vmem [resolvable:$true] %s470
          %473 = dma.hbm_to_vmem [thread:$0]  %s469, 16, %s471, [#allocation9]
        $region24: #{tpu_custom_call.1} parent=11 // pred_fallthru
          _
        // Predicated region
        $region25: #{tpu_custom_call.1} parent=11 // pred_check
          %p474 = pneg %p143
        $region26: #{tpu_custom_call.1} parent=11 // pred_check_branch
          %476 = sbr.rel (%p474) target = $region28
        $region27: #{tpu_custom_call.1} parent=11 // pred_region
          _
        $region28: #{tpu_custom_call.1} parent=11 // pred_fallthru
          _
        // Predicated region
        $region29: #{tpu_custom_call.1} parent=11 // pred_check
          %p477 = pneg %p164
        $region30: #{tpu_custom_call.1} parent=11 // pred_check_branch
          %479 = sbr.rel (%p477) target = $region32
        $region31: #{tpu_custom_call.1} parent=11 // pred_region
          _
        $region32: #{tpu_custom_call.1} parent=11 // pred_fallthru
          _
        // Predicated region
        $region33: #{tpu_custom_call.1} parent=11 // pred_check
          %p480 = pneg %p185
        $region34: #{tpu_custom_call.1} parent=11 // pred_check_branch
          %482 = sbr.rel (%p480) target = $region36
        $region35: #{tpu_custom_call.1} parent=11 // pred_region
          %484 = vsyncadd [#allocation9], 0
          %s485 = sshll.u32 %s6, 4
          %s486 = int_to_ptr.hbm [resolvable:$true] %s485
          %s487 = sshll.u32 [#allocation10], 4
          %s488 = int_to_ptr.vmem [resolvable:$true] %s487
          %493 = dma.hbm_to_vmem [thread:$0]  %s486, 12288, %s488, [#allocation9], 384, 384, 24
        $region36: #{tpu_custom_call.1} parent=11 // pred_fallthru
          _
        // Predicated region
        $region37: #{tpu_custom_call.1} parent=11 // pred_check
          %p494 = pneg %p206
        $region38: #{tpu_custom_call.1} parent=11 // pred_check_branch
          %496 = sbr.rel (%p494) target = $region40
        $region39: #{tpu_custom_call.1} parent=11 // pred_region
          %498 = vsyncadd [#allocation12], 0
          %s499 = sshll.u32 %s7, 4
          %s500 = int_to_ptr.hbm [resolvable:$true] %s499
          %s501 = sshll.u32 [#allocation11], 4
          %s502 = int_to_ptr.vmem [resolvable:$true] %s501
          %507 = dma.hbm_to_vmem [thread:$0]  %s500, 4096, %s502, [#allocation12], 128, 128, 8
        $region40: #{tpu_custom_call.1} parent=11 // pred_fallthru
          _
        // Predicated region
        $region41: #{tpu_custom_call.1} parent=11 // pred_check
          %p508 = pneg %p227
        $region42: #{tpu_custom_call.1} parent=11 // pred_check_branch
          %510 = sbr.rel (%p508) target = $region44
        $region43: #{tpu_custom_call.1} parent=11 // pred_region
          _
        $region44: #{tpu_custom_call.1} parent=11 // pred_fallthru
          _
        // Predicated region
        $region45: #{tpu_custom_call.1} parent=11 // pred_check
          %p511 = pneg %p248
        $region46: #{tpu_custom_call.1} parent=11 // pred_check_branch
          %513 = sbr.rel (%p511) target = $region48
        $region47: #{tpu_custom_call.1} parent=11 // pred_region
          _
        $region48: #{tpu_custom_call.1} parent=11 // pred_fallthru
          _
        // Predicated region
        $region49: #{tpu_custom_call.1} parent=11 // pred_check
          %p514 = pneg %p269
        $region50: #{tpu_custom_call.1} parent=11 // pred_check_branch
          %516 = sbr.rel (%p514) target = $region52
        $region51: #{tpu_custom_call.1} parent=11 // pred_region
          %518 = vsyncadd [#allocation12], 0
          %s519 = sshll.u32 %s10, 4
          %s520 = int_to_ptr.hbm [resolvable:$true] %s519
          %s521 = sshll.u32 [#allocation13], 4
          %s522 = int_to_ptr.vmem [resolvable:$true] %s521
          %527 = dma.hbm_to_vmem [thread:$0]  %s520, 32, %s522, [#allocation12], 16, 16, 1
        $region52: #{tpu_custom_call.1} parent=11 // pred_fallthru
          _
        // Predicated region
        $region53: #{tpu_custom_call.1} parent=11 // pred_check
          %p528 = pneg %p290
        $region54: #{tpu_custom_call.1} parent=11 // pred_check_branch
          %530 = sbr.rel (%p528) target = $region56
        $region55: #{tpu_custom_call.1} parent=11 // pred_region
          %532 = vsyncadd [#allocation15], 0
          %s533 = sshll.u32 %s11, 4
          %s534 = int_to_ptr.hbm [resolvable:$true] %s533
          %s535 = sshll.u32 [#allocation14], 4
          %s536 = int_to_ptr.vmem [resolvable:$true] %s535
          %541 = dma.hbm_to_vmem [thread:$0]  %s534, 4096, %s536, [#allocation15], 128, 128, 8
        $region56: #{tpu_custom_call.1} parent=11 // pred_fallthru
          _
        // Predicated region
        $region57: #{tpu_custom_call.1} parent=11 // pred_check
          %p542 = pneg %p311
        $region58: #{tpu_custom_call.1} parent=11 // pred_check_branch
          %544 = sbr.rel (%p542) target = $region60
        $region59: #{tpu_custom_call.1} parent=11 // pred_region
          _
        $region60: #{tpu_custom_call.1} parent=11 // pred_fallthru
          _
        // Predicated region
        $region61: #{tpu_custom_call.1} parent=11 // pred_check
          %p545 = pneg %p332
        $region62: #{tpu_custom_call.1} parent=11 // pred_check_branch
          %547 = sbr.rel (%p545) target = $region64
        $region63: #{tpu_custom_call.1} parent=11 // pred_region
          %549 = vsyncadd [#allocation15], 0
          %s550 = sshll.u32 %s13, 4
          %s551 = int_to_ptr.hbm [resolvable:$true] %s550
          %s552 = sshll.u32 [#allocation16], 4
          %s553 = int_to_ptr.vmem [resolvable:$true] %s552
          %558 = dma.hbm_to_vmem [thread:$0]  %s551, 4096, %s553, [#allocation15], 128, 128, 8
        $region64: #{tpu_custom_call.1} parent=11 // pred_fallthru
          _
        // Predicated region
        $region65: #{tpu_custom_call.1} parent=11 // pred_check
          %p559 = pneg %p353
        $region66: #{tpu_custom_call.1} parent=11 // pred_check_branch
          %561 = sbr.rel (%p559) target = $region68
        $region67: #{tpu_custom_call.1} parent=11 // pred_region
          _
        $region68: #{tpu_custom_call.1} parent=11 // pred_fallthru
          _
        // Predicated region
        $region69: #{tpu_custom_call.1} parent=11 // pred_check
          %p562 = pneg %p374
        $region70: #{tpu_custom_call.1} parent=11 // pred_check_branch
          %564 = sbr.rel (%p562) target = $region72
        $region71: #{tpu_custom_call.1} parent=11 // pred_region
          _
        $region72: #{tpu_custom_call.1} parent=11 // pred_fallthru
          _
        // Predicated region
        $region73: #{tpu_custom_call.1} parent=11 // pred_check
          %p565 = pneg %p395
        $region74: #{tpu_custom_call.1} parent=11 // pred_check_branch
          %567 = sbr.rel (%p565) target = $region76
        $region75: #{tpu_custom_call.1} parent=11 // pred_region
          _
        $region76: #{tpu_custom_call.1} parent=11 // pred_fallthru
          _
      $region12: #{tpu_custom_call.1} parent=5 // pred_fallthru
        _
      %p568 = scmp.lt.s32.totalorder %s33, 2
      // Predicated region
      $region77: #{tpu_custom_call.1} parent=5 // pred_check
        %p569 = pneg %p568
      $region78: #{tpu_custom_call.1} parent=5 // pred_check_branch
        %571 = sbr.rel (%p569) target = $region80
      $region79: #{tpu_custom_call.1} parent=5 // pred_region
        // Predicated region
        $region81: #{tpu_custom_call.1} parent=79 // pred_check
          %p572 = pneg %p53
        $region82: #{tpu_custom_call.1} parent=79 // pred_check_branch
          %574 = sbr.rel (%p572) target = $region84
        $region83: #{tpu_custom_call.1} parent=79 // pred_region
          %s575 = sand.u32 %s43, 1
          %s576 = scalar_lea.sflag [#allocation3], %s575
          %s577 = sand.u32 %s43, 1
          %s578 = smul.addr %s577, 8
          %s579 = scalar_lea.vmem [#allocation2], %s578
          %581 = vsyncadd %s576, 0
          %s582 = smul.addr %s33, 8
          %s583 = scalar_lea.hbm %s0, %s582
          %s585 = sshll.u32 %s583, 4
          %s586 = int_to_ptr.hbm [resolvable:$true] %s585
          %s587 = sshll.u32 %s579, 4
          %s588 = int_to_ptr.vmem [resolvable:$true] %s587
          %590 = dma.hbm_to_vmem [thread:$0]  %s586, 128, %s588, %s576
        $region84: #{tpu_custom_call.1} parent=79 // pred_fallthru
          _
      $region80: #{tpu_custom_call.1} parent=5 // pred_fallthru
        _
      %p591 = scmp.le.s32.totalorder 1, %s33
      %p592 = scmp.lt.s32.totalorder %s33, 3
      %p593 = pnand %p591, %p592
      %p594 = pneg %p593
      // Predicated region
      $region85: #{tpu_custom_call.1} parent=5 // pred_check
        _
      $region86: #{tpu_custom_call.1} parent=5 // pred_check_branch
        %596 = sbr.rel (%p593) target = $region88
      $region87: #{tpu_custom_call.1} parent=5 // pred_region
        %s597 = ssub.s32 %s33, 1
        %s598 = sand.u32 %s46, 1
        %s599 = scalar_lea.sflag [#allocation3], %s598
        %s600 = sand.u32 %s46, 1
        %s601 = smul.addr %s600, 8
        %s602 = scalar_lea.vmem [#allocation2], %s601
        // Predicated region
        $region89: #{tpu_custom_call.1} parent=87 // pred_check
          %p603 = pneg %p59
        $region90: #{tpu_custom_call.1} parent=87 // pred_check_branch
          %605 = sbr.rel (%p603) target = $region92
        $region91: #{tpu_custom_call.1} parent=87 // pred_region
          %607 = dma.done %s599, 128
        $region92: #{tpu_custom_call.1} parent=87 // pred_fallthru
          _
        // Predicated region
        $region93: #{tpu_custom_call.1} parent=87 // pred_check
          %p608 = pneg %p80
        $region94: #{tpu_custom_call.1} parent=87 // pred_check_branch
          %610 = sbr.rel (%p608) target = $region96
        $region95: #{tpu_custom_call.1} parent=87 // pred_region
          %612 = dma.done [#allocation6], 2048
        $region96: #{tpu_custom_call.1} parent=87 // pred_fallthru
          _
        // Predicated region
        $region97: #{tpu_custom_call.1} parent=87 // pred_check
          %p613 = pneg %p101
        $region98: #{tpu_custom_call.1} parent=87 // pred_check_branch
          %615 = sbr.rel (%p613) target = $region100
        $region99: #{tpu_custom_call.1} parent=87 // pred_region
          %617 = dma.done [#allocation6], 16
        $region100: #{tpu_custom_call.1} parent=87 // pred_fallthru
          _
        // Predicated region
        $region101: #{tpu_custom_call.1} parent=87 // pred_check
          %p618 = pneg %p122
        $region102: #{tpu_custom_call.1} parent=87 // pred_check_branch
          %620 = sbr.rel (%p618) target = $region104
        $region103: #{tpu_custom_call.1} parent=87 // pred_region
          %622 = dma.done [#allocation9], 16
        $region104: #{tpu_custom_call.1} parent=87 // pred_fallthru
          _
        // Predicated region
        $region105: #{tpu_custom_call.1} parent=87 // pred_check
          %p623 = pneg %p185
        $region106: #{tpu_custom_call.1} parent=87 // pred_check_branch
          %625 = sbr.rel (%p623) target = $region108
        $region107: #{tpu_custom_call.1} parent=87 // pred_region
          %627 = dma.done [#allocation9], 12288
        $region108: #{tpu_custom_call.1} parent=87 // pred_fallthru
          _
        // Predicated region
        $region109: #{tpu_custom_call.1} parent=87 // pred_check
          %p628 = pneg %p206
        $region110: #{tpu_custom_call.1} parent=87 // pred_check_branch
          %630 = sbr.rel (%p628) target = $region112
        $region111: #{tpu_custom_call.1} parent=87 // pred_region
          %632 = dma.done [#allocation12], 4096
        $region112: #{tpu_custom_call.1} parent=87 // pred_fallthru
          _
        // Predicated region
        $region113: #{tpu_custom_call.1} parent=87 // pred_check
          %p633 = pneg %p269
        $region114: #{tpu_custom_call.1} parent=87 // pred_check_branch
          %635 = sbr.rel (%p633) target = $region116
        $region115: #{tpu_custom_call.1} parent=87 // pred_region
          %637 = dma.done [#allocation12], 32
        $region116: #{tpu_custom_call.1} parent=87 // pred_fallthru
          _
        // Predicated region
        $region117: #{tpu_custom_call.1} parent=87 // pred_check
          %p638 = pneg %p290
        $region118: #{tpu_custom_call.1} parent=87 // pred_check_branch
          %640 = sbr.rel (%p638) target = $region120
        $region119: #{tpu_custom_call.1} parent=87 // pred_region
          %642 = dma.done [#allocation15], 4096
        $region120: #{tpu_custom_call.1} parent=87 // pred_fallthru
          _
        // Predicated region
        $region121: #{tpu_custom_call.1} parent=87 // pred_check
          %p643 = pneg %p332
        $region122: #{tpu_custom_call.1} parent=87 // pred_check_branch
          %645 = sbr.rel (%p643) target = $region124
        $region123: #{tpu_custom_call.1} parent=87 // pred_region
          %647 = dma.done [#allocation15], 4096
        $region124: #{tpu_custom_call.1} parent=87 // pred_fallthru
          _
        %s648 = sand.u32 %s46, 1
        %s649 = scalar_lea.sflag [#allocation3], %s648
        %s650 = sand.u32 %s46, 1
        %s651 = smul.addr %s650, 8
        %s652 = scalar_lea.vmem [#allocation2], %s651
        %p653 = pneg %p59
        %p654 = pneg %p56
        %p655 = pneg %p80
        %p656 = pneg %p77
        %p657 = pneg %p101
        %p658 = pneg %p98
        %p659 = pneg %p122
        %p660 = pneg %p119
        %p661 = pneg %p143
        %p662 = pneg %p140
        %p663 = pneg %p164
        %p664 = pneg %p161
        %p665 = pneg %p185
        %p666 = pneg %p182
        %p667 = pneg %p206
        %p668 = pneg %p203
        %p669 = pneg %p227
        %p670 = pneg %p224
        %p671 = pneg %p248
        %p672 = pneg %p245
        %p673 = pneg %p269
        %p674 = pneg %p266
        %p675 = pneg %p290
        %p676 = pneg %p287
        %p677 = pneg %p311
        %p678 = pneg %p308
        %p679 = pneg %p332
        %p680 = pneg %p329
        %p681 = pneg %p353
        %p682 = pneg %p350
        %p683 = pneg %p374
        %p684 = pneg %p371
        %p685 = pneg %p395
        %p686 = pneg %p392
        %p687 = pneg %p421
        %p688 = pneg %p418
        %s689 = sand.u32 %s408, 1
        %s690 = scalar_lea.sflag [#allocation4], %s689
        %s691 = sand.u32 %s408, 1
        %s692 = scalar_lea.vmem [#allocation17], %s691
        %v693 = vld [vmem:[%s602] sm:$0xff]
        %v694 = vld [vmem:[#allocation5] sm:$0xff]
        %v695 = vld [vmem:[#allocation5 + $0x8] sm:$0xff]
        %v696 = vld [vmem:[#allocation5 + $0x10] sm:$0xff]
        %v697 = vld [vmem:[#allocation5 + $0x18] sm:$0xff]
        %v698 = vld [vmem:[#allocation5 + $0x20] sm:$0xff]
        %v699 = vld [vmem:[#allocation5 + $0x28] sm:$0xff]
        %v700 = vld [vmem:[#allocation5 + $0x30] sm:$0xff]
        %v701 = vld [vmem:[#allocation5 + $0x38] sm:$0xff]
        %v702 = vld [vmem:[#allocation5 + $0x40] sm:$0xff]
        %v703 = vld [vmem:[#allocation5 + $0x48] sm:$0xff]
        %v704 = vld [vmem:[#allocation5 + $0x50] sm:$0xff]
        %v705 = vld [vmem:[#allocation5 + $0x58] sm:$0xff]
        %v706 = vld [vmem:[#allocation5 + $0x60] sm:$0xff]
        %v707 = vld [vmem:[#allocation5 + $0x68] sm:$0xff]
        %v708 = vld [vmem:[#allocation5 + $0x70] sm:$0xff]
        %v709 = vld [vmem:[#allocation5 + $0x78] sm:$0xff]
        %v710 = vld [vmem:[#allocation7] sm:$0x1]
        %v712 = vperm.slane %v710, 0
        %714 = vmatpush.msra.mxu0 %v709
        %715 = vmatpush.msra.mxu0 %v708
        %716 = vmatpush.msra.mxu0 %v707
        %717 = vmatpush.msra.mxu0 %v706
        %718 = vmatpush.msra.mxu0 %v705
        %719 = vmatpush.msra.mxu0 %v704
        %720 = vmatpush.msra.mxu0 %v703
        %721 = vmatpush.msra.mxu0 %v702
        %722 = vmatpush.msra.mxu0 %v701
        %723 = vmatpush.msra.mxu0 %v700
        %724 = vmatpush.msra.mxu0 %v699
        %725 = vmatpush.msra.mxu0 %v698
        %726 = vmatpush.msra.mxu0 %v697
        %727 = vmatpush.msra.mxu0 %v696
        %728 = vmatpush.msra.mxu0 %v695
        %729 = vmatpush.msra.mxu0 %v694
        %730 = vmatmul.f32.gmra.mxu0 %v693
        %v731 = vpop.f32.mrf.mxu0
        %v732 = vadd.f32 %v712, %v731
        %733 = vdwg.mxu0
        %v734 = vmax.f32 %v732, 0.0
        %v735 = vld [vmem:[#allocation8] sm:$0x1]
        %v737 = vrot.slane %v734, 7
        %vm739 = vcmask 1040384
        %v740 = vsel %vm739, %v735, %v737
        %v741 = vld [vmem:[%s4] sm:$0x1]
        %v742 = vld [vmem:[%s5] sm:$0x1]
        %743 = vadd.xlane.f32.xlu0 %v740
        %v744 = vpop.xlane.xlu0 %743
        %v745 = vsel %vm739, %v737, 0.0
        %746 = vadd.xlane.f32.xlu0 %v745
        %v747 = vpop.xlane.xlu0 %746
        %v748 = vrcp.pop 128.0
        %v749 = vmul.f32 128.0, %v748
        %v750 = vsub.f32 1.0, %v749
        %v751 = vmul.f32 %v748, %v750
        %v752 = vadd.f32 %v748, %v751
        %vm753 = vweird.f32 %v748
        %v754 = vsel %vm753, %v748, %v752
        %v755 = vmul.f32 %v744, %v754
        %v756 = vmul.f32 %v747, %v754
        %v757 = vsub.f32 %v740, %v755
        %v758 = vsub.f32 %v737, %v756
        %v759 = vmul.f32 %v757, %v757
        %v760 = vmul.f32 %v758, %v758
        %761 = vadd.xlane.f32.xlu0 %v759
        %v762 = vpop.xlane.xlu0 %761
        %v763 = vsel %vm739, %v760, 0.0
        %764 = vadd.xlane.f32.xlu0 %v763
        %v765 = vpop.xlane.xlu0 %764
        %v766 = vmul.f32 %v762, %v754
        %v767 = vmul.f32 %v765, %v754
        %v768 = vadd.f32 %v766, 1e-05
        %v769 = vadd.f32 %v767, 1e-05
        %v770 = vrsqrt.pop %v768
        %v771 = vmul.f32 %v770, %v768
        %v772 = vmul.f32 %v771, %v770
        %v773 = vmul.f32 0.5, %v772
        %v774 = vsub.f32 1.5, %v773
        %v775 = vmul.f32 %v770, %v774
        %vm776 = vweird.f32 %v768
        %vm777 = vweird.f32 %v770
        %vm778 = vmor %vm776, %vm777
        %v779 = vsel %vm778, %v770, %v775
        %v780 = vrsqrt.pop %v769
        %v781 = vmul.f32 %v780, %v769
        %v782 = vmul.f32 %v781, %v780
        %v783 = vmul.f32 0.5, %v782
        %v784 = vsub.f32 1.5, %v783
        %v785 = vmul.f32 %v780, %v784
        %vm786 = vweird.f32 %v769
        %vm787 = vweird.f32 %v780
        %vm788 = vmor %vm786, %vm787
        %v789 = vsel %vm788, %v780, %v785
        %v790 = vmul.f32 %v757, %v779
        %v791 = vmul.f32 %v758, %v789
        %v793 = vperm.slane %v741, 0
        %v795 = vmul.f32 %v790, %v793
        %v796 = vmul.f32 %v791, %v793
        %v798 = vperm.slane %v742, 0
        %v800 = vadd.f32 %v795, %v798
        %v801 = vadd.f32 %v796, %v798
        %v802 = vld [vmem:[#allocation10] sm:$0xff]
        %v803 = vld [vmem:[#allocation10 + $0x8] sm:$0xff]
        %v804 = vld [vmem:[#allocation10 + $0x10] sm:$0xff]
        %v805 = vld [vmem:[#allocation10 + $0x18] sm:$0xff]
        %v806 = vld [vmem:[#allocation10 + $0x20] sm:$0xff]
        %v807 = vld [vmem:[#allocation10 + $0x28] sm:$0xff]
        %v808 = vld [vmem:[#allocation10 + $0x30] sm:$0xff]
        %v809 = vld [vmem:[#allocation10 + $0x38] sm:$0xff]
        %v810 = vld [vmem:[#allocation10 + $0x40] sm:$0xff]
        %v811 = vld [vmem:[#allocation10 + $0x48] sm:$0xff]
        %v812 = vld [vmem:[#allocation10 + $0x50] sm:$0xff]
        %v813 = vld [vmem:[#allocation10 + $0x58] sm:$0xff]
        %v814 = vld [vmem:[#allocation10 + $0x60] sm:$0xff]
        %v815 = vld [vmem:[#allocation10 + $0x68] sm:$0xff]
        %v816 = vld [vmem:[#allocation10 + $0x70] sm:$0xff]
        %v817 = vld [vmem:[#allocation10 + $0x78] sm:$0xff]
        %v818 = vld [vmem:[#allocation10 + $0x80] sm:$0xff]
        %v819 = vld [vmem:[#allocation10 + $0x88] sm:$0xff]
        %v820 = vld [vmem:[#allocation10 + $0x90] sm:$0xff]
        %v821 = vld [vmem:[#allocation10 + $0x98] sm:$0xff]
        %v822 = vld [vmem:[#allocation10 + $0xa0] sm:$0xff]
        %v823 = vld [vmem:[#allocation10 + $0xa8] sm:$0xff]
        %v824 = vld [vmem:[#allocation10 + $0xb0] sm:$0xff]
        %v825 = vld [vmem:[#allocation10 + $0xb8] sm:$0xff]
        %v826 = vld [vmem:[#allocation10 + $0xc0] sm:$0xff]
        %v827 = vld [vmem:[#allocation10 + $0xc8] sm:$0xff]
        %v828 = vld [vmem:[#allocation10 + $0xd0] sm:$0xff]
        %v829 = vld [vmem:[#allocation10 + $0xd8] sm:$0xff]
        %v830 = vld [vmem:[#allocation10 + $0xe0] sm:$0xff]
        %v831 = vld [vmem:[#allocation10 + $0xe8] sm:$0xff]
        %v832 = vld [vmem:[#allocation10 + $0xf0] sm:$0xff]
        %v833 = vld [vmem:[#allocation10 + $0xf8] sm:$0xff]
        %v834 = vld [vmem:[#allocation10 + $0x100] sm:$0xff]
        %v835 = vld [vmem:[#allocation10 + $0x108] sm:$0xff]
        %v836 = vld [vmem:[#allocation10 + $0x110] sm:$0xff]
        %v837 = vld [vmem:[#allocation10 + $0x118] sm:$0xff]
        %v838 = vld [vmem:[#allocation10 + $0x120] sm:$0xff]
        %v839 = vld [vmem:[#allocation10 + $0x128] sm:$0xff]
        %v840 = vld [vmem:[#allocation10 + $0x130] sm:$0xff]
        %v841 = vld [vmem:[#allocation10 + $0x138] sm:$0xff]
        %v842 = vld [vmem:[#allocation10 + $0x140] sm:$0xff]
        %v843 = vld [vmem:[#allocation10 + $0x148] sm:$0xff]
        %v844 = vld [vmem:[#allocation10 + $0x150] sm:$0xff]
        %v845 = vld [vmem:[#allocation10 + $0x158] sm:$0xff]
        %v846 = vld [vmem:[#allocation10 + $0x160] sm:$0xff]
        %v847 = vld [vmem:[#allocation10 + $0x168] sm:$0xff]
        %v848 = vld [vmem:[#allocation10 + $0x170] sm:$0xff]
        %v849 = vld [vmem:[#allocation10 + $0x178] sm:$0xff]
        %850 = vmatpush.msra.mxu0 %v847
        %851 = vmatpush.msra.mxu0 %v844
        %852 = vmatpush.msra.mxu0 %v841
        %853 = vmatpush.msra.mxu0 %v838
        %854 = vmatpush.msra.mxu0 %v835
        %855 = vmatpush.msra.mxu0 %v832
        %856 = vmatpush.msra.mxu0 %v829
        %857 = vmatpush.msra.mxu0 %v826
        %858 = vmatpush.msra.mxu0 %v823
        %859 = vmatpush.msra.mxu0 %v820
        %860 = vmatpush.msra.mxu0 %v817
        %861 = vmatpush.msra.mxu0 %v814
        %862 = vmatpush.msra.mxu0 %v811
        %863 = vmatpush.msra.mxu0 %v808
        %864 = vmatpush.msra.mxu0 %v805
        %865 = vmatpush.msra.mxu0 %v802
        %866 = vmatmul.f32.gmra.mxu0 %v800
        %v867 = vpop.f32.mrf.mxu0
        %v868 = vadd.f32 0.0, %v867
        %869 = vmatmul.f32.gmra.mxu0 %v801
        %v870 = vpop.f32.mrf.mxu0
        %v871 = vadd.f32 0.0, %v870
        %872 = vdwg.mxu0
        %873 = vmatpush.msra.mxu0 %v848
        %874 = vmatpush.msra.mxu0 %v845
        %875 = vmatpush.msra.mxu0 %v842
        %876 = vmatpush.msra.mxu0 %v839
        %877 = vmatpush.msra.mxu0 %v836
        %878 = vmatpush.msra.mxu0 %v833
        %879 = vmatpush.msra.mxu0 %v830
        %880 = vmatpush.msra.mxu0 %v827
        %881 = vmatpush.msra.mxu0 %v824
        %882 = vmatpush.msra.mxu0 %v821
        %883 = vmatpush.msra.mxu0 %v818
        %884 = vmatpush.msra.mxu0 %v815
        %885 = vmatpush.msra.mxu0 %v812
        %886 = vmatpush.msra.mxu0 %v809
        %887 = vmatpush.msra.mxu0 %v806
        %888 = vmatpush.msra.mxu0 %v803
        %889 = vmatmul.f32.gmra.mxu0 %v800
        %v890 = vpop.f32.mrf.mxu0
        %v891 = vadd.f32 0.0, %v890
        %892 = vmatmul.f32.gmra.mxu0 %v801
        %v893 = vpop.f32.mrf.mxu0
        %v894 = vadd.f32 0.0, %v893
        %895 = vdwg.mxu0
        %896 = vmatpush.msra.mxu0 %v849
        %897 = vmatpush.msra.mxu0 %v846
        %898 = vmatpush.msra.mxu0 %v843
        %899 = vmatpush.msra.mxu0 %v840
        %900 = vmatpush.msra.mxu0 %v837
        %901 = vmatpush.msra.mxu0 %v834
        %902 = vmatpush.msra.mxu0 %v831
        %903 = vmatpush.msra.mxu0 %v828
        %904 = vmatpush.msra.mxu0 %v825
        %905 = vmatpush.msra.mxu0 %v822
        %906 = vmatpush.msra.mxu0 %v819
        %907 = vmatpush.msra.mxu0 %v816
        %908 = vmatpush.msra.mxu0 %v813
        %909 = vmatpush.msra.mxu0 %v810
        %910 = vmatpush.msra.mxu0 %v807
        %911 = vmatpush.msra.mxu0 %v804
        %912 = vmatmul.f32.gmra.mxu0 %v800
        %v913 = vpop.f32.mrf.mxu0
        %v914 = vadd.f32 0.0, %v913
        %915 = vmatmul.f32.gmra.mxu0 %v801
        %v916 = vpop.f32.mrf.mxu0
        %v917 = vadd.f32 0.0, %v916
        %918 = vdwg.mxu0
        %v919 = vld [vmem:[#allocation11] sm:$0xff]
        %v920 = vld [vmem:[#allocation11 + $0x8] sm:$0xff]
        %v921 = vld [vmem:[#allocation11 + $0x10] sm:$0xff]
        %v922 = vld [vmem:[#allocation11 + $0x18] sm:$0xff]
        %v923 = vld [vmem:[#allocation11 + $0x20] sm:$0xff]
        %v924 = vld [vmem:[#allocation11 + $0x28] sm:$0xff]
        %v925 = vld [vmem:[#allocation11 + $0x30] sm:$0xff]
        %v926 = vld [vmem:[#allocation11 + $0x38] sm:$0xff]
        %v927 = vld [vmem:[#allocation11 + $0x40] sm:$0xff]
        %v928 = vld [vmem:[#allocation11 + $0x48] sm:$0xff]
        %v929 = vld [vmem:[#allocation11 + $0x50] sm:$0xff]
        %v930 = vld [vmem:[#allocation11 + $0x58] sm:$0xff]
        %v931 = vld [vmem:[#allocation11 + $0x60] sm:$0xff]
        %v932 = vld [vmem:[#allocation11 + $0x68] sm:$0xff]
        %v933 = vld [vmem:[#allocation11 + $0x70] sm:$0xff]
        %v934 = vld [vmem:[#allocation11 + $0x78] sm:$0xff]
        %vm935 = vcmask 261120
        %v937 = vsel %vm935, %v868, 0
        %v940 = vsel %vm935, %v871, 0
        %v943 = vsel %vm935, %v891, 0
        %v946 = vsel %vm935, %v894, 0
        %948 = vmatpush.xpose.msra.mxu0 0.0
        %949 = vmatpush.xpose.msra.mxu0 0.0
        %950 = vmatpush.xpose.msra.mxu0 0.0
        %951 = vmatpush.xpose.msra.mxu0 0.0
        %952 = vmatpush.xpose.msra.mxu0 0.0
        %953 = vmatpush.xpose.msra.mxu0 0.0
        %954 = vmatpush.xpose.msra.mxu0 0.0
        %955 = vmatpush.xpose.msra.mxu0 0.0
        %956 = vmatpush.xpose.msra.mxu0 0.0
        %957 = vmatpush.xpose.msra.mxu0 0.0
        %958 = vmatpush.xpose.msra.mxu0 0.0
        %959 = vmatpush.xpose.msra.mxu0 0.0
        %960 = vmatpush.xpose.msra.mxu0 0.0
        %961 = vmatpush.xpose.msra.mxu0 0.0
        %962 = vmatpush.xpose.msra.mxu0 %v946
        %963 = vmatpush.xpose.msra.mxu0 %v943
        %964 = vmatmul.f32.gmra.mxu0 %v937
        %v965 = vpop.f32.mrf.mxu0
        %v966 = vadd.f32 0.0, %v965
        %967 = vmatmul.f32.gmra.mxu0 %v940
        %v968 = vpop.f32.mrf.mxu0
        %v969 = vadd.f32 0.0, %v968
        %970 = vdwg.mxu0
        %v971 = vmul.f32 %v966, 0.17677669
        %v972 = vmul.f32 %v969, 0.17677669
        %vm973 = vcmask 72704
        %v974 = vsel %vm973, %v971, -inf
        %975 = vmax.xlane.f32.xlu0 %v974
        %v976 = vpop.xlane.xlu0 %975
        %vm977 = vcmask 65536
        %v978 = vsel %vm977, %v972, -inf
        %979 = vmax.xlane.f32.xlu0 %v978
        %v980 = vpop.xlane.xlu0 %979
        %v981 = vsub.f32 %v971, %v976
        %v982 = vsub.f32 %v972, %v980
        %v983 = vmul.f32 %v981, 1.442695
        %v984 = vpow.pop %v983
        %v985 = vmul.f32 %v982, 1.442695
        %v986 = vpow.pop %v985
        %v987 = vsel %vm973, %v984, 0.0
        %988 = vadd.xlane.f32.xlu0 %v987
        %v989 = vpop.xlane.xlu0 %988
        %v990 = vsel %vm977, %v986, 0.0
        %991 = vadd.xlane.f32.xlu0 %v990
        %v992 = vpop.xlane.xlu0 %991
        %v993 = vrcp.pop %v989
        %v994 = vrcp.pop %v992
        %v995 = vmul.f32 %v984, %v993
        %v996 = vmul.f32 %v986, %v994
        %v998 = vsel %vm935, %v914, 0
        %v1001 = vsel %vm935, %v917, 0
        %1003 = vmatpush.msra.mxu0 0.0
        %1004 = vmatpush.msra.mxu0 0.0
        %1005 = vmatpush.msra.mxu0 0.0
        %1006 = vmatpush.msra.mxu0 0.0
        %1007 = vmatpush.msra.mxu0 0.0
        %1008 = vmatpush.msra.mxu0 0.0
        %1009 = vmatpush.msra.mxu0 0.0
        %1010 = vmatpush.msra.mxu0 0.0
        %1011 = vmatpush.msra.mxu0 0.0
        %1012 = vmatpush.msra.mxu0 0.0
        %1013 = vmatpush.msra.mxu0 0.0
        %1014 = vmatpush.msra.mxu0 0.0
        %1015 = vmatpush.msra.mxu0 %v922
        %1016 = vmatpush.msra.mxu0 %v921
        %1017 = vmatpush.msra.mxu0 %v920
        %1018 = vmatpush.msra.mxu0 %v919
        %1019 = vmatmul.f32.gmra.mxu0 %v998
        %v1020 = vpop.f32.mrf.mxu0
        %v1021 = vadd.f32 0.0, %v1020
        %1022 = vmatmul.f32.gmra.mxu0 %v1001
        %v1023 = vpop.f32.mrf.mxu0
        %v1024 = vadd.f32 0.0, %v1023
        %1025 = vdwg.mxu0
        %1026 = vrot.lane.b32.xlu0 %v868, 96
        %v1027 = vpop.permute.xlu0 %1026
        %1028 = vrot.lane.b32.xlu0 %v871, 96
        %v1029 = vpop.permute.xlu0 %1028
        %1030 = vrot.lane.b32.xlu0 %v891, 96
        %v1031 = vpop.permute.xlu0 %1030
        %1032 = vrot.lane.b32.xlu0 %v894, 96
        %v1033 = vpop.permute.xlu0 %1032
        %v1034 = vsel %vm935, %v1027, 0
        %v1036 = vsel %vm935, %v1029, 0
        %v1038 = vsel %vm935, %v1031, 0
        %v1040 = vsel %vm935, %v1033, 0
        %1042 = vmatpush.xpose.msra.mxu0 0.0
        %1043 = vmatpush.xpose.msra.mxu0 0.0
        %1044 = vmatpush.xpose.msra.mxu0 0.0
        %1045 = vmatpush.xpose.msra.mxu0 0.0
        %1046 = vmatpush.xpose.msra.mxu0 0.0
        %1047 = vmatpush.xpose.msra.mxu0 0.0
        %1048 = vmatpush.xpose.msra.mxu0 0.0
        %1049 = vmatpush.xpose.msra.mxu0 0.0
        %1050 = vmatpush.xpose.msra.mxu0 0.0
        %1051 = vmatpush.xpose.msra.mxu0 0.0
        %1052 = vmatpush.xpose.msra.mxu0 0.0
        %1053 = vmatpush.xpose.msra.mxu0 0.0
        %1054 = vmatpush.xpose.msra.mxu0 0.0
        %1055 = vmatpush.xpose.msra.mxu0 0.0
        %1056 = vmatpush.xpose.msra.mxu0 %v1040
        %1057 = vmatpush.xpose.msra.mxu0 %v1038
        %1058 = vmatmul.f32.gmra.mxu0 %v1034
        %v1059 = vpop.f32.mrf.mxu0
        %v1060 = vadd.f32 0.0, %v1059
        %1061 = vmatmul.f32.gmra.mxu0 %v1036
        %v1062 = vpop.f32.mrf.mxu0
        %v1063 = vadd.f32 0.0, %v1062
        %1064 = vdwg.mxu0
        %v1065 = vmul.f32 %v1060, 0.17677669
        %v1066 = vmul.f32 %v1063, 0.17677669
        %v1067 = vsel %vm973, %v1065, -inf
        %1068 = vmax.xlane.f32.xlu0 %v1067
        %v1069 = vpop.xlane.xlu0 %1068
        %v1070 = vsel %vm977, %v1066, -inf
        %1071 = vmax.xlane.f32.xlu0 %v1070
        %v1072 = vpop.xlane.xlu0 %1071
        %v1073 = vsub.f32 %v1065, %v1069
        %v1074 = vsub.f32 %v1066, %v1072
        %v1075 = vmul.f32 %v1073, 1.442695
        %v1076 = vpow.pop %v1075
        %v1077 = vmul.f32 %v1074, 1.442695
        %v1078 = vpow.pop %v1077
        %v1079 = vsel %vm973, %v1076, 0.0
        %1080 = vadd.xlane.f32.xlu0 %v1079
        %v1081 = vpop.xlane.xlu0 %1080
        %v1082 = vsel %vm977, %v1078, 0.0
        %1083 = vadd.xlane.f32.xlu0 %v1082
        %v1084 = vpop.xlane.xlu0 %1083
        %v1085 = vrcp.pop %v1081
        %v1086 = vrcp.pop %v1084
        %v1087 = vmul.f32 %v1076, %v1085
        %v1088 = vmul.f32 %v1078, %v1086
        %1089 = vrot.lane.b32.xlu0 %v914, 96
        %v1090 = vpop.permute.xlu0 %1089
        %1091 = vrot.lane.b32.xlu0 %v917, 96
        %v1092 = vpop.permute.xlu0 %1091
        %v1093 = vsel %vm935, %v1090, 0
        %v1095 = vsel %vm935, %v1092, 0
        %1097 = vmatpush.msra.mxu0 0.0
        %1098 = vmatpush.msra.mxu0 0.0
        %1099 = vmatpush.msra.mxu0 0.0
        %1100 = vmatpush.msra.mxu0 0.0
        %1101 = vmatpush.msra.mxu0 0.0
        %1102 = vmatpush.msra.mxu0 0.0
        %1103 = vmatpush.msra.mxu0 0.0
        %1104 = vmatpush.msra.mxu0 0.0
        %1105 = vmatpush.msra.mxu0 0.0
        %1106 = vmatpush.msra.mxu0 0.0
        %1107 = vmatpush.msra.mxu0 0.0
        %1108 = vmatpush.msra.mxu0 0.0
        %1109 = vmatpush.msra.mxu0 %v926
        %1110 = vmatpush.msra.mxu0 %v925
        %1111 = vmatpush.msra.mxu0 %v924
        %1112 = vmatpush.msra.mxu0 %v923
        %1113 = vmatmul.f32.gmra.mxu0 %v1093
        %v1114 = vpop.f32.mrf.mxu0
        %v1115 = vadd.f32 0.0, %v1114
        %1116 = vmatmul.f32.gmra.mxu0 %v1095
        %v1117 = vpop.f32.mrf.mxu0
        %v1118 = vadd.f32 0.0, %v1117
        %1119 = vdwg.mxu0
        %v1121 = vsel %vm973, %v1087, 0
        %v1124 = vsel %vm973, %v1088, 0
        %v1127 = vsel %vm739, %v1118, 0
        %1129 = vmatpush.msra.mxu0 0.0
        %1130 = vmatpush.msra.mxu0 0.0
        %1131 = vmatpush.msra.mxu0 0.0
        %1132 = vmatpush.msra.mxu0 0.0
        %1133 = vmatpush.msra.mxu0 0.0
        %1134 = vmatpush.msra.mxu0 0.0
        %1135 = vmatpush.msra.mxu0 0.0
        %1136 = vmatpush.msra.mxu0 0.0
        %1137 = vmatpush.msra.mxu0 0.0
        %1138 = vmatpush.msra.mxu0 0.0
        %1139 = vmatpush.msra.mxu0 0.0
        %1140 = vmatpush.msra.mxu0 0.0
        %1141 = vmatpush.msra.mxu0 0.0
        %1142 = vmatpush.msra.mxu0 0.0
        %1143 = vmatpush.msra.mxu0 %v1127
        %1144 = vmatpush.msra.mxu0 %v1115
        %1145 = vmatmul.f32.gmra.mxu0 %v1121
        %v1146 = vpop.f32.mrf.mxu0
        %v1147 = vadd.f32 0.0, %v1146
        %1148 = vmatmul.f32.gmra.mxu0 %v1124
        %v1149 = vpop.f32.mrf.mxu0
        %v1150 = vadd.f32 0.0, %v1149
        %1151 = vdwg.mxu0
        %v1153 = vsel %vm973, %v995, 0
        %v1156 = vsel %vm973, %v996, 0
        %v1159 = vsel %vm739, %v1024, 0
        %1161 = vmatpush.msra.mxu0 0.0
        %1162 = vmatpush.msra.mxu0 0.0
        %1163 = vmatpush.msra.mxu0 0.0
        %1164 = vmatpush.msra.mxu0 0.0
        %1165 = vmatpush.msra.mxu0 0.0
        %1166 = vmatpush.msra.mxu0 0.0
        %1167 = vmatpush.msra.mxu0 0.0
        %1168 = vmatpush.msra.mxu0 0.0
        %1169 = vmatpush.msra.mxu0 0.0
        %1170 = vmatpush.msra.mxu0 0.0
        %1171 = vmatpush.msra.mxu0 0.0
        %1172 = vmatpush.msra.mxu0 0.0
        %1173 = vmatpush.msra.mxu0 0.0
        %1174 = vmatpush.msra.mxu0 0.0
        %1175 = vmatpush.msra.mxu0 %v1159
        %1176 = vmatpush.msra.mxu0 %v1021
        %1177 = vmatmul.f32.gmra.mxu0 %v1153
        %v1178 = vpop.f32.mrf.mxu0
        %v1179 = vadd.f32 %v1147, %v1178
        %1180 = vmatmul.f32.gmra.mxu0 %v1156
        %v1181 = vpop.f32.mrf.mxu0
        %v1182 = vadd.f32 %v1150, %v1181
        %1183 = vdwg.mxu0
        %1184 = vrot.lane.b32.xlu0 %v868, 64
        %v1185 = vpop.permute.xlu0 %1184
        %1186 = vrot.lane.b32.xlu0 %v871, 64
        %v1187 = vpop.permute.xlu0 %1186
        %1188 = vrot.lane.b32.xlu0 %v891, 64
        %v1189 = vpop.permute.xlu0 %1188
        %1190 = vrot.lane.b32.xlu0 %v894, 64
        %v1191 = vpop.permute.xlu0 %1190
        %v1192 = vsel %vm935, %v1185, 0
        %v1194 = vsel %vm935, %v1187, 0
        %v1196 = vsel %vm935, %v1189, 0
        %v1198 = vsel %vm935, %v1191, 0
        %1200 = vmatpush.xpose.msra.mxu0 0.0
        %1201 = vmatpush.xpose.msra.mxu0 0.0
        %1202 = vmatpush.xpose.msra.mxu0 0.0
        %1203 = vmatpush.xpose.msra.mxu0 0.0
        %1204 = vmatpush.xpose.msra.mxu0 0.0
        %1205 = vmatpush.xpose.msra.mxu0 0.0
        %1206 = vmatpush.xpose.msra.mxu0 0.0
        %1207 = vmatpush.xpose.msra.mxu0 0.0
        %1208 = vmatpush.xpose.msra.mxu0 0.0
        %1209 = vmatpush.xpose.msra.mxu0 0.0
        %1210 = vmatpush.xpose.msra.mxu0 0.0
        %1211 = vmatpush.xpose.msra.mxu0 0.0
        %1212 = vmatpush.xpose.msra.mxu0 0.0
        %1213 = vmatpush.xpose.msra.mxu0 0.0
        %1214 = vmatpush.xpose.msra.mxu0 %v1198
        %1215 = vmatpush.xpose.msra.mxu0 %v1196
        %1216 = vmatmul.f32.gmra.mxu0 %v1192
        %v1217 = vpop.f32.mrf.mxu0
        %v1218 = vadd.f32 0.0, %v1217
        %1219 = vmatmul.f32.gmra.mxu0 %v1194
        %v1220 = vpop.f32.mrf.mxu0
        %v1221 = vadd.f32 0.0, %v1220
        %1222 = vdwg.mxu0
        %v1223 = vmul.f32 %v1218, 0.17677669
        %v1224 = vmul.f32 %v1221, 0.17677669
        %v1225 = vsel %vm973, %v1223, -inf
        %1226 = vmax.xlane.f32.xlu0 %v1225
        %v1227 = vpop.xlane.xlu0 %1226
        %v1228 = vsel %vm977, %v1224, -inf
        %1229 = vmax.xlane.f32.xlu0 %v1228
        %v1230 = vpop.xlane.xlu0 %1229
        %v1231 = vsub.f32 %v1223, %v1227
        %v1232 = vsub.f32 %v1224, %v1230
        %v1233 = vmul.f32 %v1231, 1.442695
        %v1234 = vpow.pop %v1233
        %v1235 = vmul.f32 %v1232, 1.442695
        %v1236 = vpow.pop %v1235
        %v1237 = vsel %vm973, %v1234, 0.0
        %1238 = vadd.xlane.f32.xlu0 %v1237
        %v1239 = vpop.xlane.xlu0 %1238
        %v1240 = vsel %vm977, %v1236, 0.0
        %1241 = vadd.xlane.f32.xlu0 %v1240
        %v1242 = vpop.xlane.xlu0 %1241
        %v1243 = vrcp.pop %v1239
        %v1244 = vrcp.pop %v1242
        %v1245 = vmul.f32 %v1234, %v1243
        %v1246 = vmul.f32 %v1236, %v1244
        %1247 = vrot.lane.b32.xlu0 %v914, 64
        %v1248 = vpop.permute.xlu0 %1247
        %1249 = vrot.lane.b32.xlu0 %v917, 64
        %v1250 = vpop.permute.xlu0 %1249
        %v1251 = vsel %vm935, %v1248, 0
        %v1253 = vsel %vm935, %v1250, 0
        %1255 = vmatpush.msra.mxu0 0.0
        %1256 = vmatpush.msra.mxu0 0.0
        %1257 = vmatpush.msra.mxu0 0.0
        %1258 = vmatpush.msra.mxu0 0.0
        %1259 = vmatpush.msra.mxu0 0.0
        %1260 = vmatpush.msra.mxu0 0.0
        %1261 = vmatpush.msra.mxu0 0.0
        %1262 = vmatpush.msra.mxu0 0.0
        %1263 = vmatpush.msra.mxu0 0.0
        %1264 = vmatpush.msra.mxu0 0.0
        %1265 = vmatpush.msra.mxu0 0.0
        %1266 = vmatpush.msra.mxu0 0.0
        %1267 = vmatpush.msra.mxu0 %v930
        %1268 = vmatpush.msra.mxu0 %v929
        %1269 = vmatpush.msra.mxu0 %v928
        %1270 = vmatpush.msra.mxu0 %v927
        %1271 = vmatmul.f32.gmra.mxu0 %v1251
        %v1272 = vpop.f32.mrf.mxu0
        %v1273 = vadd.f32 0.0, %v1272
        %1274 = vmatmul.f32.gmra.mxu0 %v1253
        %v1275 = vpop.f32.mrf.mxu0
        %v1276 = vadd.f32 0.0, %v1275
        %1277 = vdwg.mxu0
        %v1279 = vsel %vm973, %v1245, 0
        %v1282 = vsel %vm973, %v1246, 0
        %v1285 = vsel %vm739, %v1276, 0
        %1287 = vmatpush.msra.mxu0 0.0
        %1288 = vmatpush.msra.mxu0 0.0
        %1289 = vmatpush.msra.mxu0 0.0
        %1290 = vmatpush.msra.mxu0 0.0
        %1291 = vmatpush.msra.mxu0 0.0
        %1292 = vmatpush.msra.mxu0 0.0
        %1293 = vmatpush.msra.mxu0 0.0
        %1294 = vmatpush.msra.mxu0 0.0
        %1295 = vmatpush.msra.mxu0 0.0
        %1296 = vmatpush.msra.mxu0 0.0
        %1297 = vmatpush.msra.mxu0 0.0
        %1298 = vmatpush.msra.mxu0 0.0
        %1299 = vmatpush.msra.mxu0 0.0
        %1300 = vmatpush.msra.mxu0 0.0
        %1301 = vmatpush.msra.mxu0 %v1285
        %1302 = vmatpush.msra.mxu0 %v1273
        %1303 = vmatmul.f32.gmra.mxu0 %v1279
        %v1304 = vpop.f32.mrf.mxu0
        %v1305 = vadd.f32 0.0, %v1304
        %1306 = vmatmul.f32.gmra.mxu0 %v1282
        %v1307 = vpop.f32.mrf.mxu0
        %v1308 = vadd.f32 0.0, %v1307
        %1309 = vdwg.mxu0
        %v1310 = vadd.f32 %v1179, %v1305
        %v1311 = vadd.f32 %v1182, %v1308
        %1312 = vrot.lane.b32.xlu0 %v868, 32
        %v1313 = vpop.permute.xlu0 %1312
        %1314 = vrot.lane.b32.xlu0 %v871, 32
        %v1315 = vpop.permute.xlu0 %1314
        %1316 = vrot.lane.b32.xlu0 %v891, 32
        %v1317 = vpop.permute.xlu0 %1316
        %1318 = vrot.lane.b32.xlu0 %v894, 32
        %v1319 = vpop.permute.xlu0 %1318
        %v1320 = vsel %vm935, %v1313, 0
        %v1322 = vsel %vm935, %v1315, 0
        %v1324 = vsel %vm935, %v1317, 0
        %v1326 = vsel %vm935, %v1319, 0
        %1328 = vmatpush.xpose.msra.mxu0 0.0
        %1329 = vmatpush.xpose.msra.mxu0 0.0
        %1330 = vmatpush.xpose.msra.mxu0 0.0
        %1331 = vmatpush.xpose.msra.mxu0 0.0
        %1332 = vmatpush.xpose.msra.mxu0 0.0
        %1333 = vmatpush.xpose.msra.mxu0 0.0
        %1334 = vmatpush.xpose.msra.mxu0 0.0
        %1335 = vmatpush.xpose.msra.mxu0 0.0
        %1336 = vmatpush.xpose.msra.mxu0 0.0
        %1337 = vmatpush.xpose.msra.mxu0 0.0
        %1338 = vmatpush.xpose.msra.mxu0 0.0
        %1339 = vmatpush.xpose.msra.mxu0 0.0
        %1340 = vmatpush.xpose.msra.mxu0 0.0
        %1341 = vmatpush.xpose.msra.mxu0 0.0
        %1342 = vmatpush.xpose.msra.mxu0 %v1326
        %1343 = vmatpush.xpose.msra.mxu0 %v1324
        %1344 = vmatmul.f32.gmra.mxu0 %v1320
        %v1345 = vpop.f32.mrf.mxu0
        %v1346 = vadd.f32 0.0, %v1345
        %1347 = vmatmul.f32.gmra.mxu0 %v1322
        %v1348 = vpop.f32.mrf.mxu0
        %v1349 = vadd.f32 0.0, %v1348
        %1350 = vdwg.mxu0
        %v1351 = vmul.f32 %v1346, 0.17677669
        %v1352 = vmul.f32 %v1349, 0.17677669
        %v1353 = vsel %vm973, %v1351, -inf
        %1354 = vmax.xlane.f32.xlu0 %v1353
        %v1355 = vpop.xlane.xlu0 %1354
        %v1356 = vsel %vm977, %v1352, -inf
        %1357 = vmax.xlane.f32.xlu0 %v1356
        %v1358 = vpop.xlane.xlu0 %1357
        %v1359 = vsub.f32 %v1351, %v1355
        %v1360 = vsub.f32 %v1352, %v1358
        %v1361 = vmul.f32 %v1359, 1.442695
        %v1362 = vpow.pop %v1361
        %v1363 = vmul.f32 %v1360, 1.442695
        %v1364 = vpow.pop %v1363
        %v1365 = vsel %vm973, %v1362, 0.0
        %1366 = vadd.xlane.f32.xlu0 %v1365
        %v1367 = vpop.xlane.xlu0 %1366
        %v1368 = vsel %vm977, %v1364, 0.0
        %1369 = vadd.xlane.f32.xlu0 %v1368
        %v1370 = vpop.xlane.xlu0 %1369
        %v1371 = vrcp.pop %v1367
        %v1372 = vrcp.pop %v1370
        %v1373 = vmul.f32 %v1362, %v1371
        %v1374 = vmul.f32 %v1364, %v1372
        %1375 = vrot.lane.b32.xlu0 %v914, 32
        %v1376 = vpop.permute.xlu0 %1375
        %1377 = vrot.lane.b32.xlu0 %v917, 32
        %v1378 = vpop.permute.xlu0 %1377
        %v1379 = vsel %vm935, %v1376, 0
        %v1381 = vsel %vm935, %v1378, 0
        %1383 = vmatpush.msra.mxu0 0.0
        %1384 = vmatpush.msra.mxu0 0.0
        %1385 = vmatpush.msra.mxu0 0.0
        %1386 = vmatpush.msra.mxu0 0.0
        %1387 = vmatpush.msra.mxu0 0.0
        %1388 = vmatpush.msra.mxu0 0.0
        %1389 = vmatpush.msra.mxu0 0.0
        %1390 = vmatpush.msra.mxu0 0.0
        %1391 = vmatpush.msra.mxu0 0.0
        %1392 = vmatpush.msra.mxu0 0.0
        %1393 = vmatpush.msra.mxu0 0.0
        %1394 = vmatpush.msra.mxu0 0.0
        %1395 = vmatpush.msra.mxu0 %v934
        %1396 = vmatpush.msra.mxu0 %v933
        %1397 = vmatpush.msra.mxu0 %v932
        %1398 = vmatpush.msra.mxu0 %v931
        %1399 = vmatmul.f32.gmra.mxu0 %v1379
        %v1400 = vpop.f32.mrf.mxu0
        %v1401 = vadd.f32 0.0, %v1400
        %1402 = vmatmul.f32.gmra.mxu0 %v1381
        %v1403 = vpop.f32.mrf.mxu0
        %v1404 = vadd.f32 0.0, %v1403
        %1405 = vdwg.mxu0
        %v1407 = vsel %vm973, %v1373, 0
        %v1410 = vsel %vm973, %v1374, 0
        %v1413 = vsel %vm739, %v1404, 0
        %1415 = vmatpush.msra.mxu0 0.0
        %1416 = vmatpush.msra.mxu0 0.0
        %1417 = vmatpush.msra.mxu0 0.0
        %1418 = vmatpush.msra.mxu0 0.0
        %1419 = vmatpush.msra.mxu0 0.0
        %1420 = vmatpush.msra.mxu0 0.0
        %1421 = vmatpush.msra.mxu0 0.0
        %1422 = vmatpush.msra.mxu0 0.0
        %1423 = vmatpush.msra.mxu0 0.0
        %1424 = vmatpush.msra.mxu0 0.0
        %1425 = vmatpush.msra.mxu0 0.0
        %1426 = vmatpush.msra.mxu0 0.0
        %1427 = vmatpush.msra.mxu0 0.0
        %1428 = vmatpush.msra.mxu0 0.0
        %1429 = vmatpush.msra.mxu0 %v1413
        %1430 = vmatpush.msra.mxu0 %v1401
        %1431 = vmatmul.f32.gmra.mxu0 %v1407
        %v1432 = vpop.f32.mrf.mxu0
        %v1433 = vadd.f32 0.0, %v1432
        %1434 = vmatmul.f32.gmra.mxu0 %v1410
        %v1435 = vpop.f32.mrf.mxu0
        %v1436 = vadd.f32 0.0, %v1435
        %1437 = vdwg.mxu0
        %v1438 = vadd.f32 %v1310, %v1433
        %v1439 = vadd.f32 %v1311, %v1436
        %v1440 = vld [vmem:[%s8] sm:$0x1]
        %v1442 = vperm.slane %v1440, 0
        %v1444 = vadd.f32 %v1438, %v1442
        %v1445 = vadd.f32 %v1439, %v1442
        %v1446 = vadd.f32 %v1444, %v740
        %v1447 = vadd.f32 %v1445, %v737
        %v1448 = vld [vmem:[%s9] sm:$0x1]
        %v1449 = vld [vmem:[#allocation13] sm:$0x1]
        %1450 = vadd.xlane.f32.xlu0 %v1446
        %v1451 = vpop.xlane.xlu0 %1450
        %v1452 = vsel %vm739, %v1447, 0.0
        %1453 = vadd.xlane.f32.xlu0 %v1452
        %v1454 = vpop.xlane.xlu0 %1453
        %v1455 = vmul.f32 %v1451, %v754
        %v1456 = vmul.f32 %v1454, %v754
        %v1457 = vsub.f32 %v1446, %v1455
        %v1458 = vsub.f32 %v1447, %v1456
        %v1459 = vmul.f32 %v1457, %v1457
        %v1460 = vmul.f32 %v1458, %v1458
        %1461 = vadd.xlane.f32.xlu0 %v1459
        %v1462 = vpop.xlane.xlu0 %1461
        %v1463 = vsel %vm739, %v1460, 0.0
        %1464 = vadd.xlane.f32.xlu0 %v1463
        %v1465 = vpop.xlane.xlu0 %1464
        %v1466 = vmul.f32 %v1462, %v754
        %v1467 = vmul.f32 %v1465, %v754
        %v1468 = vadd.f32 %v1466, 1e-05
        %v1469 = vadd.f32 %v1467, 1e-05
        %v1470 = vrsqrt.pop %v1468
        %v1471 = vmul.f32 %v1470, %v1468
        %v1472 = vmul.f32 %v1471, %v1470
        %v1473 = vmul.f32 0.5, %v1472
        %v1474 = vsub.f32 1.5, %v1473
        %v1475 = vmul.f32 %v1470, %v1474
        %vm1476 = vweird.f32 %v1468
        %vm1477 = vweird.f32 %v1470
        %vm1478 = vmor %vm1476, %vm1477
        %v1479 = vsel %vm1478, %v1470, %v1475
        %v1480 = vrsqrt.pop %v1469
        %v1481 = vmul.f32 %v1480, %v1469
        %v1482 = vmul.f32 %v1481, %v1480
        %v1483 = vmul.f32 0.5, %v1482
        %v1484 = vsub.f32 1.5, %v1483
        %v1485 = vmul.f32 %v1480, %v1484
        %vm1486 = vweird.f32 %v1469
        %vm1487 = vweird.f32 %v1480
        %vm1488 = vmor %vm1486, %vm1487
        %v1489 = vsel %vm1488, %v1480, %v1485
        %v1490 = vmul.f32 %v1457, %v1479
        %v1491 = vmul.f32 %v1458, %v1489
        %v1493 = vperm.slane %v1448, 0
        %v1495 = vmul.f32 %v1490, %v1493
        %v1496 = vmul.f32 %v1491, %v1493
        %v1498 = vperm.slane %v1449, 0
        %v1500 = vadd.f32 %v1495, %v1498
        %v1501 = vadd.f32 %v1496, %v1498
        %v1502 = vld [vmem:[#allocation14] sm:$0xff]
        %v1503 = vld [vmem:[#allocation14 + $0x8] sm:$0xff]
        %v1504 = vld [vmem:[#allocation14 + $0x10] sm:$0xff]
        %v1505 = vld [vmem:[#allocation14 + $0x18] sm:$0xff]
        %v1506 = vld [vmem:[#allocation14 + $0x20] sm:$0xff]
        %v1507 = vld [vmem:[#allocation14 + $0x28] sm:$0xff]
        %v1508 = vld [vmem:[#allocation14 + $0x30] sm:$0xff]
        %v1509 = vld [vmem:[#allocation14 + $0x38] sm:$0xff]
        %v1510 = vld [vmem:[#allocation14 + $0x40] sm:$0xff]
        %v1511 = vld [vmem:[#allocation14 + $0x48] sm:$0xff]
        %v1512 = vld [vmem:[#allocation14 + $0x50] sm:$0xff]
        %v1513 = vld [vmem:[#allocation14 + $0x58] sm:$0xff]
        %v1514 = vld [vmem:[#allocation14 + $0x60] sm:$0xff]
        %v1515 = vld [vmem:[#allocation14 + $0x68] sm:$0xff]
        %v1516 = vld [vmem:[#allocation14 + $0x70] sm:$0xff]
        %v1517 = vld [vmem:[#allocation14 + $0x78] sm:$0xff]
        %v1518 = vld [vmem:[%s12] sm:$0x1]
        %v1520 = vperm.slane %v1518, 0
        %1522 = vmatpush.msra.mxu0 %v1517
        %1523 = vmatpush.msra.mxu0 %v1516
        %1524 = vmatpush.msra.mxu0 %v1515
        %1525 = vmatpush.msra.mxu0 %v1514
        %1526 = vmatpush.msra.mxu0 %v1513
        %1527 = vmatpush.msra.mxu0 %v1512
        %1528 = vmatpush.msra.mxu0 %v1511
        %1529 = vmatpush.msra.mxu0 %v1510
        %1530 = vmatpush.msra.mxu0 %v1509
        %1531 = vmatpush.msra.mxu0 %v1508
        %1532 = vmatpush.msra.mxu0 %v1507
        %1533 = vmatpush.msra.mxu0 %v1506
        %1534 = vmatpush.msra.mxu0 %v1505
        %1535 = vmatpush.msra.mxu0 %v1504
        %1536 = vmatpush.msra.mxu0 %v1503
        %1537 = vmatpush.msra.mxu0 %v1502
        %1538 = vmatmul.f32.gmra.mxu0 %v1500
        %v1539 = vpop.f32.mrf.mxu0
        %v1540 = vadd.f32 %v1520, %v1539
        %1541 = vmatmul.f32.gmra.mxu0 %v1501
        %v1542 = vpop.f32.mrf.mxu0
        %v1543 = vadd.f32 %v1520, %v1542
        %1544 = vdwg.mxu0
        %v1545 = vmul.f32 %v1540, 0.5
        %v1546 = vmul.f32 %v1543, 0.5
        %v1547 = vmul.f32 %v1540, 0.70710677
        %v1548 = vmul.f32 %v1543, 0.70710677
        %v1549 = vmul.f32 %v1547, %v1547
        %v1550 = vmin.f32 16.0, %v1549
        %v1551 = vmul.f32 %v1550, 2.1237322e-06
        %v1552 = vadd.f32 %v1551, 0.00028619796
        %v1553 = vmul.f32 %v1550, %v1552
        %v1554 = vadd.f32 %v1553, 0.0036580483
        %v1555 = vmul.f32 %v1550, %v1554
        %v1556 = vadd.f32 %v1555, 0.05243302
        %v1557 = vmul.f32 %v1550, %v1556
        %v1558 = vadd.f32 %v1557, 0.18741608
        %v1559 = vmul.f32 %v1550, %v1558
        %v1560 = vadd.f32 %v1559, 1.1283791
        %v1561 = vmul.f32 %v1547, %v1560
        %v1562 = vmul.f32 %v1550, 3.8918573e-05
        %v1563 = vadd.f32 %v1562, 0.001143296
        %v1564 = vmul.f32 %v1550, %v1563
        %v1565 = vadd.f32 %v1564, 0.014752088
        %v1566 = vmul.f32 %v1550, %v1565
        %v1567 = vadd.f32 %v1566, 0.112945676
        %v1568 = vmul.f32 %v1550, %v1567
        %v1569 = vadd.f32 %v1568, 0.4994258
        %v1570 = vmul.f32 %v1550, %v1569
        %v1571 = vadd.f32 %v1570, 1.0
        %v1572 = vrcp.pop %v1571
        %v1573 = vmul.f32 %v1571, %v1572
        %v1574 = vsub.f32 1.0, %v1573
        %v1575 = vmul.f32 %v1572, %v1574
        %v1576 = vadd.f32 %v1572, %v1575
        %vm1577 = vweird.f32 %v1571
        %vm1578 = vweird.f32 %v1572
        %vm1579 = vmor %vm1577, %vm1578
        %v1580 = vsel %vm1579, %v1572, %v1576
        %v1581 = vand.u32 2147483647, %v1571
        %vm1582 = vcmp.eq.f32.partialorder %v1581, 8.507059e+37
        %v1583 = vand.u32 %v1571, 2147483648
        %v1584 = vor.u32 1.1754944e-38, %v1583
        %v1585 = vsel %vm1582, %v1584, %v1580
        %v1586 = vmul.f32 %v1561, %v1585
        %v1587 = vmin.f32 %v1586, 1.0
        %v1588 = vmax.f32 %v1587, -1.0
        %v1589 = vmul.f32 %v1548, %v1548
        %v1590 = vmin.f32 16.0, %v1589
        %v1591 = vmul.f32 %v1590, 2.1237322e-06
        %v1592 = vadd.f32 %v1591, 0.00028619796
        %v1593 = vmul.f32 %v1590, %v1592
        %v1594 = vadd.f32 %v1593, 0.0036580483
        %v1595 = vmul.f32 %v1590, %v1594
        %v1596 = vadd.f32 %v1595, 0.05243302
        %v1597 = vmul.f32 %v1590, %v1596
        %v1598 = vadd.f32 %v1597, 0.18741608
        %v1599 = vmul.f32 %v1590, %v1598
        %v1600 = vadd.f32 %v1599, 1.1283791
        %v1601 = vmul.f32 %v1548, %v1600
        %v1602 = vmul.f32 %v1590, 3.8918573e-05
        %v1603 = vadd.f32 %v1602, 0.001143296
        %v1604 = vmul.f32 %v1590, %v1603
        %v1605 = vadd.f32 %v1604, 0.014752088
        %v1606 = vmul.f32 %v1590, %v1605
        %v1607 = vadd.f32 %v1606, 0.112945676
        %v1608 = vmul.f32 %v1590, %v1607
        %v1609 = vadd.f32 %v1608, 0.4994258
        %v1610 = vmul.f32 %v1590, %v1609
        %v1611 = vadd.f32 %v1610, 1.0
        %v1612 = vrcp.pop %v1611
        %v1613 = vmul.f32 %v1611, %v1612
        %v1614 = vsub.f32 1.0, %v1613
        %v1615 = vmul.f32 %v1612, %v1614
        %v1616 = vadd.f32 %v1612, %v1615
        %vm1617 = vweird.f32 %v1611
        %vm1618 = vweird.f32 %v1612
        %vm1619 = vmor %vm1617, %vm1618
        %v1620 = vsel %vm1619, %v1612, %v1616
        %v1621 = vand.u32 2147483647, %v1611
        %vm1622 = vcmp.eq.f32.partialorder %v1621, 8.507059e+37
        %v1623 = vand.u32 %v1611, 2147483648
        %v1624 = vor.u32 1.1754944e-38, %v1623
        %v1625 = vsel %vm1622, %v1624, %v1620
        %v1626 = vmul.f32 %v1601, %v1625
        %v1627 = vmin.f32 %v1626, 1.0
        %v1628 = vmax.f32 %v1627, -1.0
        %v1629 = vadd.f32 %v1588, 1.0
        %v1630 = vadd.f32 %v1628, 1.0
        %v1631 = vmul.f32 %v1545, %v1629
        %v1632 = vmul.f32 %v1546, %v1630
        %v1633 = vld [vmem:[#allocation16] sm:$0xff]
        %v1634 = vld [vmem:[#allocation16 + $0x8] sm:$0xff]
        %v1635 = vld [vmem:[#allocation16 + $0x10] sm:$0xff]
        %v1636 = vld [vmem:[#allocation16 + $0x18] sm:$0xff]
        %v1637 = vld [vmem:[#allocation16 + $0x20] sm:$0xff]
        %v1638 = vld [vmem:[#allocation16 + $0x28] sm:$0xff]
        %v1639 = vld [vmem:[#allocation16 + $0x30] sm:$0xff]
        %v1640 = vld [vmem:[#allocation16 + $0x38] sm:$0xff]
        %v1641 = vld [vmem:[#allocation16 + $0x40] sm:$0xff]
        %v1642 = vld [vmem:[#allocation16 + $0x48] sm:$0xff]
        %v1643 = vld [vmem:[#allocation16 + $0x50] sm:$0xff]
        %v1644 = vld [vmem:[#allocation16 + $0x58] sm:$0xff]
        %v1645 = vld [vmem:[#allocation16 + $0x60] sm:$0xff]
        %v1646 = vld [vmem:[#allocation16 + $0x68] sm:$0xff]
        %v1647 = vld [vmem:[#allocation16 + $0x70] sm:$0xff]
        %v1648 = vld [vmem:[#allocation16 + $0x78] sm:$0xff]
        %v1649 = vld [vmem:[%s14] sm:$0x1]
        %v1651 = vperm.slane %v1649, 0
        %1653 = vmatpush.msra.mxu0 %v1648
        %1654 = vmatpush.msra.mxu0 %v1647
        %1655 = vmatpush.msra.mxu0 %v1646
        %1656 = vmatpush.msra.mxu0 %v1645
        %1657 = vmatpush.msra.mxu0 %v1644
        %1658 = vmatpush.msra.mxu0 %v1643
        %1659 = vmatpush.msra.mxu0 %v1642
        %1660 = vmatpush.msra.mxu0 %v1641
        %1661 = vmatpush.msra.mxu0 %v1640
        %1662 = vmatpush.msra.mxu0 %v1639
        %1663 = vmatpush.msra.mxu0 %v1638
        %1664 = vmatpush.msra.mxu0 %v1637
        %1665 = vmatpush.msra.mxu0 %v1636
        %1666 = vmatpush.msra.mxu0 %v1635
        %1667 = vmatpush.msra.mxu0 %v1634
        %1668 = vmatpush.msra.mxu0 %v1633
        %1669 = vmatmul.f32.gmra.mxu0 %v1631
        %v1670 = vpop.f32.mrf.mxu0
        %v1671 = vadd.f32 %v1651, %v1670
        %1672 = vmatmul.f32.gmra.mxu0 %v1632
        %v1673 = vpop.f32.mrf.mxu0
        %v1674 = vadd.f32 %v1651, %v1673
        %1675 = vdwg.mxu0
        %v1676 = vadd.f32 %v1671, %v1446
        %v1677 = vadd.f32 %v1674, %v1447
        %s1678 = scalar_lea.vmem %s4, 1
        %v1679 = vld [vmem:[%s1678] sm:$0x1]
        %s1680 = scalar_lea.vmem %s5, 1
        %v1681 = vld [vmem:[%s1680] sm:$0x1]
        %1682 = vadd.xlane.f32.xlu0 %v1676
        %v1683 = vpop.xlane.xlu0 %1682
        %v1684 = vsel %vm739, %v1677, 0.0
        %1685 = vadd.xlane.f32.xlu0 %v1684
        %v1686 = vpop.xlane.xlu0 %1685
        %v1687 = vmul.f32 %v1683, %v754
        %v1688 = vmul.f32 %v1686, %v754
        %v1689 = vsub.f32 %v1676, %v1687
        %v1690 = vsub.f32 %v1677, %v1688
        %v1691 = vmul.f32 %v1689, %v1689
        %v1692 = vmul.f32 %v1690, %v1690
        %1693 = vadd.xlane.f32.xlu0 %v1691
        %v1694 = vpop.xlane.xlu0 %1693
        %v1695 = vsel %vm739, %v1692, 0.0
        %1696 = vadd.xlane.f32.xlu0 %v1695
        %v1697 = vpop.xlane.xlu0 %1696
        %v1698 = vmul.f32 %v1694, %v754
        %v1699 = vmul.f32 %v1697, %v754
        %v1700 = vadd.f32 %v1698, 1e-05
        %v1701 = vadd.f32 %v1699, 1e-05
        %v1702 = vrsqrt.pop %v1700
        %v1703 = vmul.f32 %v1702, %v1700
        %v1704 = vmul.f32 %v1703, %v1702
        %v1705 = vmul.f32 0.5, %v1704
        %v1706 = vsub.f32 1.5, %v1705
        %v1707 = vmul.f32 %v1702, %v1706
        %vm1708 = vweird.f32 %v1700
        %vm1709 = vweird.f32 %v1702
        %vm1710 = vmor %vm1708, %vm1709
        %v1711 = vsel %vm1710, %v1702, %v1707
        %v1712 = vrsqrt.pop %v1701
        %v1713 = vmul.f32 %v1712, %v1701
        %v1714 = vmul.f32 %v1713, %v1712
        %v1715 = vmul.f32 0.5, %v1714
        %v1716 = vsub.f32 1.5, %v1715
        %v1717 = vmul.f32 %v1712, %v1716
        %vm1718 = vweird.f32 %v1701
        %vm1719 = vweird.f32 %v1712
        %vm1720 = vmor %vm1718, %vm1719
        %v1721 = vsel %vm1720, %v1712, %v1717
        %v1722 = vmul.f32 %v1689, %v1711
        %v1723 = vmul.f32 %v1690, %v1721
        %v1725 = vperm.slane %v1679, 0
        %v1727 = vmul.f32 %v1722, %v1725
        %v1728 = vmul.f32 %v1723, %v1725
        %v1730 = vperm.slane %v1681, 0
        %v1732 = vadd.f32 %v1727, %v1730
        %v1733 = vadd.f32 %v1728, %v1730
        %s1734 = scalar_lea.vmem [#allocation10], 384
        %v1735 = vld [vmem:[%s1734] sm:$0xff]
        %v1736 = vld [vmem:[%s1734 + $0x8] sm:$0xff]
        %v1737 = vld [vmem:[%s1734 + $0x10] sm:$0xff]
        %v1738 = vld [vmem:[%s1734 + $0x18] sm:$0xff]
        %v1739 = vld [vmem:[%s1734 + $0x20] sm:$0xff]
        %v1740 = vld [vmem:[%s1734 + $0x28] sm:$0xff]
        %v1741 = vld [vmem:[%s1734 + $0x30] sm:$0xff]
        %v1742 = vld [vmem:[%s1734 + $0x38] sm:$0xff]
        %v1743 = vld [vmem:[%s1734 + $0x40] sm:$0xff]
        %v1744 = vld [vmem:[%s1734 + $0x48] sm:$0xff]
        %v1745 = vld [vmem:[%s1734 + $0x50] sm:$0xff]
        %v1746 = vld [vmem:[%s1734 + $0x58] sm:$0xff]
        %v1747 = vld [vmem:[%s1734 + $0x60] sm:$0xff]
        %v1748 = vld [vmem:[%s1734 + $0x68] sm:$0xff]
        %v1749 = vld [vmem:[%s1734 + $0x70] sm:$0xff]
        %v1750 = vld [vmem:[%s1734 + $0x78] sm:$0xff]
        %v1751 = vld [vmem:[%s1734 + $0x80] sm:$0xff]
        %v1752 = vld [vmem:[%s1734 + $0x88] sm:$0xff]
        %v1753 = vld [vmem:[%s1734 + $0x90] sm:$0xff]
        %v1754 = vld [vmem:[%s1734 + $0x98] sm:$0xff]
        %v1755 = vld [vmem:[%s1734 + $0xa0] sm:$0xff]
        %v1756 = vld [vmem:[%s1734 + $0xa8] sm:$0xff]
        %v1757 = vld [vmem:[%s1734 + $0xb0] sm:$0xff]
        %v1758 = vld [vmem:[%s1734 + $0xb8] sm:$0xff]
        %v1759 = vld [vmem:[%s1734 + $0xc0] sm:$0xff]
        %v1760 = vld [vmem:[%s1734 + $0xc8] sm:$0xff]
        %v1761 = vld [vmem:[%s1734 + $0xd0] sm:$0xff]
        %v1762 = vld [vmem:[%s1734 + $0xd8] sm:$0xff]
        %v1763 = vld [vmem:[%s1734 + $0xe0] sm:$0xff]
        %v1764 = vld [vmem:[%s1734 + $0xe8] sm:$0xff]
        %v1765 = vld [vmem:[%s1734 + $0xf0] sm:$0xff]
        %v1766 = vld [vmem:[%s1734 + $0xf8] sm:$0xff]
        %v1767 = vld [vmem:[%s1734 + $0x100] sm:$0xff]
        %v1768 = vld [vmem:[%s1734 + $0x108] sm:$0xff]
        %v1769 = vld [vmem:[%s1734 + $0x110] sm:$0xff]
        %v1770 = vld [vmem:[%s1734 + $0x118] sm:$0xff]
        %v1771 = vld [vmem:[%s1734 + $0x120] sm:$0xff]
        %v1772 = vld [vmem:[%s1734 + $0x128] sm:$0xff]
        %v1773 = vld [vmem:[%s1734 + $0x130] sm:$0xff]
        %v1774 = vld [vmem:[%s1734 + $0x138] sm:$0xff]
        %v1775 = vld [vmem:[%s1734 + $0x140] sm:$0xff]
        %v1776 = vld [vmem:[%s1734 + $0x148] sm:$0xff]
        %v1777 = vld [vmem:[%s1734 + $0x150] sm:$0xff]
        %v1778 = vld [vmem:[%s1734 + $0x158] sm:$0xff]
        %v1779 = vld [vmem:[%s1734 + $0x160] sm:$0xff]
        %v1780 = vld [vmem:[%s1734 + $0x168] sm:$0xff]
        %v1781 = vld [vmem:[%s1734 + $0x170] sm:$0xff]
        %v1782 = vld [vmem:[%s1734 + $0x178] sm:$0xff]
        %1783 = vmatpush.msra.mxu0 %v1780
        %1784 = vmatpush.msra.mxu0 %v1777
        %1785 = vmatpush.msra.mxu0 %v1774
        %1786 = vmatpush.msra.mxu0 %v1771
        %1787 = vmatpush.msra.mxu0 %v1768
        %1788 = vmatpush.msra.mxu0 %v1765
        %1789 = vmatpush.msra.mxu0 %v1762
        %1790 = vmatpush.msra.mxu0 %v1759
        %1791 = vmatpush.msra.mxu0 %v1756
        %1792 = vmatpush.msra.mxu0 %v1753
        %1793 = vmatpush.msra.mxu0 %v1750
        %1794 = vmatpush.msra.mxu0 %v1747
        %1795 = vmatpush.msra.mxu0 %v1744
        %1796 = vmatpush.msra.mxu0 %v1741
        %1797 = vmatpush.msra.mxu0 %v1738
        %1798 = vmatpush.msra.mxu0 %v1735
        %1799 = vmatmul.f32.gmra.mxu0 %v1732
        %v1800 = vpop.f32.mrf.mxu0
        %v1801 = vadd.f32 0.0, %v1800
        %1802 = vmatmul.f32.gmra.mxu0 %v1733
        %v1803 = vpop.f32.mrf.mxu0
        %v1804 = vadd.f32 0.0, %v1803
        %1805 = vdwg.mxu0
        %1806 = vmatpush.msra.mxu0 %v1781
        %1807 = vmatpush.msra.mxu0 %v1778
        %1808 = vmatpush.msra.mxu0 %v1775
        %1809 = vmatpush.msra.mxu0 %v1772
        %1810 = vmatpush.msra.mxu0 %v1769
        %1811 = vmatpush.msra.mxu0 %v1766
        %1812 = vmatpush.msra.mxu0 %v1763
        %1813 = vmatpush.msra.mxu0 %v1760
        %1814 = vmatpush.msra.mxu0 %v1757
        %1815 = vmatpush.msra.mxu0 %v1754
        %1816 = vmatpush.msra.mxu0 %v1751
        %1817 = vmatpush.msra.mxu0 %v1748
        %1818 = vmatpush.msra.mxu0 %v1745
        %1819 = vmatpush.msra.mxu0 %v1742
        %1820 = vmatpush.msra.mxu0 %v1739
        %1821 = vmatpush.msra.mxu0 %v1736
        %1822 = vmatmul.f32.gmra.mxu0 %v1732
        %v1823 = vpop.f32.mrf.mxu0
        %v1824 = vadd.f32 0.0, %v1823
        %1825 = vmatmul.f32.gmra.mxu0 %v1733
        %v1826 = vpop.f32.mrf.mxu0
        %v1827 = vadd.f32 0.0, %v1826
        %1828 = vdwg.mxu0
        %1829 = vmatpush.msra.mxu0 %v1782
        %1830 = vmatpush.msra.mxu0 %v1779
        %1831 = vmatpush.msra.mxu0 %v1776
        %1832 = vmatpush.msra.mxu0 %v1773
        %1833 = vmatpush.msra.mxu0 %v1770
        %1834 = vmatpush.msra.mxu0 %v1767
        %1835 = vmatpush.msra.mxu0 %v1764
        %1836 = vmatpush.msra.mxu0 %v1761
        %1837 = vmatpush.msra.mxu0 %v1758
        %1838 = vmatpush.msra.mxu0 %v1755
        %1839 = vmatpush.msra.mxu0 %v1752
        %1840 = vmatpush.msra.mxu0 %v1749
        %1841 = vmatpush.msra.mxu0 %v1746
        %1842 = vmatpush.msra.mxu0 %v1743
        %1843 = vmatpush.msra.mxu0 %v1740
        %1844 = vmatpush.msra.mxu0 %v1737
        %1845 = vmatmul.f32.gmra.mxu0 %v1732
        %v1846 = vpop.f32.mrf.mxu0
        %v1847 = vadd.f32 0.0, %v1846
        %1848 = vmatmul.f32.gmra.mxu0 %v1733
        %v1849 = vpop.f32.mrf.mxu0
        %v1850 = vadd.f32 0.0, %v1849
        %1851 = vdwg.mxu0
        %s1852 = scalar_lea.vmem [#allocation11], 128
        %v1853 = vld [vmem:[%s1852] sm:$0xff]
        %v1854 = vld [vmem:[%s1852 + $0x8] sm:$0xff]
        %v1855 = vld [vmem:[%s1852 + $0x10] sm:$0xff]
        %v1856 = vld [vmem:[%s1852 + $0x18] sm:$0xff]
        %v1857 = vld [vmem:[%s1852 + $0x20] sm:$0xff]
        %v1858 = vld [vmem:[%s1852 + $0x28] sm:$0xff]
        %v1859 = vld [vmem:[%s1852 + $0x30] sm:$0xff]
        %v1860 = vld [vmem:[%s1852 + $0x38] sm:$0xff]
        %v1861 = vld [vmem:[%s1852 + $0x40] sm:$0xff]
        %v1862 = vld [vmem:[%s1852 + $0x48] sm:$0xff]
        %v1863 = vld [vmem:[%s1852 + $0x50] sm:$0xff]
        %v1864 = vld [vmem:[%s1852 + $0x58] sm:$0xff]
        %v1865 = vld [vmem:[%s1852 + $0x60] sm:$0xff]
        %v1866 = vld [vmem:[%s1852 + $0x68] sm:$0xff]
        %v1867 = vld [vmem:[%s1852 + $0x70] sm:$0xff]
        %v1868 = vld [vmem:[%s1852 + $0x78] sm:$0xff]
        %v1870 = vsel %vm935, %v1801, 0
        %v1873 = vsel %vm935, %v1804, 0
        %v1876 = vsel %vm935, %v1824, 0
        %v1879 = vsel %vm935, %v1827, 0
        %1881 = vmatpush.xpose.msra.mxu0 0.0
        %1882 = vmatpush.xpose.msra.mxu0 0.0
        %1883 = vmatpush.xpose.msra.mxu0 0.0
        %1884 = vmatpush.xpose.msra.mxu0 0.0
        %1885 = vmatpush.xpose.msra.mxu0 0.0
        %1886 = vmatpush.xpose.msra.mxu0 0.0
        %1887 = vmatpush.xpose.msra.mxu0 0.0
        %1888 = vmatpush.xpose.msra.mxu0 0.0
        %1889 = vmatpush.xpose.msra.mxu0 0.0
        %1890 = vmatpush.xpose.msra.mxu0 0.0
        %1891 = vmatpush.xpose.msra.mxu0 0.0
        %1892 = vmatpush.xpose.msra.mxu0 0.0
        %1893 = vmatpush.xpose.msra.mxu0 0.0
        %1894 = vmatpush.xpose.msra.mxu0 0.0
        %1895 = vmatpush.xpose.msra.mxu0 %v1879
        %1896 = vmatpush.xpose.msra.mxu0 %v1876
        %1897 = vmatmul.f32.gmra.mxu0 %v1870
        %v1898 = vpop.f32.mrf.mxu0
        %v1899 = vadd.f32 0.0, %v1898
        %1900 = vmatmul.f32.gmra.mxu0 %v1873
        %v1901 = vpop.f32.mrf.mxu0
        %v1902 = vadd.f32 0.0, %v1901
        %1903 = vdwg.mxu0
        %v1904 = vmul.f32 %v1899, 0.17677669
        %v1905 = vmul.f32 %v1902, 0.17677669
        %v1906 = vsel %vm973, %v1904, -inf
        %1907 = vmax.xlane.f32.xlu0 %v1906
        %v1908 = vpop.xlane.xlu0 %1907
        %v1909 = vsel %vm977, %v1905, -inf
        %1910 = vmax.xlane.f32.xlu0 %v1909
        %v1911 = vpop.xlane.xlu0 %1910
        %v1912 = vsub.f32 %v1904, %v1908
        %v1913 = vsub.f32 %v1905, %v1911
        %v1914 = vmul.f32 %v1912, 1.442695
        %v1915 = vpow.pop %v1914
        %v1916 = vmul.f32 %v1913, 1.442695
        %v1917 = vpow.pop %v1916
        %v1918 = vsel %vm973, %v1915, 0.0
        %1919 = vadd.xlane.f32.xlu0 %v1918
        %v1920 = vpop.xlane.xlu0 %1919
        %v1921 = vsel %vm977, %v1917, 0.0
        %1922 = vadd.xlane.f32.xlu0 %v1921
        %v1923 = vpop.xlane.xlu0 %1922
        %v1924 = vrcp.pop %v1920
        %v1925 = vrcp.pop %v1923
        %v1926 = vmul.f32 %v1915, %v1924
        %v1927 = vmul.f32 %v1917, %v1925
        %v1929 = vsel %vm935, %v1847, 0
        %v1932 = vsel %vm935, %v1850, 0
        %1934 = vmatpush.msra.mxu0 0.0
        %1935 = vmatpush.msra.mxu0 0.0
        %1936 = vmatpush.msra.mxu0 0.0
        %1937 = vmatpush.msra.mxu0 0.0
        %1938 = vmatpush.msra.mxu0 0.0
        %1939 = vmatpush.msra.mxu0 0.0
        %1940 = vmatpush.msra.mxu0 0.0
        %1941 = vmatpush.msra.mxu0 0.0
        %1942 = vmatpush.msra.mxu0 0.0
        %1943 = vmatpush.msra.mxu0 0.0
        %1944 = vmatpush.msra.mxu0 0.0
        %1945 = vmatpush.msra.mxu0 0.0
        %1946 = vmatpush.msra.mxu0 %v1856
        %1947 = vmatpush.msra.mxu0 %v1855
        %1948 = vmatpush.msra.mxu0 %v1854
        %1949 = vmatpush.msra.mxu0 %v1853
        %1950 = vmatmul.f32.gmra.mxu0 %v1929
        %v1951 = vpop.f32.mrf.mxu0
        %v1952 = vadd.f32 0.0, %v1951
        %1953 = vmatmul.f32.gmra.mxu0 %v1932
        %v1954 = vpop.f32.mrf.mxu0
        %v1955 = vadd.f32 0.0, %v1954
        %1956 = vdwg.mxu0
        %1957 = vrot.lane.b32.xlu0 %v1801, 96
        %v1958 = vpop.permute.xlu0 %1957
        %1959 = vrot.lane.b32.xlu0 %v1804, 96
        %v1960 = vpop.permute.xlu0 %1959
        %1961 = vrot.lane.b32.xlu0 %v1824, 96
        %v1962 = vpop.permute.xlu0 %1961
        %1963 = vrot.lane.b32.xlu0 %v1827, 96
        %v1964 = vpop.permute.xlu0 %1963
        %v1965 = vsel %vm935, %v1958, 0
        %v1967 = vsel %vm935, %v1960, 0
        %v1969 = vsel %vm935, %v1962, 0
        %v1971 = vsel %vm935, %v1964, 0
        %1973 = vmatpush.xpose.msra.mxu0 0.0
        %1974 = vmatpush.xpose.msra.mxu0 0.0
        %1975 = vmatpush.xpose.msra.mxu0 0.0
        %1976 = vmatpush.xpose.msra.mxu0 0.0
        %1977 = vmatpush.xpose.msra.mxu0 0.0
        %1978 = vmatpush.xpose.msra.mxu0 0.0
        %1979 = vmatpush.xpose.msra.mxu0 0.0
        %1980 = vmatpush.xpose.msra.mxu0 0.0
        %1981 = vmatpush.xpose.msra.mxu0 0.0
        %1982 = vmatpush.xpose.msra.mxu0 0.0
        %1983 = vmatpush.xpose.msra.mxu0 0.0
        %1984 = vmatpush.xpose.msra.mxu0 0.0
        %1985 = vmatpush.xpose.msra.mxu0 0.0
        %1986 = vmatpush.xpose.msra.mxu0 0.0
        %1987 = vmatpush.xpose.msra.mxu0 %v1971
        %1988 = vmatpush.xpose.msra.mxu0 %v1969
        %1989 = vmatmul.f32.gmra.mxu0 %v1965
        %v1990 = vpop.f32.mrf.mxu0
        %v1991 = vadd.f32 0.0, %v1990
        %1992 = vmatmul.f32.gmra.mxu0 %v1967
        %v1993 = vpop.f32.mrf.mxu0
        %v1994 = vadd.f32 0.0, %v1993
        %1995 = vdwg.mxu0
        %v1996 = vmul.f32 %v1991, 0.17677669
        %v1997 = vmul.f32 %v1994, 0.17677669
        %v1998 = vsel %vm973, %v1996, -inf
        %1999 = vmax.xlane.f32.xlu0 %v1998
        %v2000 = vpop.xlane.xlu0 %1999
        %v2001 = vsel %vm977, %v1997, -inf
        %2002 = vmax.xlane.f32.xlu0 %v2001
        %v2003 = vpop.xlane.xlu0 %2002
        %v2004 = vsub.f32 %v1996, %v2000
        %v2005 = vsub.f32 %v1997, %v2003
        %v2006 = vmul.f32 %v2004, 1.442695
        %v2007 = vpow.pop %v2006
        %v2008 = vmul.f32 %v2005, 1.442695
        %v2009 = vpow.pop %v2008
        %v2010 = vsel %vm973, %v2007, 0.0
        %2011 = vadd.xlane.f32.xlu0 %v2010
        %v2012 = vpop.xlane.xlu0 %2011
        %v2013 = vsel %vm977, %v2009, 0.0
        %2014 = vadd.xlane.f32.xlu0 %v2013
        %v2015 = vpop.xlane.xlu0 %2014
        %v2016 = vrcp.pop %v2012
        %v2017 = vrcp.pop %v2015
        %v2018 = vmul.f32 %v2007, %v2016
        %v2019 = vmul.f32 %v2009, %v2017
        %2020 = vrot.lane.b32.xlu0 %v1847, 96
        %v2021 = vpop.permute.xlu0 %2020
        %2022 = vrot.lane.b32.xlu0 %v1850, 96
        %v2023 = vpop.permute.xlu0 %2022
        %v2024 = vsel %vm935, %v2021, 0
        %v2026 = vsel %vm935, %v2023, 0
        %2028 = vmatpush.msra.mxu0 0.0
        %2029 = vmatpush.msra.mxu0 0.0
        %2030 = vmatpush.msra.mxu0 0.0
        %2031 = vmatpush.msra.mxu0 0.0
        %2032 = vmatpush.msra.mxu0 0.0
        %2033 = vmatpush.msra.mxu0 0.0
        %2034 = vmatpush.msra.mxu0 0.0
        %2035 = vmatpush.msra.mxu0 0.0
        %2036 = vmatpush.msra.mxu0 0.0
        %2037 = vmatpush.msra.mxu0 0.0
        %2038 = vmatpush.msra.mxu0 0.0
        %2039 = vmatpush.msra.mxu0 0.0
        %2040 = vmatpush.msra.mxu0 %v1860
        %2041 = vmatpush.msra.mxu0 %v1859
        %2042 = vmatpush.msra.mxu0 %v1858
        %2043 = vmatpush.msra.mxu0 %v1857
        %2044 = vmatmul.f32.gmra.mxu0 %v2024
        %v2045 = vpop.f32.mrf.mxu0
        %v2046 = vadd.f32 0.0, %v2045
        %2047 = vmatmul.f32.gmra.mxu0 %v2026
        %v2048 = vpop.f32.mrf.mxu0
        %v2049 = vadd.f32 0.0, %v2048
        %2050 = vdwg.mxu0
        %v2052 = vsel %vm973, %v2018, 0
        %v2055 = vsel %vm973, %v2019, 0
        %v2058 = vsel %vm739, %v2049, 0
        %2060 = vmatpush.msra.mxu0 0.0
        %2061 = vmatpush.msra.mxu0 0.0
        %2062 = vmatpush.msra.mxu0 0.0
        %2063 = vmatpush.msra.mxu0 0.0
        %2064 = vmatpush.msra.mxu0 0.0
        %2065 = vmatpush.msra.mxu0 0.0
        %2066 = vmatpush.msra.mxu0 0.0
        %2067 = vmatpush.msra.mxu0 0.0
        %2068 = vmatpush.msra.mxu0 0.0
        %2069 = vmatpush.msra.mxu0 0.0
        %2070 = vmatpush.msra.mxu0 0.0
        %2071 = vmatpush.msra.mxu0 0.0
        %2072 = vmatpush.msra.mxu0 0.0
        %2073 = vmatpush.msra.mxu0 0.0
        %2074 = vmatpush.msra.mxu0 %v2058
        %2075 = vmatpush.msra.mxu0 %v2046
        %2076 = vmatmul.f32.gmra.mxu0 %v2052
        %v2077 = vpop.f32.mrf.mxu0
        %v2078 = vadd.f32 0.0, %v2077
        %2079 = vmatmul.f32.gmra.mxu0 %v2055
        %v2080 = vpop.f32.mrf.mxu0
        %v2081 = vadd.f32 0.0, %v2080
        %2082 = vdwg.mxu0
        %v2084 = vsel %vm973, %v1926, 0
        %v2087 = vsel %vm973, %v1927, 0
        %v2090 = vsel %vm739, %v1955, 0
        %2092 = vmatpush.msra.mxu0 0.0
        %2093 = vmatpush.msra.mxu0 0.0
        %2094 = vmatpush.msra.mxu0 0.0
        %2095 = vmatpush.msra.mxu0 0.0
        %2096 = vmatpush.msra.mxu0 0.0
        %2097 = vmatpush.msra.mxu0 0.0
        %2098 = vmatpush.msra.mxu0 0.0
        %2099 = vmatpush.msra.mxu0 0.0
        %2100 = vmatpush.msra.mxu0 0.0
        %2101 = vmatpush.msra.mxu0 0.0
        %2102 = vmatpush.msra.mxu0 0.0
        %2103 = vmatpush.msra.mxu0 0.0
        %2104 = vmatpush.msra.mxu0 0.0
        %2105 = vmatpush.msra.mxu0 0.0
        %2106 = vmatpush.msra.mxu0 %v2090
        %2107 = vmatpush.msra.mxu0 %v1952
        %2108 = vmatmul.f32.gmra.mxu0 %v2084
        %v2109 = vpop.f32.mrf.mxu0
        %v2110 = vadd.f32 %v2078, %v2109
        %2111 = vmatmul.f32.gmra.mxu0 %v2087
        %v2112 = vpop.f32.mrf.mxu0
        %v2113 = vadd.f32 %v2081, %v2112
        %2114 = vdwg.mxu0
        %2115 = vrot.lane.b32.xlu0 %v1801, 64
        %v2116 = vpop.permute.xlu0 %2115
        %2117 = vrot.lane.b32.xlu0 %v1804, 64
        %v2118 = vpop.permute.xlu0 %2117
        %2119 = vrot.lane.b32.xlu0 %v1824, 64
        %v2120 = vpop.permute.xlu0 %2119
        %2121 = vrot.lane.b32.xlu0 %v1827, 64
        %v2122 = vpop.permute.xlu0 %2121
        %v2123 = vsel %vm935, %v2116, 0
        %v2125 = vsel %vm935, %v2118, 0
        %v2127 = vsel %vm935, %v2120, 0
        %v2129 = vsel %vm935, %v2122, 0
        %2131 = vmatpush.xpose.msra.mxu0 0.0
        %2132 = vmatpush.xpose.msra.mxu0 0.0
        %2133 = vmatpush.xpose.msra.mxu0 0.0
        %2134 = vmatpush.xpose.msra.mxu0 0.0
        %2135 = vmatpush.xpose.msra.mxu0 0.0
        %2136 = vmatpush.xpose.msra.mxu0 0.0
        %2137 = vmatpush.xpose.msra.mxu0 0.0
        %2138 = vmatpush.xpose.msra.mxu0 0.0
        %2139 = vmatpush.xpose.msra.mxu0 0.0
        %2140 = vmatpush.xpose.msra.mxu0 0.0
        %2141 = vmatpush.xpose.msra.mxu0 0.0
        %2142 = vmatpush.xpose.msra.mxu0 0.0
        %2143 = vmatpush.xpose.msra.mxu0 0.0
        %2144 = vmatpush.xpose.msra.mxu0 0.0
        %2145 = vmatpush.xpose.msra.mxu0 %v2129
        %2146 = vmatpush.xpose.msra.mxu0 %v2127
        %2147 = vmatmul.f32.gmra.mxu0 %v2123
        %v2148 = vpop.f32.mrf.mxu0
        %v2149 = vadd.f32 0.0, %v2148
        %2150 = vmatmul.f32.gmra.mxu0 %v2125
        %v2151 = vpop.f32.mrf.mxu0
        %v2152 = vadd.f32 0.0, %v2151
        %2153 = vdwg.mxu0
        %v2154 = vmul.f32 %v2149, 0.17677669
        %v2155 = vmul.f32 %v2152, 0.17677669
        %v2156 = vsel %vm973, %v2154, -inf
        %2157 = vmax.xlane.f32.xlu0 %v2156
        %v2158 = vpop.xlane.xlu0 %2157
        %v2159 = vsel %vm977, %v2155, -inf
        %2160 = vmax.xlane.f32.xlu0 %v2159
        %v2161 = vpop.xlane.xlu0 %2160
        %v2162 = vsub.f32 %v2154, %v2158
        %v2163 = vsub.f32 %v2155, %v2161
        %v2164 = vmul.f32 %v2162, 1.442695
        %v2165 = vpow.pop %v2164
        %v2166 = vmul.f32 %v2163, 1.442695
        %v2167 = vpow.pop %v2166
        %v2168 = vsel %vm973, %v2165, 0.0
        %2169 = vadd.xlane.f32.xlu0 %v2168
        %v2170 = vpop.xlane.xlu0 %2169
        %v2171 = vsel %vm977, %v2167, 0.0
        %2172 = vadd.xlane.f32.xlu0 %v2171
        %v2173 = vpop.xlane.xlu0 %2172
        %v2174 = vrcp.pop %v2170
        %v2175 = vrcp.pop %v2173
        %v2176 = vmul.f32 %v2165, %v2174
        %v2177 = vmul.f32 %v2167, %v2175
        %2178 = vrot.lane.b32.xlu0 %v1847, 64
        %v2179 = vpop.permute.xlu0 %2178
        %2180 = vrot.lane.b32.xlu0 %v1850, 64
        %v2181 = vpop.permute.xlu0 %2180
        %v2182 = vsel %vm935, %v2179, 0
        %v2184 = vsel %vm935, %v2181, 0
        %2186 = vmatpush.msra.mxu0 0.0
        %2187 = vmatpush.msra.mxu0 0.0
        %2188 = vmatpush.msra.mxu0 0.0
        %2189 = vmatpush.msra.mxu0 0.0
        %2190 = vmatpush.msra.mxu0 0.0
        %2191 = vmatpush.msra.mxu0 0.0
        %2192 = vmatpush.msra.mxu0 0.0
        %2193 = vmatpush.msra.mxu0 0.0
        %2194 = vmatpush.msra.mxu0 0.0
        %2195 = vmatpush.msra.mxu0 0.0
        %2196 = vmatpush.msra.mxu0 0.0
        %2197 = vmatpush.msra.mxu0 0.0
        %2198 = vmatpush.msra.mxu0 %v1864
        %2199 = vmatpush.msra.mxu0 %v1863
        %2200 = vmatpush.msra.mxu0 %v1862
        %2201 = vmatpush.msra.mxu0 %v1861
        %2202 = vmatmul.f32.gmra.mxu0 %v2182
        %v2203 = vpop.f32.mrf.mxu0
        %v2204 = vadd.f32 0.0, %v2203
        %2205 = vmatmul.f32.gmra.mxu0 %v2184
        %v2206 = vpop.f32.mrf.mxu0
        %v2207 = vadd.f32 0.0, %v2206
        %2208 = vdwg.mxu0
        %v2210 = vsel %vm973, %v2176, 0
        %v2213 = vsel %vm973, %v2177, 0
        %v2216 = vsel %vm739, %v2207, 0
        %2218 = vmatpush.msra.mxu0 0.0
        %2219 = vmatpush.msra.mxu0 0.0
        %2220 = vmatpush.msra.mxu0 0.0
        %2221 = vmatpush.msra.mxu0 0.0
        %2222 = vmatpush.msra.mxu0 0.0
        %2223 = vmatpush.msra.mxu0 0.0
        %2224 = vmatpush.msra.mxu0 0.0
        %2225 = vmatpush.msra.mxu0 0.0
        %2226 = vmatpush.msra.mxu0 0.0
        %2227 = vmatpush.msra.mxu0 0.0
        %2228 = vmatpush.msra.mxu0 0.0
        %2229 = vmatpush.msra.mxu0 0.0
        %2230 = vmatpush.msra.mxu0 0.0
        %2231 = vmatpush.msra.mxu0 0.0
        %2232 = vmatpush.msra.mxu0 %v2216
        %2233 = vmatpush.msra.mxu0 %v2204
        %2234 = vmatmul.f32.gmra.mxu0 %v2210
        %v2235 = vpop.f32.mrf.mxu0
        %v2236 = vadd.f32 0.0, %v2235
        %2237 = vmatmul.f32.gmra.mxu0 %v2213
        %v2238 = vpop.f32.mrf.mxu0
        %v2239 = vadd.f32 0.0, %v2238
        %2240 = vdwg.mxu0
        %v2241 = vadd.f32 %v2110, %v2236
        %v2242 = vadd.f32 %v2113, %v2239
        %2243 = vrot.lane.b32.xlu0 %v1801, 32
        %v2244 = vpop.permute.xlu0 %2243
        %2245 = vrot.lane.b32.xlu0 %v1804, 32
        %v2246 = vpop.permute.xlu0 %2245
        %2247 = vrot.lane.b32.xlu0 %v1824, 32
        %v2248 = vpop.permute.xlu0 %2247
        %2249 = vrot.lane.b32.xlu0 %v1827, 32
        %v2250 = vpop.permute.xlu0 %2249
        %v2251 = vsel %vm935, %v2244, 0
        %v2253 = vsel %vm935, %v2246, 0
        %v2255 = vsel %vm935, %v2248, 0
        %v2257 = vsel %vm935, %v2250, 0
        %2259 = vmatpush.xpose.msra.mxu0 0.0
        %2260 = vmatpush.xpose.msra.mxu0 0.0
        %2261 = vmatpush.xpose.msra.mxu0 0.0
        %2262 = vmatpush.xpose.msra.mxu0 0.0
        %2263 = vmatpush.xpose.msra.mxu0 0.0
        %2264 = vmatpush.xpose.msra.mxu0 0.0
        %2265 = vmatpush.xpose.msra.mxu0 0.0
        %2266 = vmatpush.xpose.msra.mxu0 0.0
        %2267 = vmatpush.xpose.msra.mxu0 0.0
        %2268 = vmatpush.xpose.msra.mxu0 0.0
        %2269 = vmatpush.xpose.msra.mxu0 0.0
        %2270 = vmatpush.xpose.msra.mxu0 0.0
        %2271 = vmatpush.xpose.msra.mxu0 0.0
        %2272 = vmatpush.xpose.msra.mxu0 0.0
        %2273 = vmatpush.xpose.msra.mxu0 %v2257
        %2274 = vmatpush.xpose.msra.mxu0 %v2255
        %2275 = vmatmul.f32.gmra.mxu0 %v2251
        %v2276 = vpop.f32.mrf.mxu0
        %v2277 = vadd.f32 0.0, %v2276
        %2278 = vmatmul.f32.gmra.mxu0 %v2253
        %v2279 = vpop.f32.mrf.mxu0
        %v2280 = vadd.f32 0.0, %v2279
        %2281 = vdwg.mxu0
        %v2282 = vmul.f32 %v2277, 0.17677669
        %v2283 = vmul.f32 %v2280, 0.17677669
        %v2284 = vsel %vm973, %v2282, -inf
        %2285 = vmax.xlane.f32.xlu0 %v2284
        %v2286 = vpop.xlane.xlu0 %2285
        %v2287 = vsel %vm977, %v2283, -inf
        %2288 = vmax.xlane.f32.xlu0 %v2287
        %v2289 = vpop.xlane.xlu0 %2288
        %v2290 = vsub.f32 %v2282, %v2286
        %v2291 = vsub.f32 %v2283, %v2289
        %v2292 = vmul.f32 %v2290, 1.442695
        %v2293 = vpow.pop %v2292
        %v2294 = vmul.f32 %v2291, 1.442695
        %v2295 = vpow.pop %v2294
        %v2296 = vsel %vm973, %v2293, 0.0
        %2297 = vadd.xlane.f32.xlu0 %v2296
        %v2298 = vpop.xlane.xlu0 %2297
        %v2299 = vsel %vm977, %v2295, 0.0
        %2300 = vadd.xlane.f32.xlu0 %v2299
        %v2301 = vpop.xlane.xlu0 %2300
        %v2302 = vrcp.pop %v2298
        %v2303 = vrcp.pop %v2301
        %v2304 = vmul.f32 %v2293, %v2302
        %v2305 = vmul.f32 %v2295, %v2303
        %2306 = vrot.lane.b32.xlu0 %v1847, 32
        %v2307 = vpop.permute.xlu0 %2306
        %2308 = vrot.lane.b32.xlu0 %v1850, 32
        %v2309 = vpop.permute.xlu0 %2308
        %v2310 = vsel %vm935, %v2307, 0
        %v2312 = vsel %vm935, %v2309, 0
        %2314 = vmatpush.msra.mxu0 0.0
        %2315 = vmatpush.msra.mxu0 0.0
        %2316 = vmatpush.msra.mxu0 0.0
        %2317 = vmatpush.msra.mxu0 0.0
        %2318 = vmatpush.msra.mxu0 0.0
        %2319 = vmatpush.msra.mxu0 0.0
        %2320 = vmatpush.msra.mxu0 0.0
        %2321 = vmatpush.msra.mxu0 0.0
        %2322 = vmatpush.msra.mxu0 0.0
        %2323 = vmatpush.msra.mxu0 0.0
        %2324 = vmatpush.msra.mxu0 0.0
        %2325 = vmatpush.msra.mxu0 0.0
        %2326 = vmatpush.msra.mxu0 %v1868
        %2327 = vmatpush.msra.mxu0 %v1867
        %2328 = vmatpush.msra.mxu0 %v1866
        %2329 = vmatpush.msra.mxu0 %v1865
        %2330 = vmatmul.f32.gmra.mxu0 %v2310
        %v2331 = vpop.f32.mrf.mxu0
        %v2332 = vadd.f32 0.0, %v2331
        %2333 = vmatmul.f32.gmra.mxu0 %v2312
        %v2334 = vpop.f32.mrf.mxu0
        %v2335 = vadd.f32 0.0, %v2334
        %2336 = vdwg.mxu0
        %v2338 = vsel %vm973, %v2304, 0
        %v2341 = vsel %vm973, %v2305, 0
        %v2344 = vsel %vm739, %v2335, 0
        %2346 = vmatpush.msra.mxu0 0.0
        %2347 = vmatpush.msra.mxu0 0.0
        %2348 = vmatpush.msra.mxu0 0.0
        %2349 = vmatpush.msra.mxu0 0.0
        %2350 = vmatpush.msra.mxu0 0.0
        %2351 = vmatpush.msra.mxu0 0.0
        %2352 = vmatpush.msra.mxu0 0.0
        %2353 = vmatpush.msra.mxu0 0.0
        %2354 = vmatpush.msra.mxu0 0.0
        %2355 = vmatpush.msra.mxu0 0.0
        %2356 = vmatpush.msra.mxu0 0.0
        %2357 = vmatpush.msra.mxu0 0.0
        %2358 = vmatpush.msra.mxu0 0.0
        %2359 = vmatpush.msra.mxu0 0.0
        %2360 = vmatpush.msra.mxu0 %v2344
        %2361 = vmatpush.msra.mxu0 %v2332
        %2362 = vmatmul.f32.gmra.mxu0 %v2338
        %v2363 = vpop.f32.mrf.mxu0
        %v2364 = vadd.f32 0.0, %v2363
        %2365 = vmatmul.f32.gmra.mxu0 %v2341
        %v2366 = vpop.f32.mrf.mxu0
        %v2367 = vadd.f32 0.0, %v2366
        %2368 = vdwg.mxu0
        %v2369 = vadd.f32 %v2241, %v2364
        %v2370 = vadd.f32 %v2242, %v2367
        %s2371 = scalar_lea.vmem %s8, 1
        %v2372 = vld [vmem:[%s2371] sm:$0x1]
        %v2374 = vperm.slane %v2372, 0
        %v2376 = vadd.f32 %v2369, %v2374
        %v2377 = vadd.f32 %v2370, %v2374
        %v2378 = vadd.f32 %v2376, %v1676
        %v2379 = vadd.f32 %v2377, %v1677
        %s2380 = scalar_lea.vmem %s9, 1
        %v2381 = vld [vmem:[%s2380] sm:$0x1]
        %s2382 = scalar_lea.vmem [#allocation13], 1
        %v2383 = vld [vmem:[%s2382] sm:$0x1]
        %2384 = vadd.xlane.f32.xlu0 %v2378
        %v2385 = vpop.xlane.xlu0 %2384
        %v2386 = vsel %vm739, %v2379, 0.0
        %2387 = vadd.xlane.f32.xlu0 %v2386
        %v2388 = vpop.xlane.xlu0 %2387
        %v2389 = vmul.f32 %v2385, %v754
        %v2390 = vmul.f32 %v2388, %v754
        %v2391 = vsub.f32 %v2378, %v2389
        %v2392 = vsub.f32 %v2379, %v2390
        %v2393 = vmul.f32 %v2391, %v2391
        %v2394 = vmul.f32 %v2392, %v2392
        %2395 = vadd.xlane.f32.xlu0 %v2393
        %v2396 = vpop.xlane.xlu0 %2395
        %v2397 = vsel %vm739, %v2394, 0.0
        %2398 = vadd.xlane.f32.xlu0 %v2397
        %v2399 = vpop.xlane.xlu0 %2398
        %v2400 = vmul.f32 %v2396, %v754
        %v2401 = vmul.f32 %v2399, %v754
        %v2402 = vadd.f32 %v2400, 1e-05
        %v2403 = vadd.f32 %v2401, 1e-05
        %v2404 = vrsqrt.pop %v2402
        %v2405 = vmul.f32 %v2404, %v2402
        %v2406 = vmul.f32 %v2405, %v2404
        %v2407 = vmul.f32 0.5, %v2406
        %v2408 = vsub.f32 1.5, %v2407
        %v2409 = vmul.f32 %v2404, %v2408
        %vm2410 = vweird.f32 %v2402
        %vm2411 = vweird.f32 %v2404
        %vm2412 = vmor %vm2410, %vm2411
        %v2413 = vsel %vm2412, %v2404, %v2409
        %v2414 = vrsqrt.pop %v2403
        %v2415 = vmul.f32 %v2414, %v2403
        %v2416 = vmul.f32 %v2415, %v2414
        %v2417 = vmul.f32 0.5, %v2416
        %v2418 = vsub.f32 1.5, %v2417
        %v2419 = vmul.f32 %v2414, %v2418
        %vm2420 = vweird.f32 %v2403
        %vm2421 = vweird.f32 %v2414
        %vm2422 = vmor %vm2420, %vm2421
        %v2423 = vsel %vm2422, %v2414, %v2419
        %v2424 = vmul.f32 %v2391, %v2413
        %v2425 = vmul.f32 %v2392, %v2423
        %v2427 = vperm.slane %v2381, 0
        %v2429 = vmul.f32 %v2424, %v2427
        %v2430 = vmul.f32 %v2425, %v2427
        %v2432 = vperm.slane %v2383, 0
        %v2434 = vadd.f32 %v2429, %v2432
        %v2435 = vadd.f32 %v2430, %v2432
        %s2436 = scalar_lea.vmem [#allocation14], 128
        %v2437 = vld [vmem:[%s2436] sm:$0xff]
        %v2438 = vld [vmem:[%s2436 + $0x8] sm:$0xff]
        %v2439 = vld [vmem:[%s2436 + $0x10] sm:$0xff]
        %v2440 = vld [vmem:[%s2436 + $0x18] sm:$0xff]
        %v2441 = vld [vmem:[%s2436 + $0x20] sm:$0xff]
        %v2442 = vld [vmem:[%s2436 + $0x28] sm:$0xff]
        %v2443 = vld [vmem:[%s2436 + $0x30] sm:$0xff]
        %v2444 = vld [vmem:[%s2436 + $0x38] sm:$0xff]
        %v2445 = vld [vmem:[%s2436 + $0x40] sm:$0xff]
        %v2446 = vld [vmem:[%s2436 + $0x48] sm:$0xff]
        %v2447 = vld [vmem:[%s2436 + $0x50] sm:$0xff]
        %v2448 = vld [vmem:[%s2436 + $0x58] sm:$0xff]
        %v2449 = vld [vmem:[%s2436 + $0x60] sm:$0xff]
        %v2450 = vld [vmem:[%s2436 + $0x68] sm:$0xff]
        %v2451 = vld [vmem:[%s2436 + $0x70] sm:$0xff]
        %v2452 = vld [vmem:[%s2436 + $0x78] sm:$0xff]
        %s2453 = scalar_lea.vmem %s12, 1
        %v2454 = vld [vmem:[%s2453] sm:$0x1]
        %v2456 = vperm.slane %v2454, 0
        %2458 = vmatpush.msra.mxu0 %v2452
        %2459 = vmatpush.msra.mxu0 %v2451
        %2460 = vmatpush.msra.mxu0 %v2450
        %2461 = vmatpush.msra.mxu0 %v2449
        %2462 = vmatpush.msra.mxu0 %v2448
        %2463 = vmatpush.msra.mxu0 %v2447
        %2464 = vmatpush.msra.mxu0 %v2446
        %2465 = vmatpush.msra.mxu0 %v2445
        %2466 = vmatpush.msra.mxu0 %v2444
        %2467 = vmatpush.msra.mxu0 %v2443
        %2468 = vmatpush.msra.mxu0 %v2442
        %2469 = vmatpush.msra.mxu0 %v2441
        %2470 = vmatpush.msra.mxu0 %v2440
        %2471 = vmatpush.msra.mxu0 %v2439
        %2472 = vmatpush.msra.mxu0 %v2438
        %2473 = vmatpush.msra.mxu0 %v2437
        %2474 = vmatmul.f32.gmra.mxu0 %v2434
        %v2475 = vpop.f32.mrf.mxu0
        %v2476 = vadd.f32 %v2456, %v2475
        %2477 = vmatmul.f32.gmra.mxu0 %v2435
        %v2478 = vpop.f32.mrf.mxu0
        %v2479 = vadd.f32 %v2456, %v2478
        %2480 = vdwg.mxu0
        %v2481 = vmul.f32 %v2476, 0.5
        %v2482 = vmul.f32 %v2479, 0.5
        %v2483 = vmul.f32 %v2476, 0.70710677
        %v2484 = vmul.f32 %v2479, 0.70710677
        %v2485 = vmul.f32 %v2483, %v2483
        %v2486 = vmin.f32 16.0, %v2485
        %v2487 = vmul.f32 %v2486, 2.1237322e-06
        %v2488 = vadd.f32 %v2487, 0.00028619796
        %v2489 = vmul.f32 %v2486, %v2488
        %v2490 = vadd.f32 %v2489, 0.0036580483
        %v2491 = vmul.f32 %v2486, %v2490
        %v2492 = vadd.f32 %v2491, 0.05243302
        %v2493 = vmul.f32 %v2486, %v2492
        %v2494 = vadd.f32 %v2493, 0.18741608
        %v2495 = vmul.f32 %v2486, %v2494
        %v2496 = vadd.f32 %v2495, 1.1283791
        %v2497 = vmul.f32 %v2483, %v2496
        %v2498 = vmul.f32 %v2486, 3.8918573e-05
        %v2499 = vadd.f32 %v2498, 0.001143296
        %v2500 = vmul.f32 %v2486, %v2499
        %v2501 = vadd.f32 %v2500, 0.014752088
        %v2502 = vmul.f32 %v2486, %v2501
        %v2503 = vadd.f32 %v2502, 0.112945676
        %v2504 = vmul.f32 %v2486, %v2503
        %v2505 = vadd.f32 %v2504, 0.4994258
        %v2506 = vmul.f32 %v2486, %v2505
        %v2507 = vadd.f32 %v2506, 1.0
        %v2508 = vrcp.pop %v2507
        %v2509 = vmul.f32 %v2507, %v2508
        %v2510 = vsub.f32 1.0, %v2509
        %v2511 = vmul.f32 %v2508, %v2510
        %v2512 = vadd.f32 %v2508, %v2511
        %vm2513 = vweird.f32 %v2507
        %vm2514 = vweird.f32 %v2508
        %vm2515 = vmor %vm2513, %vm2514
        %v2516 = vsel %vm2515, %v2508, %v2512
        %v2517 = vand.u32 2147483647, %v2507
        %vm2518 = vcmp.eq.f32.partialorder %v2517, 8.507059e+37
        %v2519 = vand.u32 %v2507, 2147483648
        %v2520 = vor.u32 1.1754944e-38, %v2519
        %v2521 = vsel %vm2518, %v2520, %v2516
        %v2522 = vmul.f32 %v2497, %v2521
        %v2523 = vmin.f32 %v2522, 1.0
        %v2524 = vmax.f32 %v2523, -1.0
        %v2525 = vmul.f32 %v2484, %v2484
        %v2526 = vmin.f32 16.0, %v2525
        %v2527 = vmul.f32 %v2526, 2.1237322e-06
        %v2528 = vadd.f32 %v2527, 0.00028619796
        %v2529 = vmul.f32 %v2526, %v2528
        %v2530 = vadd.f32 %v2529, 0.0036580483
        %v2531 = vmul.f32 %v2526, %v2530
        %v2532 = vadd.f32 %v2531, 0.05243302
        %v2533 = vmul.f32 %v2526, %v2532
        %v2534 = vadd.f32 %v2533, 0.18741608
        %v2535 = vmul.f32 %v2526, %v2534
        %v2536 = vadd.f32 %v2535, 1.1283791
        %v2537 = vmul.f32 %v2484, %v2536
        %v2538 = vmul.f32 %v2526, 3.8918573e-05
        %v2539 = vadd.f32 %v2538, 0.001143296
        %v2540 = vmul.f32 %v2526, %v2539
        %v2541 = vadd.f32 %v2540, 0.014752088
        %v2542 = vmul.f32 %v2526, %v2541
        %v2543 = vadd.f32 %v2542, 0.112945676
        %v2544 = vmul.f32 %v2526, %v2543
        %v2545 = vadd.f32 %v2544, 0.4994258
        %v2546 = vmul.f32 %v2526, %v2545
        %v2547 = vadd.f32 %v2546, 1.0
        %v2548 = vrcp.pop %v2547
        %v2549 = vmul.f32 %v2547, %v2548
        %v2550 = vsub.f32 1.0, %v2549
        %v2551 = vmul.f32 %v2548, %v2550
        %v2552 = vadd.f32 %v2548, %v2551
        %vm2553 = vweird.f32 %v2547
        %vm2554 = vweird.f32 %v2548
        %vm2555 = vmor %vm2553, %vm2554
        %v2556 = vsel %vm2555, %v2548, %v2552
        %v2557 = vand.u32 2147483647, %v2547
        %vm2558 = vcmp.eq.f32.partialorder %v2557, 8.507059e+37
        %v2559 = vand.u32 %v2547, 2147483648
        %v2560 = vor.u32 1.1754944e-38, %v2559
        %v2561 = vsel %vm2558, %v2560, %v2556
        %v2562 = vmul.f32 %v2537, %v2561
        %v2563 = vmin.f32 %v2562, 1.0
        %v2564 = vmax.f32 %v2563, -1.0
        %v2565 = vadd.f32 %v2524, 1.0
        %v2566 = vadd.f32 %v2564, 1.0
        %v2567 = vmul.f32 %v2481, %v2565
        %v2568 = vmul.f32 %v2482, %v2566
        %s2569 = scalar_lea.vmem [#allocation16], 128
        %v2570 = vld [vmem:[%s2569] sm:$0xff]
        %v2571 = vld [vmem:[%s2569 + $0x8] sm:$0xff]
        %v2572 = vld [vmem:[%s2569 + $0x10] sm:$0xff]
        %v2573 = vld [vmem:[%s2569 + $0x18] sm:$0xff]
        %v2574 = vld [vmem:[%s2569 + $0x20] sm:$0xff]
        %v2575 = vld [vmem:[%s2569 + $0x28] sm:$0xff]
        %v2576 = vld [vmem:[%s2569 + $0x30] sm:$0xff]
        %v2577 = vld [vmem:[%s2569 + $0x38] sm:$0xff]
        %v2578 = vld [vmem:[%s2569 + $0x40] sm:$0xff]
        %v2579 = vld [vmem:[%s2569 + $0x48] sm:$0xff]
        %v2580 = vld [vmem:[%s2569 + $0x50] sm:$0xff]
        %v2581 = vld [vmem:[%s2569 + $0x58] sm:$0xff]
        %v2582 = vld [vmem:[%s2569 + $0x60] sm:$0xff]
        %v2583 = vld [vmem:[%s2569 + $0x68] sm:$0xff]
        %v2584 = vld [vmem:[%s2569 + $0x70] sm:$0xff]
        %v2585 = vld [vmem:[%s2569 + $0x78] sm:$0xff]
        %s2586 = scalar_lea.vmem %s14, 1
        %v2587 = vld [vmem:[%s2586] sm:$0x1]
        %v2589 = vperm.slane %v2587, 0
        %2591 = vmatpush.msra.mxu0 %v2585
        %2592 = vmatpush.msra.mxu0 %v2584
        %2593 = vmatpush.msra.mxu0 %v2583
        %2594 = vmatpush.msra.mxu0 %v2582
        %2595 = vmatpush.msra.mxu0 %v2581
        %2596 = vmatpush.msra.mxu0 %v2580
        %2597 = vmatpush.msra.mxu0 %v2579
        %2598 = vmatpush.msra.mxu0 %v2578
        %2599 = vmatpush.msra.mxu0 %v2577
        %2600 = vmatpush.msra.mxu0 %v2576
        %2601 = vmatpush.msra.mxu0 %v2575
        %2602 = vmatpush.msra.mxu0 %v2574
        %2603 = vmatpush.msra.mxu0 %v2573
        %2604 = vmatpush.msra.mxu0 %v2572
        %2605 = vmatpush.msra.mxu0 %v2571
        %2606 = vmatpush.msra.mxu0 %v2570
        %2607 = vmatmul.f32.gmra.mxu0 %v2567
        %v2608 = vpop.f32.mrf.mxu0
        %v2609 = vadd.f32 %v2589, %v2608
        %2610 = vmatmul.f32.gmra.mxu0 %v2568
        %v2611 = vpop.f32.mrf.mxu0
        %2612 = vdwg.mxu0
        %v2613 = vadd.f32 %v2609, %v2378
        %v2614 = vld [vmem:[%s15] sm:$0x1]
        %v2615 = vld [vmem:[%s16] sm:$0x1]
        %v2616 = vsel %vm739, %v2613, 0.0
        %2617 = vadd.xlane.f32.xlu0 %v2616
        %v2618 = vpop.xlane.xlu0 %2617
        %v2619 = vmul.f32 %v2618, %v754
        %v2620 = vsub.f32 %v2613, %v2619
        %v2621 = vmul.f32 %v2620, %v2620
        %v2622 = vsel %vm739, %v2621, 0.0
        %2623 = vadd.xlane.f32.xlu0 %v2622
        %v2624 = vpop.xlane.xlu0 %2623
        %v2625 = vmul.f32 %v2624, %v754
        %v2626 = vadd.f32 %v2625, 1e-05
        %v2627 = vrsqrt.pop %v2626
        %v2628 = vmul.f32 %v2627, %v2626
        %v2629 = vmul.f32 %v2628, %v2627
        %v2630 = vmul.f32 0.5, %v2629
        %v2631 = vsub.f32 1.5, %v2630
        %v2632 = vmul.f32 %v2627, %v2631
        %vm2633 = vweird.f32 %v2626
        %vm2634 = vweird.f32 %v2627
        %vm2635 = vmor %vm2633, %vm2634
        %v2636 = vsel %vm2635, %v2627, %v2632
        %v2637 = vmul.f32 %v2620, %v2636
        %v2638 = vmul.f32 %v2637, %v2614
        %v2639 = vadd.f32 %v2638, %v2615
        %2640 = vst [vmem:[%s692] sm:$0x1] %v2639
        %s2641 = sand.u32 %s408, 1
        %s2642 = scalar_lea.sflag [#allocation4], %s2641
        %s2643 = sand.u32 %s408, 1
        %s2644 = scalar_lea.vmem [#allocation17], %s2643
        // Predicated region
        $region125: #{tpu_custom_call.1} parent=87 // pred_check
          %p2645 = pneg %p418
        $region126: #{tpu_custom_call.1} parent=87 // pred_check_branch
          %2647 = sbr.rel (%p2645) target = $region128
        $region127: #{tpu_custom_call.1} parent=87 // pred_region
          %2649 = vsyncadd %s2642, 0
          %s2650 = scalar_lea.hbm %s17, %s38
          %s2652 = sshll.u32 %s2644, 4
          %s2653 = int_to_ptr.vmem [resolvable:$true] %s2652
          %s2654 = sshll.u32 %s2650, 4
          %s2655 = int_to_ptr.hbm [resolvable:$true] %s2654
          %2657 = dma.vmem_to_hbm [thread:$0]  %s2653, 16, %s2655, %s2642
        $region128: #{tpu_custom_call.1} parent=87 // pred_fallthru
          _
      $region88: #{tpu_custom_call.1} parent=5 // pred_fallthru
        _
      %p2658 = scmp.le.s32.totalorder 2, %s33
      // Predicated region
      $region129: #{tpu_custom_call.1} parent=5 // pred_check
        %p2659 = pneg %p2658
      $region130: #{tpu_custom_call.1} parent=5 // pred_check_branch
        %2661 = sbr.rel (%p2659) target = $region132
      $region131: #{tpu_custom_call.1} parent=5 // pred_region
        %s2662 = ssub.s32 %s33, 2
        // Predicated region
        $region133: #{tpu_custom_call.1} parent=131 // pred_check
          %p2663 = pneg %p424
        $region134: #{tpu_custom_call.1} parent=131 // pred_check_branch
          %2665 = sbr.rel (%p2663) target = $region136
        $region135: #{tpu_custom_call.1} parent=131 // pred_region
          %s2666 = sand.u32 %s409, 1
          %s2667 = scalar_lea.sflag [#allocation4], %s2666
          %s2668 = sand.u32 %s409, 1
          %s2669 = scalar_lea.vmem [#allocation17], %s2668
          %2671 = dma.done %s2667, 16
        $region136: #{tpu_custom_call.1} parent=131 // pred_fallthru
          _
      $region132: #{tpu_custom_call.1} parent=5 // pred_fallthru
        _
    $region6: #{tpu_custom_call.1} parent=1 // loop_footer
      %s37 = sadd.s32 1, %s33
    $region7: #{tpu_custom_call.1} parent=1 // loop_footer_branch
      %32 = sbr.rel target = $region3
    $region8: #{tpu_custom_call.1} parent=1 // loop_exit
      _
    %2672 = vsyncpa [#allocation3], 1
    %s2673 = scalar_lea.sflag [#allocation3], 1
    %2674 = vsyncpa %s2673, 1
    %2675 = vsyncpa [#allocation6], 1
    %2676 = vsyncpa [#allocation9], 1
    %2677 = vsyncpa [#allocation12], 1
    %2678 = vsyncpa [#allocation15], 1
    %2679 = vsyncpa [#allocation4], 1
    %s2680 = scalar_lea.sflag [#allocation4], 1
    %2681 = vsyncpa %s2680, 1

</llo_original>
